<compile_context>
chip_gen: v6e
topology: v6e:2x2x1
jax: 0.10.0
libtpu: 0.0.40
codegen_flags: <defaults>
</compile_context>

<pallas_src>
import functools
import math

import jax
import jax.numpy as jnp
from jax.experimental import pallas as pl
from jax.experimental.pallas import tpu as pltpu


def _round_up(v, m):
    return (v + m - 1) // m * m


def _leaky(v, slope):
    return jnp.where(v >= 0, v, slope * v)


# aux row layout (one resident (8, OUT_P) tile)
_AUX_SNORM_SQ = 0   # ||s_j||^2 at cols [nc:2nc]
_AUX_SNORM = 1      # ||s_j||   at cols [nc:2nc]
_AUX_CLS_BIAS = 2   # 0 at cols [nc:2nc], -1e30 elsewhere
_AUX_M_OUT = 3      # 1 at cols [0:nc]
_AUX_M_LOSS = 4     # 1 at cols [nc:2nc]


# --------------------------- fused forward kernel ---------------------------
def smn_fused_kernel(x_ref, w_pre_ref, b_pre_ref, att_ref, w_post_ref,
                     b_post_ref, ssf_ref, aux_ref, out_ref, *, slope, nhop):
    tn = out_ref.shape[0]

    # ---- K1: pre_ln for ALL hops in one MXU matmul (bf16 in, f32 acc) ------
    hbig = jnp.dot(x_ref[...], w_pre_ref[...],
                   preferred_element_type=jnp.float32) + b_pre_ref[...]
    hbig = _leaky(hbig, slope)                       # (nhop*tn, HH), hop-major
    h = [hbig[k * tn:(k + 1) * tn, :] for k in range(nhop)]  # tile-aligned views

    # ---- K2: hop attention; softmax over the (unrolled) hop axis on the VPU -
    att = att_ref[...]                               # (nhop, HH) heads-major
    am = [h[k] * att[k:k + 1, :] for k in range(nhop)]
    # NOTE: hop-0 score is leaky(2*am0) -- matches the PyTorch root+root case.
    score = [_leaky(am[0] + am[k], slope) for k in range(nhop)]
    m = score[0]
    for k in range(1, nhop):
        m = jnp.maximum(m, score[k])
    e = [jnp.exp(score[k] - m) for k in range(nhop)]
    denom = e[0]
    num = h[0] * e[0]
    for k in range(1, nhop):
        denom = denom + e[k]
        num = num + h[k] * e[k]
    z = num * pl.reciprocal(denom, approx=True)      # (tn, HH); denom >= 1

    # ---- K3: post_ln + leaky_relu into packed columns [2nc : 2nc+nssf] ------
    xo = _leaky(
        jnp.dot(z, w_post_ref[...], preferred_element_type=jnp.float32)
        + b_post_ref[...], slope)                    # (tn, OUT_P); other cols 0

    # ---- K4: logits (duplicated), -cdist (algebraic), cosine, log_softmax ---
    # ssf_packed places ssf_norm at cols [0:nc] (the "out" slot) AND [nc:2nc]
    # (under the loss slot), so one matmul feeds both.
    out_dup = jnp.dot(xo, ssf_ref[...], preferred_element_type=jnp.float32)

    aux = aux_ref[...]
    snorm_sq = aux[_AUX_SNORM_SQ:_AUX_SNORM_SQ + 1, :]
    snorm = aux[_AUX_SNORM:_AUX_SNORM + 1, :]
    cls_bias = aux[_AUX_CLS_BIAS:_AUX_CLS_BIAS + 1, :]
    m_out = aux[_AUX_M_OUT:_AUX_M_OUT + 1, :]
    m_loss = aux[_AUX_M_LOSS:_AUX_M_LOSS + 1, :]

    xnorm_sq = jnp.sum(xo * xo, axis=1, keepdims=True)   # (tn, 1)
    xnorm = jnp.sqrt(xnorm_sq)

    # ||x - s_j||^2 = ||x||^2 + ||s_j||^2 - 2 x.s_j (clamped >= 0 before sqrt)
    dist_sq = jnp.maximum(xnorm_sq + snorm_sq - 2.0 * out_dup, 0.0)
    sd = -jnp.sqrt(dist_sq) + cls_bias                    # masked via bias
    # cosine similarity (dim=1, eps=1e-6): x.s / max(||x|| ||s||, eps), exact.
    cos = out_dup / jnp.maximum(xnorm * snorm, 1e-6) + cls_bias

    # log_softmax over the class slot [nc:2nc]
    mm = jnp.max(sd, axis=1, keepdims=True)
    zz = sd - mm
    lsm_sd = zz - jnp.log(jnp.sum(jnp.exp(zz), axis=1, keepdims=True))
    # cos is bounded on valid lanes (masked lanes underflow to exp()==0), so
    # the max-subtraction can be dropped (one fewer XLU reduce).
    lsm_cos = cos - jnp.log(jnp.sum(jnp.exp(cos), axis=1, keepdims=True))
    loss = 0.5 * (lsm_sd + lsm_cos)

    # ---- pack:  [0:nc]=out  [nc:2nc]=loss  [2nc:2nc+nssf]=xo  rest 0 --------
    out_ref[...] = out_dup * m_out + loss * m_loss + xo   # one lane-dense vst


def smn_fused(xb, w_pre, b_pre, att_t, w_post_p, b_post_p, ssf_p, aux,
              *, slope, nhop, tn, n_pad):
    nfeat = xb.shape[1]
    HH = w_pre.shape[1]
    out_p = ssf_p.shape[1]
    grid = (n_pad // tn,)

    kernel = functools.partial(smn_fused_kernel, slope=slope, nhop=nhop)
    return pl.pallas_call(
        kernel,
        out_shape=jax.ShapeDtypeStruct((n_pad, out_p), jnp.float32),
        grid_spec=pltpu.PrefetchScalarGridSpec(
            num_scalar_prefetch=0,
            grid=grid,
            in_specs=[
                pl.BlockSpec((nhop * tn, nfeat), lambda i: (i, 0)),  # x slab (bf16)
                pl.BlockSpec((nfeat, HH), lambda i: (0, 0)),         # w_pre (bf16, resident)
                pl.BlockSpec((1, HH), lambda i: (0, 0)),             # b_pre
                pl.BlockSpec((nhop, HH), lambda i: (0, 0)),          # att (folded)
                pl.BlockSpec((HH, out_p), lambda i: (0, 0)),         # w_post (packed cols)
                pl.BlockSpec((1, out_p), lambda i: (0, 0)),          # b_post (packed cols)
                pl.BlockSpec((out_p, out_p), lambda i: (0, 0)),      # ssf (packed+dup)
                pl.BlockSpec((8, out_p), lambda i: (0, 0)),          # aux rows (resident)
            ],
            out_specs=pl.BlockSpec((tn, out_p), lambda i: (i, 0)),   # packed slab
        ),
        compiler_params=pltpu.CompilerParams(
            dimension_semantics=("parallel",),
            # safe on all of v5e/v6e/v7x at these sizes; raise toward 64-96 MiB
            # on v5e/v6e (128 MiB physical) for large tiles / large nfeat.
            vmem_limit_bytes=32 * 1024 * 1024,
        ),
    )(xb, w_pre, b_pre, att_t, w_post_p, b_post_p, ssf_p, aux)


# ----------------------------- glue (plain JAX) ------------------------------
def ssf_normalize(ssf, sp_rate):
    """Sparsify by magnitude threshold then L1-normalize each row (dim=1)."""
    size = ssf.shape[0] * ssf.shape[1]
    filter_idx = round(size * sp_rate)            # static Python, like torch
    if filter_idx >= size:                        # torch would raise IndexError here
        raise IndexError("sp_rate too large: threshold index out of range")
    flat = jnp.abs(ssf).reshape(-1)
    thr = jnp.sort(flat)[filter_idx]
    ssf_t = jnp.where(jnp.abs(ssf) >= thr, ssf, 0.0)
    l1 = jnp.sum(jnp.abs(ssf_t), axis=1, keepdims=True)
    return ssf_t / jnp.maximum(l1, 1e-12)         # F.normalize(p=1, dim=1)
    # TODO(synk): dataset.startswith('mag_') L2-normalize branch not exercised.


def smn_forward(x, params, cfg, *, block_n=512):
    slope = cfg["negative_slope"]
    nhop, nheads, nhid = cfg["nhop"], cfg["nheads"], cfg["nhid"]
    nssf, nclass = cfg["nssf"], cfg["nclass"]
    HH = nheads * nhid
    nfeat = x.shape[1]
    N = x.shape[0] // nhop

    # --- tile choice: big tiles (>=512 approaches HBM roofline) but always ---
    # --- >= 2 grid blocks so the parallel axis shards across v7x's 2 TCs.  ---
    if N >= 16:
        tn = min(block_n, _round_up((N + 1) // 2, 8))
    else:
        tn = _round_up(max(N, 1), 8)
    tn = max(tn, 8)
    n_pad = _round_up(N, tn)
    nblk = n_pad // tn

    # --- x: bf16, hop-major, block-interleaved (nblk*nhop*tn, nfeat) slab ----
    # TODO(synk): at graph-scale nfeat avoid this XLA transpose and K-block the
    #             pre_ln matmul instead (see header TODO).
    xv = x.astype(jnp.bfloat16).reshape(N, nhop, nfeat)
    if n_pad != N:
        xv = jnp.pad(xv, ((0, n_pad - N), (0, 0), (0, 0)))
    xb = xv.reshape(nblk, tn, nhop, nfeat).transpose(0, 2, 1, 3)
    xb = xb.reshape(nblk * nhop * tn, nfeat)

    w_pre_bf = params["w_pre"].astype(jnp.bfloat16)

    # attention param folded heads-major, matching pre_ln output layout
    att_t = jnp.swapaxes(params["att"], 0, 1).reshape(nhop, HH)

    # --- packed output column layout: [0:nc]=out [nc:2nc]=loss [2nc:+nssf]=xo -
    nc = nclass
    out_p = _round_up(2 * nc + nssf, 128)
    off = 2 * nc
    w_post_p = jnp.zeros((HH, out_p), jnp.float32)
    w_post_p = w_post_p.at[:, off:off + nssf].set(params["w_post"])
    b_post_p = jnp.zeros((1, out_p), jnp.float32)
    b_post_p = b_post_p.at[:, off:off + nssf].set(params["b_post"])

    ssf_norm = ssf_normalize(params["ssf"], cfg["sp_rate"])   # (nssf, nclass)
    ssf_p = jnp.zeros((out_p, out_p), jnp.float32)
    ssf_p = ssf_p.at[off:off + nssf, 0:nc].set(ssf_norm)       # "out" slot
    ssf_p = ssf_p.at[off:off + nssf, nc:2 * nc].set(ssf_norm)  # dup under loss slot

    snorm_sq = jnp.sum(ssf_norm * ssf_norm, axis=0)            # (nclass,)
    col = jnp.arange(out_p)
    in_loss = (col >= nc) & (col < 2 * nc)
    aux = jnp.zeros((8, out_p), jnp.float32)
    aux = aux.at[_AUX_SNORM_SQ, nc:2 * nc].set(snorm_sq)
    aux = aux.at[_AUX_SNORM, nc:2 * nc].set(jnp.sqrt(snorm_sq))
    aux = aux.at[_AUX_CLS_BIAS].set(jnp.where(in_loss, 0.0, -1e30))
    aux = aux.at[_AUX_M_OUT].set(jnp.where(col < nc, 1.0, 0.0))
    aux = aux.at[_AUX_M_LOSS].set(jnp.where(in_loss, 1.0, 0.0))

    packed = smn_fused(xb, w_pre_bf, params["b_pre"], att_t, w_post_p,
                       b_post_p, ssf_p, aux,
                       slope=slope, nhop=nhop, tn=tn, n_pad=n_pad)

    out = packed[:N, 0:nc]
    spatial_loss = packed[:N, nc:2 * nc]
    xo = packed[:N, off:off + nssf]
    # TODO(synk): 'facebook' / 'mag_*' dataset branches (sigmoid outputs,
    #             subspace pairwise-distance loss) not exercised for 'cora'.
    return out, ssf_norm, xo, spatial_loss, params["sigma"]


# ------------------------------ parameter init -------------------------------
def init_params(key, cfg):
    nfeat, nhid, nheads = cfg["nfeat"], cfg["nhid"], cfg["nheads"]
    nhop, nssf, nclass = cfg["nhop"], cfg["nssf"], cfg["nclass"]
    HH = nheads * nhid
    ks = jax.random.split(key, 6)

    def xavier(k, shape, fan_in, fan_out):
        bound = math.sqrt(6.0 / (fan_in + fan_out))
        return jax.random.uniform(k, shape, jnp.float32, -bound, bound)

    def bias(k, shape, fan_in):
        bound = 1.0 / math.sqrt(fan_in)
        return jax.random.uniform(k, shape, jnp.float32, -bound, bound)

    return dict(
        w_pre=xavier(ks[0], (nfeat, HH), nfeat, HH),          # pre_ln.weight^T
        b_pre=bias(ks[1], (1, HH), nfeat),                    # pre_ln.bias
        att=xavier(ks[2], (nheads, nhop, nhid), nhop * nhid, nheads * nhid),
        w_post=xavier(ks[3], (HH, nssf), HH, nssf),           # post_ln.weight^T
        b_post=bias(ks[4], (1, nssf), HH),                    # post_ln.bias
        ssf=xavier(ks[5], (nssf, nclass), nssf, nclass),      # subspace_filter
        sigma=jnp.ones((2,), jnp.float32),
    )


if __name__ == "__main__":
    cfg = dict(nfeat=16, nclass=8, nhid=32, nssf=32, sp_rate=0.5,
               nhop=3, nheads=2, negative_slope=0.2, dropout=0.0,
               dataset="cora")
    N = 512                                  # number of nodes (2 grid blocks)
    key = jax.random.PRNGKey(0)
    kx, kp = jax.random.split(key)
    x = jax.random.normal(kx, (N * cfg["nhop"], cfg["nfeat"]), jnp.float32)
    params = init_params(kp, cfg)

    fwd = jax.jit(functools.partial(smn_forward, cfg=cfg))
    out, ssf_norm, x_rep, spatial_loss, sigma = fwd(x, params)
    jax.block_until_ready((out, ssf_norm, x_rep, spatial_loss, sigma))

    assert out.shape == (N, cfg["nclass"])
    assert ssf_norm.shape == (cfg["nssf"], cfg["nclass"])
    assert x_rep.shape == (N, cfg["nssf"])
    assert spatial_loss.shape == (N, cfg["nclass"])
    assert sigma.shape == (2,)
    assert bool(jnp.all(jnp.isfinite(out)))
    assert bool(jnp.all(jnp.isfinite(spatial_loss)))
    assert bool(jnp.all(jnp.isfinite(x_rep)))
    print("KERNEL_OK")
</pallas_src>

<mosaic_0001>
module attributes {stable_mosaic.version = 11 : i64} {
  func.func @smn_fused_kernel(%arg0: i32, %arg1: memref<768x16xbf16, #tpu.memory_space<vmem>>, %arg2: memref<16x64xbf16, #tpu.memory_space<vmem>>, %arg3: memref<1x64xf32, #tpu.memory_space<vmem>>, %arg4: memref<3x64xf32, #tpu.memory_space<vmem>>, %arg5: memref<64x128xf32, #tpu.memory_space<vmem>>, %arg6: memref<1x128xf32, #tpu.memory_space<vmem>>, %arg7: memref<128x128xf32, #tpu.memory_space<vmem>>, %arg8: memref<8x128xf32, #tpu.memory_space<vmem>>, %arg9: memref<256x128xf32, #tpu.memory_space<vmem>>) attributes {dimension_semantics = [#tpu.dimension_semantics<parallel>], iteration_bounds = array<i64: 2>, scalar_prefetch = 0 : i64, scratch_operands = 0 : i64, tpu.core_type = #tpu.core_type<tc>, window_params = [{transform_indices = @transform_0, window_bounds = array<i64: 768, 16>}, {pipeline_mode = #tpu.pipeline_mode<synchronous>, transform_indices = @transform_1, window_bounds = array<i64: 16, 64>}, {pipeline_mode = #tpu.pipeline_mode<synchronous>, transform_indices = @transform_2, window_bounds = array<i64: 1, 64>}, {pipeline_mode = #tpu.pipeline_mode<synchronous>, transform_indices = @transform_3, window_bounds = array<i64: 3, 64>}, {pipeline_mode = #tpu.pipeline_mode<synchronous>, transform_indices = @transform_4, window_bounds = array<i64: 64, 128>}, {pipeline_mode = #tpu.pipeline_mode<synchronous>, transform_indices = @transform_5, window_bounds = array<i64: 1, 128>}, {pipeline_mode = #tpu.pipeline_mode<synchronous>, transform_indices = @transform_6, window_bounds = array<i64: 128, 128>}, {pipeline_mode = #tpu.pipeline_mode<synchronous>, transform_indices = @transform_7, window_bounds = array<i64: 8, 128>}, {transform_indices = @transform_8, window_bounds = array<i64: 256, 128>}]} {
    %c0 = arith.constant 0 : index
    %c0_0 = arith.constant 0 : index
    %0 = vector.load %arg1[%c0, %c0_0] : memref<768x16xbf16, #tpu.memory_space<vmem>>, vector<768x16xbf16>
    %c0_1 = arith.constant 0 : index
    %c0_2 = arith.constant 0 : index
    %1 = vector.load %arg2[%c0_1, %c0_2] : memref<16x64xbf16, #tpu.memory_space<vmem>>, vector<16x64xbf16>
    %cst = arith.constant dense<0.000000e+00> : vector<768x64xf32>
    %2 = tpu.matmul %0, %1, %cst {dimension_numbers = #tpu.dot_dimension_numbers<[1], [0], [0], [1], [0, 0, 1, 1], [], []>} : vector<768x16xbf16>, vector<16x64xbf16>, vector<768x64xf32> -> vector<768x64xf32>
    %c0_3 = arith.constant 0 : index
    %c0_4 = arith.constant 0 : index
    %3 = vector.load %arg3[%c0_3, %c0_4] : memref<1x64xf32, #tpu.memory_space<vmem>>, vector<1x64xf32>
    %4 = vector.broadcast %3 : vector<1x64xf32> to vector<768x64xf32>
    %5 = arith.addf %2, %4 : vector<768x64xf32>
    %cst_5 = arith.constant 0.000000e+00 : f32
    %6 = vector.broadcast %cst_5 : f32 to vector<768x64xf32>
    %7 = arith.cmpf oge, %5, %6 : vector<768x64xf32>
    %cst_6 = arith.constant 2.000000e-01 : f32
    %8 = vector.broadcast %cst_6 : f32 to vector<768x64xf32>
    %9 = arith.mulf %8, %5 : vector<768x64xf32>
    %10 = arith.select %7, %5, %9 : vector<768x64xi1>, vector<768x64xf32>
    %11 = vector.extract_strided_slice %10 {offsets = [0, 0], sizes = [256, 64], strides = [1, 1]} : vector<768x64xf32> to vector<256x64xf32>
    %12 = vector.extract_strided_slice %10 {offsets = [256, 0], sizes = [256, 64], strides = [1, 1]} : vector<768x64xf32> to vector<256x64xf32>
    %13 = vector.extract_strided_slice %10 {offsets = [512, 0], sizes = [256, 64], strides = [1, 1]} : vector<768x64xf32> to vector<256x64xf32>
    %c0_7 = arith.constant 0 : index
    %c0_8 = arith.constant 0 : index
    %14 = vector.load %arg4[%c0_7, %c0_8] : memref<3x64xf32, #tpu.memory_space<vmem>>, vector<3x64xf32>
    %15 = vector.extract_strided_slice %14 {offsets = [0, 0], sizes = [1, 64], strides = [1, 1]} : vector<3x64xf32> to vector<1x64xf32>
    %16 = vector.broadcast %15 : vector<1x64xf32> to vector<256x64xf32>
    %17 = arith.mulf %11, %16 : vector<256x64xf32>
    %18 = vector.extract_strided_slice %14 {offsets = [1, 0], sizes = [1, 64], strides = [1, 1]} : vector<3x64xf32> to vector<1x64xf32>
    %19 = vector.broadcast %18 : vector<1x64xf32> to vector<256x64xf32>
    %20 = arith.mulf %12, %19 : vector<256x64xf32>
    %21 = vector.extract_strided_slice %14 {offsets = [2, 0], sizes = [1, 64], strides = [1, 1]} : vector<3x64xf32> to vector<1x64xf32>
    %22 = vector.broadcast %21 : vector<1x64xf32> to vector<256x64xf32>
    %23 = arith.mulf %13, %22 : vector<256x64xf32>
    %24 = arith.addf %17, %17 : vector<256x64xf32>
    %cst_9 = arith.constant 0.000000e+00 : f32
    %25 = vector.broadcast %cst_9 : f32 to vector<256x64xf32>
    %26 = arith.cmpf oge, %24, %25 : vector<256x64xf32>
    %cst_10 = arith.constant 2.000000e-01 : f32
    %27 = vector.broadcast %cst_10 : f32 to vector<256x64xf32>
    %28 = arith.mulf %27, %24 : vector<256x64xf32>
    %29 = arith.select %26, %24, %28 : vector<256x64xi1>, vector<256x64xf32>
    %30 = arith.addf %17, %20 : vector<256x64xf32>
    %cst_11 = arith.constant 0.000000e+00 : f32
    %31 = vector.broadcast %cst_11 : f32 to vector<256x64xf32>
    %32 = arith.cmpf oge, %30, %31 : vector<256x64xf32>
    %cst_12 = arith.constant 2.000000e-01 : f32
    %33 = vector.broadcast %cst_12 : f32 to vector<256x64xf32>
    %34 = arith.mulf %33, %30 : vector<256x64xf32>
    %35 = arith.select %32, %30, %34 : vector<256x64xi1>, vector<256x64xf32>
    %36 = arith.addf %17, %23 : vector<256x64xf32>
    %cst_13 = arith.constant 0.000000e+00 : f32
    %37 = vector.broadcast %cst_13 : f32 to vector<256x64xf32>
    %38 = arith.cmpf oge, %36, %37 : vector<256x64xf32>
    %cst_14 = arith.constant 2.000000e-01 : f32
    %39 = vector.broadcast %cst_14 : f32 to vector<256x64xf32>
    %40 = arith.mulf %39, %36 : vector<256x64xf32>
    %41 = arith.select %38, %36, %40 : vector<256x64xi1>, vector<256x64xf32>
    %42 = arith.maximumf %29, %35 : vector<256x64xf32>
    %43 = arith.maximumf %42, %41 : vector<256x64xf32>
    %44 = arith.subf %29, %43 : vector<256x64xf32>
    %45 = math.exp %44 : vector<256x64xf32>
    %46 = arith.subf %35, %43 : vector<256x64xf32>
    %47 = math.exp %46 : vector<256x64xf32>
    %48 = arith.subf %41, %43 : vector<256x64xf32>
    %49 = math.exp %48 : vector<256x64xf32>
    %50 = arith.mulf %11, %45 : vector<256x64xf32>
    %51 = arith.addf %45, %47 : vector<256x64xf32>
    %52 = arith.mulf %12, %47 : vector<256x64xf32>
    %53 = arith.addf %50, %52 : vector<256x64xf32>
    %54 = arith.addf %51, %49 : vector<256x64xf32>
    %55 = arith.mulf %13, %49 : vector<256x64xf32>
    %56 = arith.addf %53, %55 : vector<256x64xf32>
    %57 = tpu.reciprocal %54 {approx = true} : vector<256x64xf32> -> vector<256x64xf32>
    %58 = arith.mulf %56, %57 : vector<256x64xf32>
    %c0_15 = arith.constant 0 : index
    %c0_16 = arith.constant 0 : index
    %59 = vector.load %arg5[%c0_15, %c0_16] : memref<64x128xf32, #tpu.memory_space<vmem>>, vector<64x128xf32>
    %cst_17 = arith.constant dense<0.000000e+00> : vector<256x128xf32>
    %60 = tpu.matmul %58, %59, %cst_17 {dimension_numbers = #tpu.dot_dimension_numbers<[1], [0], [0], [1], [0, 0, 1, 1], [], []>} : vector<256x64xf32>, vector<64x128xf32>, vector<256x128xf32> -> vector<256x128xf32>
    %c0_18 = arith.constant 0 : index
    %c0_19 = arith.constant 0 : index
    %61 = vector.load %arg6[%c0_18, %c0_19] : memref<1x128xf32, #tpu.memory_space<vmem>>, vector<1x128xf32>
    %62 = vector.broadcast %61 : vector<1x128xf32> to vector<256x128xf32>
    %63 = arith.addf %60, %62 : vector<256x128xf32>
    %cst_20 = arith.constant 0.000000e+00 : f32
    %64 = vector.broadcast %cst_20 : f32 to vector<256x128xf32>
    %65 = arith.cmpf oge, %63, %64 : vector<256x128xf32>
    %cst_21 = arith.constant 2.000000e-01 : f32
    %66 = vector.broadcast %cst_21 : f32 to vector<256x128xf32>
    %67 = arith.mulf %66, %63 : vector<256x128xf32>
    %68 = arith.select %65, %63, %67 : vector<256x128xi1>, vector<256x128xf32>
    %c0_22 = arith.constant 0 : index
    %c0_23 = arith.constant 0 : index
    %69 = vector.load %arg7[%c0_22, %c0_23] : memref<128x128xf32, #tpu.memory_space<vmem>>, vector<128x128xf32>
    %cst_24 = arith.constant dense<0.000000e+00> : vector<256x128xf32>
    %70 = tpu.matmul %68, %69, %cst_24 {dimension_numbers = #tpu.dot_dimension_numbers<[1], [0], [0], [1], [0, 0, 1, 1], [], []>} : vector<256x128xf32>, vector<128x128xf32>, vector<256x128xf32> -> vector<256x128xf32>
    %c0_25 = arith.constant 0 : index
    %c0_26 = arith.constant 0 : index
    %71 = vector.load %arg8[%c0_25, %c0_26] : memref<8x128xf32, #tpu.memory_space<vmem>>, vector<8x128xf32>
    %72 = vector.extract_strided_slice %71 {offsets = [0, 0], sizes = [1, 128], strides = [1, 1]} : vector<8x128xf32> to vector<1x128xf32>
    %73 = vector.extract_strided_slice %71 {offsets = [1, 0], sizes = [1, 128], strides = [1, 1]} : vector<8x128xf32> to vector<1x128xf32>
    %74 = vector.extract_strided_slice %71 {offsets = [2, 0], sizes = [1, 128], strides = [1, 1]} : vector<8x128xf32> to vector<1x128xf32>
    %75 = vector.extract_strided_slice %71 {offsets = [3, 0], sizes = [1, 128], strides = [1, 1]} : vector<8x128xf32> to vector<1x128xf32>
    %76 = vector.extract_strided_slice %71 {offsets = [4, 0], sizes = [1, 128], strides = [1, 1]} : vector<8x128xf32> to vector<1x128xf32>
    %77 = arith.mulf %68, %68 : vector<256x128xf32>
    %cst_27 = arith.constant dense<0.000000e+00> : vector<256xf32>
    %78 = vector.multi_reduction <add>, %77, %cst_27 [1] : vector<256x128xf32> to vector<256xf32>
    %79 = vector.shape_cast %78 : vector<256xf32> to vector<256x1xf32>
    %80 = math.sqrt %79 : vector<256x1xf32>
    %81 = vector.broadcast %79 : vector<256x1xf32> to vector<256x128xf32>
    %82 = vector.broadcast %72 : vector<1x128xf32> to vector<256x128xf32>
    %83 = arith.addf %81, %82 : vector<256x128xf32>
    %cst_28 = arith.constant 2.000000e+00 : f32
    %84 = vector.broadcast %cst_28 : f32 to vector<256x128xf32>
    %85 = arith.mulf %84, %70 : vector<256x128xf32>
    %86 = arith.subf %83, %85 : vector<256x128xf32>
    %cst_29 = arith.constant 0.000000e+00 : f32
    %87 = vector.broadcast %cst_29 : f32 to vector<256x128xf32>
    %88 = arith.maximumf %86, %87 : vector<256x128xf32>
    %89 = math.sqrt %88 : vector<256x128xf32>
    %cst_30 = arith.constant 0.000000e+00 : f32
    %90 = vector.broadcast %cst_30 : f32 to vector<256x128xf32>
    %91 = arith.subf %90, %89 : vector<256x128xf32>
    %92 = vector.broadcast %74 : vector<1x128xf32> to vector<256x128xf32>
    %93 = arith.addf %91, %92 : vector<256x128xf32>
    %94 = vector.broadcast %80 : vector<256x1xf32> to vector<256x128xf32>
    %95 = vector.broadcast %73 : vector<1x128xf32> to vector<256x128xf32>
    %96 = arith.mulf %94, %95 : vector<256x128xf32>
    %cst_31 = arith.constant 9.99999997E-7 : f32
    %97 = vector.broadcast %cst_31 : f32 to vector<256x128xf32>
    %98 = arith.maximumf %96, %97 : vector<256x128xf32>
    %99 = arith.divf %70, %98 : vector<256x128xf32>
    %100 = vector.broadcast %74 : vector<1x128xf32> to vector<256x128xf32>
    %101 = arith.addf %99, %100 : vector<256x128xf32>
    %cst_32 = arith.constant dense<0xFF800000> : vector<256xf32>
    %102 = vector.multi_reduction <maximumf>, %93, %cst_32 [1] : vector<256x128xf32> to vector<256xf32>
    %103 = vector.shape_cast %102 : vector<256xf32> to vector<256x1xf32>
    %104 = vector.broadcast %103 : vector<256x1xf32> to vector<256x128xf32>
    %105 = arith.subf %93, %104 : vector<256x128xf32>
    %106 = math.exp %105 : vector<256x128xf32>
    %cst_33 = arith.constant dense<0.000000e+00> : vector<256xf32>
    %107 = vector.multi_reduction <add>, %106, %cst_33 [1] : vector<256x128xf32> to vector<256xf32>
    %108 = vector.shape_cast %107 : vector<256xf32> to vector<256x1xf32>
    %109 = math.log %108 : vector<256x1xf32>
    %110 = vector.broadcast %109 : vector<256x1xf32> to vector<256x128xf32>
    %111 = arith.subf %105, %110 : vector<256x128xf32>
    %112 = math.exp %101 : vector<256x128xf32>
    %cst_34 = arith.constant dense<0.000000e+00> : vector<256xf32>
    %113 = vector.multi_reduction <add>, %112, %cst_34 [1] : vector<256x128xf32> to vector<256xf32>
    %114 = vector.shape_cast %113 : vector<256xf32> to vector<256x1xf32>
    %115 = math.log %114 : vector<256x1xf32>
    %116 = vector.broadcast %115 : vector<256x1xf32> to vector<256x128xf32>
    %117 = arith.subf %101, %116 : vector<256x128xf32>
    %118 = arith.addf %111, %117 : vector<256x128xf32>
    %cst_35 = arith.constant 5.000000e-01 : f32
    %119 = vector.broadcast %cst_35 : f32 to vector<256x128xf32>
    %120 = arith.mulf %119, %118 : vector<256x128xf32>
    %121 = vector.broadcast %75 : vector<1x128xf32> to vector<256x128xf32>
    %122 = arith.mulf %70, %121 : vector<256x128xf32>
    %123 = vector.broadcast %76 : vector<1x128xf32> to vector<256x128xf32>
    %124 = arith.mulf %120, %123 : vector<256x128xf32>
    %125 = arith.addf %122, %124 : vector<256x128xf32>
    %126 = arith.addf %125, %68 : vector<256x128xf32>
    %c0_36 = arith.constant 0 : index
    %c0_37 = arith.constant 0 : index
    %127 = vector.load %arg9[%c0_36, %c0_37] : memref<256x128xf32, #tpu.memory_space<vmem>>, vector<256x128xf32>
    tpu.vector_store %arg9[%c0_36, %c0_37], %126 {strides = array<i32>} : memref<256x128xf32, #tpu.memory_space<vmem>>, vector<256x128xf32>,
    return
  }
  func.func @transform_0(%arg0: i32) -> (i32, i32) {
    %c0_i32 = arith.constant 0 : i32
    %c0_i32_0 = arith.constant 0 : i32
    return %arg0, %c0_i32 : i32, i32
  }
  func.func @transform_1(%arg0: i32) -> (i32, i32) {
    %c0_i32 = arith.constant 0 : i32
    %c0_i32_0 = arith.constant 0 : i32
    %c0_i32_1 = arith.constant 0 : i32
    return %c0_i32, %c0_i32_0 : i32, i32
  }
  func.func @transform_2(%arg0: i32) -> (i32, i32) {
    %c0_i32 = arith.constant 0 : i32
    %c0_i32_0 = arith.constant 0 : i32
    %c0_i32_1 = arith.constant 0 : i32
    return %c0_i32, %c0_i32_0 : i32, i32
  }
  func.func @transform_3(%arg0: i32) -> (i32, i32) {
    %c0_i32 = arith.constant 0 : i32
    %c0_i32_0 = arith.constant 0 : i32
    %c0_i32_1 = arith.constant 0 : i32
    return %c0_i32, %c0_i32_0 : i32, i32
  }
  func.func @transform_4(%arg0: i32) -> (i32, i32) {
    %c0_i32 = arith.constant 0 : i32
    %c0_i32_0 = arith.constant 0 : i32
    %c0_i32_1 = arith.constant 0 : i32
    return %c0_i32, %c0_i32_0 : i32, i32
  }
  func.func @transform_5(%arg0: i32) -> (i32, i32) {
    %c0_i32 = arith.constant 0 : i32
    %c0_i32_0 = arith.constant 0 : i32
    %c0_i32_1 = arith.constant 0 : i32
    return %c0_i32, %c0_i32_0 : i32, i32
  }
  func.func @transform_6(%arg0: i32) -> (i32, i32) {
    %c0_i32 = arith.constant 0 : i32
    %c0_i32_0 = arith.constant 0 : i32
    %c0_i32_1 = arith.constant 0 : i32
    return %c0_i32, %c0_i32_0 : i32, i32
  }
  func.func @transform_7(%arg0: i32) -> (i32, i32) {
    %c0_i32 = arith.constant 0 : i32
    %c0_i32_0 = arith.constant 0 : i32
    %c0_i32_1 = arith.constant 0 : i32
    return %c0_i32, %c0_i32_0 : i32, i32
  }
  func.func @transform_8(%arg0: i32) -> (i32, i32) {
    %c0_i32 = arith.constant 0 : i32
    %c0_i32_0 = arith.constant 0 : i32
    return %arg0, %c0_i32 : i32, i32
  }
}

</mosaic_0001>

<llo_original>
// kernel: smn_forward.1
$region0: #{smn_forward.1}
  #allocation0 [shape = 'u32[]', space=smem, size = 0x4, offset = 0x4, fixed_abs, tag = 'smem constant byte address 0x4 - core index']
  #allocation1 [shape = 'u32[144,128]{1,0:T(1,128)}', space=vmem, size = 0x12000, scoped, tag = 'internal scratch']
  %s0 = inlined_call_operand.vmem [shape: bf16[1536,16], index: 0, kind: input, shape index: {}]
  %s1 = inlined_call_operand.vmem [shape: bf16[16,64], index: 1, kind: input, shape index: {}]
  %s2 = inlined_call_operand.vmem [shape: f32[1,64], index: 2, kind: input, shape index: {}]
  %s3 = inlined_call_operand.vmem [shape: f32[3,64], index: 3, kind: input, shape index: {}]
  %s4 = inlined_call_operand.vmem [shape: f32[64,128], index: 4, kind: input, shape index: {}]
  %s5 = inlined_call_operand.vmem [shape: f32[1,128], index: 5, kind: input, shape index: {}]
  %s6 = inlined_call_operand.vmem [shape: f32[128,128], index: 6, kind: input, shape index: {}]
  %s7 = inlined_call_operand.vmem [shape: f32[8,128], index: 7, kind: input, shape index: {}]
  %s8 = inlined_call_operand.vmem [shape: f32[512,128], index: 8, kind: output, shape index: {}]
  %s9 = sld [smem:[#allocation0]]
  $region65: #{smn_forward.1} parent=0
    _
  %s11 = ssub.s32 1, %s9
  %s12 = scalar_select 0, %s11, %s9
  loop: start=0, step=1, limit=4
  $region2: #{smn_forward.1} parent=0 // loop_pre_header
    _
  $region3: #{smn_forward.1} parent=0 // loop_header
    %s14 = sphi 0, %s18
    %p15 = scmp.ge.s32.totalorder %s14, 4
    %s24 = sphi 0, %s26
    %s27 = sphi 0, %s24
    %s28 = sphi 0, %s27
    %s44 = sphi 0, %s28
    %s48 = sphi 0, %s48
    %s50 = sphi 0, %s48
    %s51 = sphi 0, %s50
    %s65 = sphi 0, %s51
    %s69 = sphi 0, %s69
    %s71 = sphi 0, %s69
    %s72 = sphi 0, %s71
    %s86 = sphi 0, %s72
    %s90 = sphi 0, %s90
    %s92 = sphi 0, %s90
    %s93 = sphi 0, %s92
    %s107 = sphi 0, %s93
    %s111 = sphi 0, %s111
    %s113 = sphi 0, %s111
    %s114 = sphi 0, %s113
    %s128 = sphi 0, %s114
    %s132 = sphi 0, %s132
    %s134 = sphi 0, %s132
    %s135 = sphi 0, %s134
    %s149 = sphi 0, %s135
    %s153 = sphi 0, %s153
    %s155 = sphi 0, %s153
    %s156 = sphi 0, %s155
    %s170 = sphi 0, %s156
    %s174 = sphi 0, %s174
    %s176 = sphi 0, %s174
    %s177 = sphi 0, %s176
    %s191 = sphi 0, %s177
    %s197 = sphi 0, %s199
    %s200 = sphi 0, %s197
    %s201 = sphi 0, %s200
    %s217 = sphi 0, %s201
  $region4: #{smn_forward.1} parent=0 // loop_header_branch
    %17 = sbr.rel (%p15) target = $region8
  $region5: #{smn_forward.1} parent=0 // loop_body
    %s19 = ssub.s32 %s14, 1
    %s20 = ssub.s32 %s14, 2
    %s21 = sadd.s32 %s14, 1
    %s22 = ssub.s32 %s14, %s21
    %p23 = scmp.eq.s32.totalorder %s22, 0
    %s25 = sadd.s32 %s24, 1
    %s26 = scalar_select %p23, %s24, %s25
    %p29 = pneg %p23
    %p30 = scmp.eq.s32.totalorder %s14, 1
    %p31 = por %p29, %p30
    %p32 = scmp.ne.s32.totalorder %s24, %s27
    %p33 = scmp.eq.s32.totalorder %s14, 0
    %p34 = por %p32, %p33
    %p35 = scmp.ne.s32.totalorder %s24, %s27
    %p36 = scmp.eq.s32.totalorder %s19, 1
    %p37 = por %p35, %p36
    %p38 = scmp.ne.s32.totalorder %s27, %s28
    %p39 = scmp.eq.s32.totalorder %s19, 0
    %p40 = por %p38, %p39
    %p41 = scmp.ne.s32.totalorder %s27, %s28
    %p42 = scmp.eq.s32.totalorder %s20, 1
    %p43 = por %p41, %p42
    %p45 = scmp.ne.s32.totalorder %s28, %s44
    %p46 = scmp.eq.s32.totalorder %s20, 0
    %p47 = por %p45, %p46
    %s49 = sadd.s32 %s48, 1
    %p52 = scmp.eq.s32.totalorder %s14, 1
    %p53 = scmp.ne.s32.totalorder %s48, %s50
    %p54 = scmp.eq.s32.totalorder %s14, 0
    %p55 = por %p53, %p54
    %p56 = scmp.ne.s32.totalorder %s48, %s50
    %p57 = scmp.eq.s32.totalorder %s19, 1
    %p58 = por %p56, %p57
    %p59 = scmp.ne.s32.totalorder %s50, %s51
    %p60 = scmp.eq.s32.totalorder %s19, 0
    %p61 = por %p59, %p60
    %p62 = scmp.ne.s32.totalorder %s50, %s51
    %p63 = scmp.eq.s32.totalorder %s20, 1
    %p64 = por %p62, %p63
    %p66 = scmp.ne.s32.totalorder %s51, %s65
    %p67 = scmp.eq.s32.totalorder %s20, 0
    %p68 = por %p66, %p67
    %s70 = sadd.s32 %s69, 1
    %p73 = scmp.eq.s32.totalorder %s14, 1
    %p74 = scmp.ne.s32.totalorder %s69, %s71
    %p75 = scmp.eq.s32.totalorder %s14, 0
    %p76 = por %p74, %p75
    %p77 = scmp.ne.s32.totalorder %s69, %s71
    %p78 = scmp.eq.s32.totalorder %s19, 1
    %p79 = por %p77, %p78
    %p80 = scmp.ne.s32.totalorder %s71, %s72
    %p81 = scmp.eq.s32.totalorder %s19, 0
    %p82 = por %p80, %p81
    %p83 = scmp.ne.s32.totalorder %s71, %s72
    %p84 = scmp.eq.s32.totalorder %s20, 1
    %p85 = por %p83, %p84
    %p87 = scmp.ne.s32.totalorder %s72, %s86
    %p88 = scmp.eq.s32.totalorder %s20, 0
    %p89 = por %p87, %p88
    %s91 = sadd.s32 %s90, 1
    %p94 = scmp.eq.s32.totalorder %s14, 1
    %p95 = scmp.ne.s32.totalorder %s90, %s92
    %p96 = scmp.eq.s32.totalorder %s14, 0
    %p97 = por %p95, %p96
    %p98 = scmp.ne.s32.totalorder %s90, %s92
    %p99 = scmp.eq.s32.totalorder %s19, 1
    %p100 = por %p98, %p99
    %p101 = scmp.ne.s32.totalorder %s92, %s93
    %p102 = scmp.eq.s32.totalorder %s19, 0
    %p103 = por %p101, %p102
    %p104 = scmp.ne.s32.totalorder %s92, %s93
    %p105 = scmp.eq.s32.totalorder %s20, 1
    %p106 = por %p104, %p105
    %p108 = scmp.ne.s32.totalorder %s93, %s107
    %p109 = scmp.eq.s32.totalorder %s20, 0
    %p110 = por %p108, %p109
    %s112 = sadd.s32 %s111, 1
    %p115 = scmp.eq.s32.totalorder %s14, 1
    %p116 = scmp.ne.s32.totalorder %s111, %s113
    %p117 = scmp.eq.s32.totalorder %s14, 0
    %p118 = por %p116, %p117
    %p119 = scmp.ne.s32.totalorder %s111, %s113
    %p120 = scmp.eq.s32.totalorder %s19, 1
    %p121 = por %p119, %p120
    %p122 = scmp.ne.s32.totalorder %s113, %s114
    %p123 = scmp.eq.s32.totalorder %s19, 0
    %p124 = por %p122, %p123
    %p125 = scmp.ne.s32.totalorder %s113, %s114
    %p126 = scmp.eq.s32.totalorder %s20, 1
    %p127 = por %p125, %p126
    %p129 = scmp.ne.s32.totalorder %s114, %s128
    %p130 = scmp.eq.s32.totalorder %s20, 0
    %p131 = por %p129, %p130
    %s133 = sadd.s32 %s132, 1
    %p136 = scmp.eq.s32.totalorder %s14, 1
    %p137 = scmp.ne.s32.totalorder %s132, %s134
    %p138 = scmp.eq.s32.totalorder %s14, 0
    %p139 = por %p137, %p138
    %p140 = scmp.ne.s32.totalorder %s132, %s134
    %p141 = scmp.eq.s32.totalorder %s19, 1
    %p142 = por %p140, %p141
    %p143 = scmp.ne.s32.totalorder %s134, %s135
    %p144 = scmp.eq.s32.totalorder %s19, 0
    %p145 = por %p143, %p144
    %p146 = scmp.ne.s32.totalorder %s134, %s135
    %p147 = scmp.eq.s32.totalorder %s20, 1
    %p148 = por %p146, %p147
    %p150 = scmp.ne.s32.totalorder %s135, %s149
    %p151 = scmp.eq.s32.totalorder %s20, 0
    %p152 = por %p150, %p151
    %s154 = sadd.s32 %s153, 1
    %p157 = scmp.eq.s32.totalorder %s14, 1
    %p158 = scmp.ne.s32.totalorder %s153, %s155
    %p159 = scmp.eq.s32.totalorder %s14, 0
    %p160 = por %p158, %p159
    %p161 = scmp.ne.s32.totalorder %s153, %s155
    %p162 = scmp.eq.s32.totalorder %s19, 1
    %p163 = por %p161, %p162
    %p164 = scmp.ne.s32.totalorder %s155, %s156
    %p165 = scmp.eq.s32.totalorder %s19, 0
    %p166 = por %p164, %p165
    %p167 = scmp.ne.s32.totalorder %s155, %s156
    %p168 = scmp.eq.s32.totalorder %s20, 1
    %p169 = por %p167, %p168
    %p171 = scmp.ne.s32.totalorder %s156, %s170
    %p172 = scmp.eq.s32.totalorder %s20, 0
    %p173 = por %p171, %p172
    %s175 = sadd.s32 %s174, 1
    %p178 = scmp.eq.s32.totalorder %s14, 1
    %p179 = scmp.ne.s32.totalorder %s174, %s176
    %p180 = scmp.eq.s32.totalorder %s14, 0
    %p181 = por %p179, %p180
    %p182 = scmp.ne.s32.totalorder %s174, %s176
    %p183 = scmp.eq.s32.totalorder %s19, 1
    %p184 = por %p182, %p183
    %p185 = scmp.ne.s32.totalorder %s176, %s177
    %p186 = scmp.eq.s32.totalorder %s19, 0
    %p187 = por %p185, %p186
    %p188 = scmp.ne.s32.totalorder %s176, %s177
    %p189 = scmp.eq.s32.totalorder %s20, 1
    %p190 = por %p188, %p189
    %p192 = scmp.ne.s32.totalorder %s177, %s191
    %p193 = scmp.eq.s32.totalorder %s20, 0
    %p194 = por %p192, %p193
    %s195 = ssub.s32 %s14, %s21
    %p196 = scmp.eq.s32.totalorder %s195, 0
    %s198 = sadd.s32 %s197, 1
    %s199 = scalar_select %p196, %s197, %s198
    %p202 = pneg %p196
    %p203 = scmp.eq.s32.totalorder %s14, 1
    %p204 = por %p202, %p203
    %p205 = scmp.ne.s32.totalorder %s197, %s200
    %p206 = scmp.eq.s32.totalorder %s14, 0
    %p207 = por %p205, %p206
    %p208 = scmp.ne.s32.totalorder %s197, %s200
    %p209 = scmp.eq.s32.totalorder %s19, 1
    %p210 = por %p208, %p209
    %p211 = scmp.ne.s32.totalorder %s200, %s201
    %p212 = scmp.eq.s32.totalorder %s19, 0
    %p213 = por %p211, %p212
    %p214 = scmp.ne.s32.totalorder %s200, %s201
    %p215 = scmp.eq.s32.totalorder %s20, 1
    %p216 = por %p214, %p215
    %p218 = scmp.ne.s32.totalorder %s201, %s217
    %p219 = scmp.eq.s32.totalorder %s20, 0
    %p220 = por %p218, %p219
    %p221 = scmp.le.s32.totalorder 1, %s14
    %p222 = scmp.lt.s32.totalorder %s14, 3
    %p223 = pnand %p221, %p222
    %p224 = pneg %p223
    // Predicated region
    $region9: #{smn_forward.1} parent=5 // pred_check
      _
    $region10: #{smn_forward.1} parent=5 // pred_check_branch
      %226 = sbr.rel (%p223) target = $region12
    $region11: #{smn_forward.1} parent=5 // pred_region
      %s227 = ssub.s32 %s14, 1
      // Predicated region
      $region13: #{smn_forward.1} parent=11 // pred_check
        %p228 = pneg %p61
      $region14: #{smn_forward.1} parent=11 // pred_check_branch
        %230 = sbr.rel (%p228) target = $region16
      $region15: #{smn_forward.1} parent=11 // pred_region
        _
      $region16: #{smn_forward.1} parent=11 // pred_fallthru
        _
      // Predicated region
      $region17: #{smn_forward.1} parent=11 // pred_check
        %p231 = pneg %p82
      $region18: #{smn_forward.1} parent=11 // pred_check_branch
        %233 = sbr.rel (%p231) target = $region20
      $region19: #{smn_forward.1} parent=11 // pred_region
        _
      $region20: #{smn_forward.1} parent=11 // pred_fallthru
        _
      // Predicated region
      $region21: #{smn_forward.1} parent=11 // pred_check
        %p234 = pneg %p103
      $region22: #{smn_forward.1} parent=11 // pred_check_branch
        %236 = sbr.rel (%p234) target = $region24
      $region23: #{smn_forward.1} parent=11 // pred_region
        _
      $region24: #{smn_forward.1} parent=11 // pred_fallthru
        _
      // Predicated region
      $region25: #{smn_forward.1} parent=11 // pred_check
        %p237 = pneg %p124
      $region26: #{smn_forward.1} parent=11 // pred_check_branch
        %239 = sbr.rel (%p237) target = $region28
      $region27: #{smn_forward.1} parent=11 // pred_region
        _
      $region28: #{smn_forward.1} parent=11 // pred_fallthru
        _
      // Predicated region
      $region29: #{smn_forward.1} parent=11 // pred_check
        %p240 = pneg %p145
      $region30: #{smn_forward.1} parent=11 // pred_check_branch
        %242 = sbr.rel (%p240) target = $region32
      $region31: #{smn_forward.1} parent=11 // pred_region
        _
      $region32: #{smn_forward.1} parent=11 // pred_fallthru
        _
      // Predicated region
      $region33: #{smn_forward.1} parent=11 // pred_check
        %p243 = pneg %p166
      $region34: #{smn_forward.1} parent=11 // pred_check_branch
        %245 = sbr.rel (%p243) target = $region36
      $region35: #{smn_forward.1} parent=11 // pred_region
        _
      $region36: #{smn_forward.1} parent=11 // pred_fallthru
        _
      // Predicated region
      $region37: #{smn_forward.1} parent=11 // pred_check
        %p246 = pneg %p187
      $region38: #{smn_forward.1} parent=11 // pred_check_branch
        %248 = sbr.rel (%p246) target = $region40
      $region39: #{smn_forward.1} parent=11 // pred_region
        _
      $region40: #{smn_forward.1} parent=11 // pred_fallthru
        _
    $region12: #{smn_forward.1} parent=5 // pred_fallthru
      _
    %p249 = scmp.lt.s32.totalorder %s14, 2
    // Predicated region
    $region41: #{smn_forward.1} parent=5 // pred_check
      %p250 = pneg %p249
    $region42: #{smn_forward.1} parent=5 // pred_check_branch
      %252 = sbr.rel (%p250) target = $region44
    $region43: #{smn_forward.1} parent=5 // pred_region
      // Predicated region
      $region45: #{smn_forward.1} parent=43 // pred_check
        %p253 = pneg %p34
      $region46: #{smn_forward.1} parent=43 // pred_check_branch
        %255 = sbr.rel (%p253) target = $region48
      $region47: #{smn_forward.1} parent=43 // pred_region
        %s256 = smul.u32 96, %s14
        %p257 = scmp.lt.s32.totalorder %s256, 191
        %s258 = scalar_select %p257, %s256, 191
        %s259 = smul.addr %s258, 4
        %s260 = scalar_lea.vmem %s0, %s259
        %s261 = smul.u32 96, %s14
      $region48: #{smn_forward.1} parent=43 // pred_fallthru
        _
    $region44: #{smn_forward.1} parent=5 // pred_fallthru
      _
    %p262 = scmp.le.s32.totalorder 1, %s14
    %p263 = scmp.lt.s32.totalorder %s14, 3
    %p264 = pnand %p262, %p263
    %p265 = pneg %p264
    // Predicated region
    $region49: #{smn_forward.1} parent=5 // pred_check
      _
    $region50: #{smn_forward.1} parent=5 // pred_check_branch
      %267 = sbr.rel (%p264) target = $region52
    $region51: #{smn_forward.1} parent=5 // pred_region
      %s268 = ssub.s32 %s14, 1
      %s269 = smul.u32 96, %s19
      %p270 = scmp.lt.s32.totalorder %s269, 191
      %s271 = scalar_select %p270, %s269, 191
      %s272 = smul.addr %s271, 4
      %s273 = scalar_lea.vmem %s0, %s272
      %p274 = pneg %p40
      %p275 = pneg %p37
      %p276 = pneg %p61
      %p277 = pneg %p58
      %p278 = pneg %p82
      %p279 = pneg %p79
      %p280 = pneg %p103
      %p281 = pneg %p100
      %p282 = pneg %p124
      %p283 = pneg %p121
      %p284 = pneg %p145
      %p285 = pneg %p142
      %p286 = pneg %p166
      %p287 = pneg %p163
      %p288 = pneg %p187
      %p289 = pneg %p184
      %p290 = pneg %p213
      %p291 = pneg %p210
      %s292 = smul.u32 32, %s19
      %p293 = scmp.lt.s32.totalorder %s292, 63
      %s294 = scalar_select %p293, %s292, 63
      %s295 = smul.addr %s294, 8
      %s296 = scalar_lea.vmem %s8, %s295
      %s297 = smul.u32 96, %s19
      %p298 = scmp.lt.s32.totalorder %s297, 191
      %s299 = scalar_select %p298, %s297, 191
      %s300 = smul.addr %s299, 4
      %s301 = scalar_lea.vmem %s0, %s300
      %s302 = smul.u32 96, %s19
      %s303 = smul.u32 32, %s19
      %p304 = scmp.lt.s32.totalorder %s303, 63
      %s305 = scalar_select %p304, %s303, 63
      %s306 = smul.addr %s305, 8
      %s307 = scalar_lea.vmem %s8, %s306
      %s308 = smul.u32 32, %s19
      %v310 = vld [vmem:[%s301] sm:$0xf]
      %v311 = vld [vmem:[%s301 + $0x4] sm:$0xf]
      %v312 = vld [vmem:[%s301 + $0x8] sm:$0xf]
      %v313 = vld [vmem:[%s301 + $0xc] sm:$0xf]
      %v314 = vld [vmem:[%s301 + $0x10] sm:$0xf]
      %v315 = vld [vmem:[%s301 + $0x14] sm:$0xf]
      %v316 = vld [vmem:[%s301 + $0x18] sm:$0xf]
      %v317 = vld [vmem:[%s301 + $0x1c] sm:$0xf]
      %v318 = vld [vmem:[%s301 + $0x20] sm:$0xf]
      %v319 = vld [vmem:[%s301 + $0x24] sm:$0xf]
      %v320 = vld [vmem:[%s301 + $0x28] sm:$0xf]
      %v321 = vld [vmem:[%s301 + $0x2c] sm:$0xf]
      %v322 = vld [vmem:[%s301 + $0x30] sm:$0xf]
      %v323 = vld [vmem:[%s301 + $0x34] sm:$0xf]
      %v324 = vld [vmem:[%s301 + $0x38] sm:$0xf]
      %v325 = vld [vmem:[%s301 + $0x3c] sm:$0xf]
      %v326 = vld [vmem:[%s301 + $0x40] sm:$0xf]
      %v327 = vld [vmem:[%s301 + $0x44] sm:$0xf]
      %v328 = vld [vmem:[%s301 + $0x48] sm:$0xf]
      %v329 = vld [vmem:[%s301 + $0x4c] sm:$0xf]
      %v330 = vld [vmem:[%s301 + $0x50] sm:$0xf]
      %v331 = vld [vmem:[%s301 + $0x54] sm:$0xf]
      %v332 = vld [vmem:[%s301 + $0x58] sm:$0xf]
      %v333 = vld [vmem:[%s301 + $0x5c] sm:$0xf]
      %v334 = vld [vmem:[%s301 + $0x60] sm:$0xf]
      %v335 = vld [vmem:[%s301 + $0x64] sm:$0xf]
      %v336 = vld [vmem:[%s301 + $0x68] sm:$0xf]
      %v337 = vld [vmem:[%s301 + $0x6c] sm:$0xf]
      %v338 = vld [vmem:[%s301 + $0x70] sm:$0xf]
      %v339 = vld [vmem:[%s301 + $0x74] sm:$0xf]
      %v340 = vld [vmem:[%s301 + $0x78] sm:$0xf]
      %v341 = vld [vmem:[%s301 + $0x7c] sm:$0xf]
      %v342 = vld [vmem:[%s301 + $0x80] sm:$0xf]
      %v343 = vld [vmem:[%s301 + $0x84] sm:$0xf]
      %v344 = vld [vmem:[%s301 + $0x88] sm:$0xf]
      %v345 = vld [vmem:[%s301 + $0x8c] sm:$0xf]
      %v346 = vld [vmem:[%s301 + $0x90] sm:$0xf]
      %v347 = vld [vmem:[%s301 + $0x94] sm:$0xf]
      %v348 = vld [vmem:[%s301 + $0x98] sm:$0xf]
      %v349 = vld [vmem:[%s301 + $0x9c] sm:$0xf]
      %v350 = vld [vmem:[%s301 + $0xa0] sm:$0xf]
      %v351 = vld [vmem:[%s301 + $0xa4] sm:$0xf]
      %v352 = vld [vmem:[%s301 + $0xa8] sm:$0xf]
      %v353 = vld [vmem:[%s301 + $0xac] sm:$0xf]
      %v354 = vld [vmem:[%s301 + $0xb0] sm:$0xf]
      %v355 = vld [vmem:[%s301 + $0xb4] sm:$0xf]
      %v356 = vld [vmem:[%s301 + $0xb8] sm:$0xf]
      %v357 = vld [vmem:[%s301 + $0xbc] sm:$0xf]
      %v358 = vld [vmem:[%s301 + $0xc0] sm:$0xf]
      %v359 = vld [vmem:[%s301 + $0xc4] sm:$0xf]
      %v360 = vld [vmem:[%s301 + $0xc8] sm:$0xf]
      %v361 = vld [vmem:[%s301 + $0xcc] sm:$0xf]
      %v362 = vld [vmem:[%s301 + $0xd0] sm:$0xf]
      %v363 = vld [vmem:[%s301 + $0xd4] sm:$0xf]
      %v364 = vld [vmem:[%s301 + $0xd8] sm:$0xf]
      %v365 = vld [vmem:[%s301 + $0xdc] sm:$0xf]
      %v366 = vld [vmem:[%s301 + $0xe0] sm:$0xf]
      %v367 = vld [vmem:[%s301 + $0xe4] sm:$0xf]
      %v368 = vld [vmem:[%s301 + $0xe8] sm:$0xf]
      %v369 = vld [vmem:[%s301 + $0xec] sm:$0xf]
      %v370 = vld [vmem:[%s301 + $0xf0] sm:$0xf]
      %v371 = vld [vmem:[%s301 + $0xf4] sm:$0xf]
      %v372 = vld [vmem:[%s301 + $0xf8] sm:$0xf]
      %v373 = vld [vmem:[%s301 + $0xfc] sm:$0xf]
      %v374 = vld [vmem:[%s301 + $0x100] sm:$0xf]
      %v375 = vld [vmem:[%s301 + $0x104] sm:$0xf]
      %v376 = vld [vmem:[%s301 + $0x108] sm:$0xf]
      %v377 = vld [vmem:[%s301 + $0x10c] sm:$0xf]
      %v378 = vld [vmem:[%s301 + $0x110] sm:$0xf]
      %v379 = vld [vmem:[%s301 + $0x114] sm:$0xf]
      %v380 = vld [vmem:[%s301 + $0x118] sm:$0xf]
      %v381 = vld [vmem:[%s301 + $0x11c] sm:$0xf]
      %v382 = vld [vmem:[%s301 + $0x120] sm:$0xf]
      %v383 = vld [vmem:[%s301 + $0x124] sm:$0xf]
      %v384 = vld [vmem:[%s301 + $0x128] sm:$0xf]
      %v385 = vld [vmem:[%s301 + $0x12c] sm:$0xf]
      %v386 = vld [vmem:[%s301 + $0x130] sm:$0xf]
      %v387 = vld [vmem:[%s301 + $0x134] sm:$0xf]
      %v388 = vld [vmem:[%s301 + $0x138] sm:$0xf]
      %v389 = vld [vmem:[%s301 + $0x13c] sm:$0xf]
      %v390 = vld [vmem:[%s301 + $0x140] sm:$0xf]
      %v391 = vld [vmem:[%s301 + $0x144] sm:$0xf]
      %v392 = vld [vmem:[%s301 + $0x148] sm:$0xf]
      %v393 = vld [vmem:[%s301 + $0x14c] sm:$0xf]
      %v394 = vld [vmem:[%s301 + $0x150] sm:$0xf]
      %v395 = vld [vmem:[%s301 + $0x154] sm:$0xf]
      %v396 = vld [vmem:[%s301 + $0x158] sm:$0xf]
      %v397 = vld [vmem:[%s301 + $0x15c] sm:$0xf]
      %v398 = vld [vmem:[%s301 + $0x160] sm:$0xf]
      %v399 = vld [vmem:[%s301 + $0x164] sm:$0xf]
      %v400 = vld [vmem:[%s301 + $0x168] sm:$0xf]
      %v401 = vld [vmem:[%s301 + $0x16c] sm:$0xf]
      %v402 = vld [vmem:[%s301 + $0x170] sm:$0xf]
      %v403 = vld [vmem:[%s301 + $0x174] sm:$0xf]
      %v404 = vld [vmem:[%s301 + $0x178] sm:$0xf]
      %v405 = vld [vmem:[%s301 + $0x17c] sm:$0xf]
      %v406 = vld [vmem:[%s1] sm:$0xf]
      %v407 = vld [vmem:[%s1 + $0x4] sm:$0xf]
      %v408 = vld [vmem:[%s2] sm:$0x1]
      %v410 = vlaneseq
      %v411 = vshrl.u32 %v410, 7
      %v412 = vsub.s32 0, %v411
      %v413 = vrot.slane %v408, %v412
      %v511 = vunpack.c.l.b16 %v310
      %v512 = vunpack.c.l.b16 %v311
      %v513 = vunpack.c.l.b16 %v312
      %v514 = vunpack.c.l.b16 %v313
      %v515 = vunpack.c.l.b16 %v314
      %v516 = vunpack.c.l.b16 %v315
      %v517 = vunpack.c.l.b16 %v316
      %v518 = vunpack.c.l.b16 %v317
      %v519 = vunpack.c.l.b16 %v318
      %v520 = vunpack.c.l.b16 %v319
      %v521 = vunpack.c.l.b16 %v320
      %v522 = vunpack.c.l.b16 %v321
      %v523 = vunpack.c.l.b16 %v322
      %v524 = vunpack.c.l.b16 %v323
      %v525 = vunpack.c.l.b16 %v324
      %v526 = vunpack.c.l.b16 %v325
      %v527 = vunpack.c.l.b16 %v326
      %v528 = vunpack.c.l.b16 %v327
      %v529 = vunpack.c.l.b16 %v328
      %v530 = vunpack.c.l.b16 %v329
      %v531 = vunpack.c.l.b16 %v330
      %v532 = vunpack.c.l.b16 %v331
      %v533 = vunpack.c.l.b16 %v332
      %v534 = vunpack.c.l.b16 %v333
      %v535 = vunpack.c.l.b16 %v334
      %v536 = vunpack.c.l.b16 %v335
      %v537 = vunpack.c.l.b16 %v336
      %v538 = vunpack.c.l.b16 %v337
      %v539 = vunpack.c.l.b16 %v338
      %v540 = vunpack.c.l.b16 %v339
      %v541 = vunpack.c.l.b16 %v340
      %v542 = vunpack.c.l.b16 %v341
      %v543 = vunpack.c.l.b16 %v342
      %v544 = vunpack.c.l.b16 %v343
      %v545 = vunpack.c.l.b16 %v344
      %v546 = vunpack.c.l.b16 %v345
      %v547 = vunpack.c.l.b16 %v346
      %v548 = vunpack.c.l.b16 %v347
      %v549 = vunpack.c.l.b16 %v348
      %v550 = vunpack.c.l.b16 %v349
      %v551 = vunpack.c.l.b16 %v350
      %v552 = vunpack.c.l.b16 %v351
      %v553 = vunpack.c.l.b16 %v352
      %v554 = vunpack.c.l.b16 %v353
      %v555 = vunpack.c.l.b16 %v354
      %v556 = vunpack.c.l.b16 %v355
      %v557 = vunpack.c.l.b16 %v356
      %v558 = vunpack.c.l.b16 %v357
      %v559 = vunpack.c.l.b16 %v358
      %v560 = vunpack.c.l.b16 %v359
      %v561 = vunpack.c.l.b16 %v360
      %v562 = vunpack.c.l.b16 %v361
      %v563 = vunpack.c.l.b16 %v362
      %v564 = vunpack.c.l.b16 %v363
      %v565 = vunpack.c.l.b16 %v364
      %v566 = vunpack.c.l.b16 %v365
      %v567 = vunpack.c.l.b16 %v366
      %v568 = vunpack.c.l.b16 %v367
      %v569 = vunpack.c.l.b16 %v368
      %v570 = vunpack.c.l.b16 %v369
      %v571 = vunpack.c.l.b16 %v370
      %v572 = vunpack.c.l.b16 %v371
      %v573 = vunpack.c.l.b16 %v372
      %v574 = vunpack.c.l.b16 %v373
      %v575 = vunpack.c.l.b16 %v374
      %v576 = vunpack.c.l.b16 %v375
      %v577 = vunpack.c.l.b16 %v376
      %v578 = vunpack.c.l.b16 %v377
      %v579 = vunpack.c.l.b16 %v378
      %v580 = vunpack.c.l.b16 %v379
      %v581 = vunpack.c.l.b16 %v380
      %v582 = vunpack.c.l.b16 %v381
      %v583 = vunpack.c.l.b16 %v382
      %v584 = vunpack.c.l.b16 %v383
      %v585 = vunpack.c.l.b16 %v384
      %v586 = vunpack.c.l.b16 %v385
      %v587 = vunpack.c.l.b16 %v386
      %v588 = vunpack.c.l.b16 %v387
      %v589 = vunpack.c.l.b16 %v388
      %v590 = vunpack.c.l.b16 %v389
      %v591 = vunpack.c.l.b16 %v390
      %v592 = vunpack.c.l.b16 %v391
      %v593 = vunpack.c.l.b16 %v392
      %v594 = vunpack.c.l.b16 %v393
      %v595 = vunpack.c.l.b16 %v394
      %v596 = vunpack.c.l.b16 %v395
      %v597 = vunpack.c.l.b16 %v396
      %v598 = vunpack.c.l.b16 %v397
      %v599 = vunpack.c.l.b16 %v398
      %v600 = vunpack.c.l.b16 %v399
      %v601 = vunpack.c.l.b16 %v400
      %v602 = vunpack.c.l.b16 %v401
      %v603 = vunpack.c.l.b16 %v402
      %v604 = vunpack.c.l.b16 %v403
      %v605 = vunpack.c.l.b16 %v404
      %v606 = vunpack.c.l.b16 %v405
      %v607 = vpack.c.b16 %v512, %v511
      %v608 = vpack.c.b16 %v514, %v513
      %v609 = vpack.c.b16 %v516, %v515
      %v610 = vpack.c.b16 %v518, %v517
      %v611 = vpack.c.b16 %v520, %v519
      %v612 = vpack.c.b16 %v522, %v521
      %v613 = vpack.c.b16 %v524, %v523
      %v614 = vpack.c.b16 %v526, %v525
      %v615 = vpack.c.b16 %v528, %v527
      %v616 = vpack.c.b16 %v530, %v529
      %v617 = vpack.c.b16 %v532, %v531
      %v618 = vpack.c.b16 %v534, %v533
      %v619 = vpack.c.b16 %v536, %v535
      %v620 = vpack.c.b16 %v538, %v537
      %v621 = vpack.c.b16 %v540, %v539
      %v622 = vpack.c.b16 %v542, %v541
      %v623 = vpack.c.b16 %v544, %v543
      %v624 = vpack.c.b16 %v546, %v545
      %v625 = vpack.c.b16 %v548, %v547
      %v626 = vpack.c.b16 %v550, %v549
      %v627 = vpack.c.b16 %v552, %v551
      %v628 = vpack.c.b16 %v554, %v553
      %v629 = vpack.c.b16 %v556, %v555
      %v630 = vpack.c.b16 %v558, %v557
      %v631 = vpack.c.b16 %v560, %v559
      %v632 = vpack.c.b16 %v562, %v561
      %v633 = vpack.c.b16 %v564, %v563
      %v634 = vpack.c.b16 %v566, %v565
      %v635 = vpack.c.b16 %v568, %v567
      %v636 = vpack.c.b16 %v570, %v569
      %v637 = vpack.c.b16 %v572, %v571
      %v638 = vpack.c.b16 %v574, %v573
      %v639 = vpack.c.b16 %v576, %v575
      %v640 = vpack.c.b16 %v578, %v577
      %v641 = vpack.c.b16 %v580, %v579
      %v642 = vpack.c.b16 %v582, %v581
      %v643 = vpack.c.b16 %v584, %v583
      %v644 = vpack.c.b16 %v586, %v585
      %v645 = vpack.c.b16 %v588, %v587
      %v646 = vpack.c.b16 %v590, %v589
      %v647 = vpack.c.b16 %v592, %v591
      %v648 = vpack.c.b16 %v594, %v593
      %v649 = vpack.c.b16 %v596, %v595
      %v650 = vpack.c.b16 %v598, %v597
      %v651 = vpack.c.b16 %v600, %v599
      %v652 = vpack.c.b16 %v602, %v601
      %v653 = vpack.c.b16 %v604, %v603
      %v654 = vpack.c.b16 %v606, %v605
      %v657 = vunpack.c.l.b16 %v406
      %v658 = vunpack.c.l.b16 %v407
      %v659 = vpack.c.b16 %v658, %v657
      %vm661 = vcmask 130048
      %v663 = vsel %vm661, %v607, 0
      %v666 = vsel %vm661, %v608, 0
      %v669 = vsel %vm661, %v609, 0
      %v672 = vsel %vm661, %v610, 0
      %v675 = vsel %vm661, %v611, 0
      %v678 = vsel %vm661, %v612, 0
      %v681 = vsel %vm661, %v613, 0
      %v684 = vsel %vm661, %v614, 0
      %v687 = vsel %vm661, %v615, 0
      %v690 = vsel %vm661, %v616, 0
      %v693 = vsel %vm661, %v617, 0
      %v696 = vsel %vm661, %v618, 0
      %v699 = vsel %vm661, %v619, 0
      %v702 = vsel %vm661, %v620, 0
      %v705 = vsel %vm661, %v621, 0
      %v708 = vsel %vm661, %v622, 0
      %v711 = vsel %vm661, %v623, 0
      %v714 = vsel %vm661, %v624, 0
      %v717 = vsel %vm661, %v625, 0
      %v720 = vsel %vm661, %v626, 0
      %v723 = vsel %vm661, %v627, 0
      %v726 = vsel %vm661, %v628, 0
      %v729 = vsel %vm661, %v629, 0
      %v732 = vsel %vm661, %v630, 0
      %v735 = vsel %vm661, %v631, 0
      %v738 = vsel %vm661, %v632, 0
      %v741 = vsel %vm661, %v633, 0
      %v744 = vsel %vm661, %v634, 0
      %v747 = vsel %vm661, %v635, 0
      %v750 = vsel %vm661, %v636, 0
      %v753 = vsel %vm661, %v637, 0
      %v756 = vsel %vm661, %v638, 0
      %v759 = vsel %vm661, %v639, 0
      %v762 = vsel %vm661, %v640, 0
      %v765 = vsel %vm661, %v641, 0
      %v768 = vsel %vm661, %v642, 0
      %v771 = vsel %vm661, %v643, 0
      %v774 = vsel %vm661, %v644, 0
      %v777 = vsel %vm661, %v645, 0
      %v780 = vsel %vm661, %v646, 0
      %v783 = vsel %vm661, %v647, 0
      %v786 = vsel %vm661, %v648, 0
      %v789 = vsel %vm661, %v649, 0
      %v792 = vsel %vm661, %v650, 0
      %v795 = vsel %vm661, %v651, 0
      %v798 = vsel %vm661, %v652, 0
      %v801 = vsel %vm661, %v653, 0
      %v804 = vsel %vm661, %v654, 0
      %806 = vmatprep.subr.bf16.mxu0 0
      %807 = vmatpush1.bf16.msra.mxu0 0
      %808 = vmatprep.subr.bf16.mxu0 0
      %809 = vmatpush1.bf16.msra.mxu0 0
      %810 = vmatprep.subr.bf16.mxu0 0
      %811 = vmatpush1.bf16.msra.mxu0 0
      %812 = vmatprep.subr.bf16.mxu0 0
      %813 = vmatpush1.bf16.msra.mxu0 0
      %814 = vmatprep.subr.bf16.mxu0 0
      %815 = vmatpush1.bf16.msra.mxu0 0
      %816 = vmatprep.subr.bf16.mxu0 0
      %817 = vmatpush1.bf16.msra.mxu0 0
      %818 = vmatprep.subr.bf16.mxu0 0
      %819 = vmatpush1.bf16.msra.mxu0 0
      %820 = vmatprep.subr.bf16.mxu0 0
      %821 = vmatpush1.bf16.msra.mxu0 %v659
      %822 = vmatprep.subr.bf16.mxu0 0
      %823 = vmatpush2.bf16.msra.mxu0 0
      %824 = vmatprep.subr.bf16.mxu0 0
      %825 = vmatpush2.bf16.msra.mxu0 0
      %826 = vmatprep.subr.bf16.mxu0 0
      %827 = vmatpush2.bf16.msra.mxu0 0
      %828 = vmatprep.subr.bf16.mxu0 0
      %829 = vmatpush2.bf16.msra.mxu0 0
      %830 = vmatprep.subr.bf16.mxu0 0
      %831 = vmatpush2.bf16.msra.mxu0 0
      %832 = vmatprep.subr.bf16.mxu0 0
      %833 = vmatpush2.bf16.msra.mxu0 0
      %834 = vmatprep.subr.bf16.mxu0 0
      %835 = vmatpush2.bf16.msra.mxu0 0
      %836 = vmatprep.subr.bf16.mxu0 0
      %837 = vmatpush2.bf16.msra.mxu0 0
      %838 = vmatprep.mubr.bf16.mxu0 0
      %839 = vmatmul.mubr.bf16.gmra.mxu0 %v663
      %v840 = vpop.f32.mrf.mxu0
      %v841 = vadd.f32 %v413, %v840
      %v842 = vpop.f32.mrf.mxu0
      %v843 = vpop.f32.mrf.mxu0
      %v844 = vadd.f32 %v413, %v843
      %v845 = vpop.f32.mrf.mxu0
      %846 = vmatprep.mubr.bf16.mxu0 0
      %847 = vmatmul.mubr.bf16.gmra.mxu0 %v666
      %v848 = vpop.f32.mrf.mxu0
      %v849 = vadd.f32 %v413, %v848
      %v850 = vpop.f32.mrf.mxu0
      %v851 = vpop.f32.mrf.mxu0
      %v852 = vadd.f32 %v413, %v851
      %v853 = vpop.f32.mrf.mxu0
      %854 = vmatprep.mubr.bf16.mxu0 0
      %855 = vmatmul.mubr.bf16.gmra.mxu0 %v669
      %v856 = vpop.f32.mrf.mxu0
      %v857 = vadd.f32 %v413, %v856
      %v858 = vpop.f32.mrf.mxu0
      %v859 = vpop.f32.mrf.mxu0
      %v860 = vadd.f32 %v413, %v859
      %v861 = vpop.f32.mrf.mxu0
      %862 = vmatprep.mubr.bf16.mxu0 0
      %863 = vmatmul.mubr.bf16.gmra.mxu0 %v672
      %v864 = vpop.f32.mrf.mxu0
      %v865 = vadd.f32 %v413, %v864
      %v866 = vpop.f32.mrf.mxu0
      %v867 = vpop.f32.mrf.mxu0
      %v868 = vadd.f32 %v413, %v867
      %v869 = vpop.f32.mrf.mxu0
      %870 = vmatprep.mubr.bf16.mxu0 0
      %871 = vmatmul.mubr.bf16.gmra.mxu0 %v675
      %v872 = vpop.f32.mrf.mxu0
      %v873 = vadd.f32 %v413, %v872
      %v874 = vpop.f32.mrf.mxu0
      %v875 = vpop.f32.mrf.mxu0
      %v876 = vadd.f32 %v413, %v875
      %v877 = vpop.f32.mrf.mxu0
      %878 = vmatprep.mubr.bf16.mxu0 0
      %879 = vmatmul.mubr.bf16.gmra.mxu0 %v678
      %v880 = vpop.f32.mrf.mxu0
      %v881 = vadd.f32 %v413, %v880
      %v882 = vpop.f32.mrf.mxu0
      %v883 = vpop.f32.mrf.mxu0
      %v884 = vadd.f32 %v413, %v883
      %v885 = vpop.f32.mrf.mxu0
      %886 = vmatprep.mubr.bf16.mxu0 0
      %887 = vmatmul.mubr.bf16.gmra.mxu0 %v681
      %v888 = vpop.f32.mrf.mxu0
      %v889 = vadd.f32 %v413, %v888
      %v890 = vpop.f32.mrf.mxu0
      %v891 = vpop.f32.mrf.mxu0
      %v892 = vadd.f32 %v413, %v891
      %v893 = vpop.f32.mrf.mxu0
      %894 = vmatprep.mubr.bf16.mxu0 0
      %895 = vmatmul.mubr.bf16.gmra.mxu0 %v684
      %v896 = vpop.f32.mrf.mxu0
      %v897 = vadd.f32 %v413, %v896
      %v898 = vpop.f32.mrf.mxu0
      %v899 = vpop.f32.mrf.mxu0
      %v900 = vadd.f32 %v413, %v899
      %v901 = vpop.f32.mrf.mxu0
      %902 = vmatprep.mubr.bf16.mxu0 0
      %903 = vmatmul.mubr.bf16.gmra.mxu0 %v687
      %v904 = vpop.f32.mrf.mxu0
      %v905 = vadd.f32 %v413, %v904
      %v906 = vpop.f32.mrf.mxu0
      %v907 = vpop.f32.mrf.mxu0
      %v908 = vadd.f32 %v413, %v907
      %v909 = vpop.f32.mrf.mxu0
      %910 = vmatprep.mubr.bf16.mxu0 0
      %911 = vmatmul.mubr.bf16.gmra.mxu0 %v690
      %v912 = vpop.f32.mrf.mxu0
      %v913 = vadd.f32 %v413, %v912
      %v914 = vpop.f32.mrf.mxu0
      %v915 = vpop.f32.mrf.mxu0
      %v916 = vadd.f32 %v413, %v915
      %v917 = vpop.f32.mrf.mxu0
      %918 = vmatprep.mubr.bf16.mxu0 0
      %919 = vmatmul.mubr.bf16.gmra.mxu0 %v693
      %v920 = vpop.f32.mrf.mxu0
      %v921 = vadd.f32 %v413, %v920
      %v922 = vpop.f32.mrf.mxu0
      %v923 = vpop.f32.mrf.mxu0
      %v924 = vadd.f32 %v413, %v923
      %v925 = vpop.f32.mrf.mxu0
      %926 = vmatprep.mubr.bf16.mxu0 0
      %927 = vmatmul.mubr.bf16.gmra.mxu0 %v696
      %v928 = vpop.f32.mrf.mxu0
      %v929 = vadd.f32 %v413, %v928
      %v930 = vpop.f32.mrf.mxu0
      %v931 = vpop.f32.mrf.mxu0
      %v932 = vadd.f32 %v413, %v931
      %v933 = vpop.f32.mrf.mxu0
      %934 = vmatprep.mubr.bf16.mxu0 0
      %935 = vmatmul.mubr.bf16.gmra.mxu0 %v699
      %v936 = vpop.f32.mrf.mxu0
      %v937 = vadd.f32 %v413, %v936
      %v938 = vpop.f32.mrf.mxu0
      %v939 = vpop.f32.mrf.mxu0
      %v940 = vadd.f32 %v413, %v939
      %v941 = vpop.f32.mrf.mxu0
      %942 = vmatprep.mubr.bf16.mxu0 0
      %943 = vmatmul.mubr.bf16.gmra.mxu0 %v702
      %v944 = vpop.f32.mrf.mxu0
      %v945 = vadd.f32 %v413, %v944
      %v946 = vpop.f32.mrf.mxu0
      %v947 = vpop.f32.mrf.mxu0
      %v948 = vadd.f32 %v413, %v947
      %v949 = vpop.f32.mrf.mxu0
      %950 = vmatprep.mubr.bf16.mxu0 0
      %951 = vmatmul.mubr.bf16.gmra.mxu0 %v705
      %v952 = vpop.f32.mrf.mxu0
      %v953 = vadd.f32 %v413, %v952
      %v954 = vpop.f32.mrf.mxu0
      %v955 = vpop.f32.mrf.mxu0
      %v956 = vadd.f32 %v413, %v955
      %v957 = vpop.f32.mrf.mxu0
      %958 = vmatprep.mubr.bf16.mxu0 0
      %959 = vmatmul.mubr.bf16.gmra.mxu0 %v708
      %v960 = vpop.f32.mrf.mxu0
      %v961 = vadd.f32 %v413, %v960
      %v962 = vpop.f32.mrf.mxu0
      %v963 = vpop.f32.mrf.mxu0
      %v964 = vadd.f32 %v413, %v963
      %v965 = vpop.f32.mrf.mxu0
      %966 = vmatprep.mubr.bf16.mxu0 0
      %967 = vmatmul.mubr.bf16.gmra.mxu0 %v711
      %v968 = vpop.f32.mrf.mxu0
      %v969 = vadd.f32 %v413, %v968
      %v970 = vpop.f32.mrf.mxu0
      %v971 = vpop.f32.mrf.mxu0
      %v972 = vadd.f32 %v413, %v971
      %v973 = vpop.f32.mrf.mxu0
      %974 = vmatprep.mubr.bf16.mxu0 0
      %975 = vmatmul.mubr.bf16.gmra.mxu0 %v714
      %v976 = vpop.f32.mrf.mxu0
      %v977 = vadd.f32 %v413, %v976
      %v978 = vpop.f32.mrf.mxu0
      %v979 = vpop.f32.mrf.mxu0
      %v980 = vadd.f32 %v413, %v979
      %v981 = vpop.f32.mrf.mxu0
      %982 = vmatprep.mubr.bf16.mxu0 0
      %983 = vmatmul.mubr.bf16.gmra.mxu0 %v717
      %v984 = vpop.f32.mrf.mxu0
      %v985 = vadd.f32 %v413, %v984
      %v986 = vpop.f32.mrf.mxu0
      %v987 = vpop.f32.mrf.mxu0
      %v988 = vadd.f32 %v413, %v987
      %v989 = vpop.f32.mrf.mxu0
      %990 = vmatprep.mubr.bf16.mxu0 0
      %991 = vmatmul.mubr.bf16.gmra.mxu0 %v720
      %v992 = vpop.f32.mrf.mxu0
      %v993 = vadd.f32 %v413, %v992
      %v994 = vpop.f32.mrf.mxu0
      %v995 = vpop.f32.mrf.mxu0
      %v996 = vadd.f32 %v413, %v995
      %v997 = vpop.f32.mrf.mxu0
      %998 = vmatprep.mubr.bf16.mxu0 0
      %999 = vmatmul.mubr.bf16.gmra.mxu0 %v723
      %v1000 = vpop.f32.mrf.mxu0
      %v1001 = vadd.f32 %v413, %v1000
      %v1002 = vpop.f32.mrf.mxu0
      %v1003 = vpop.f32.mrf.mxu0
      %v1004 = vadd.f32 %v413, %v1003
      %v1005 = vpop.f32.mrf.mxu0
      %1006 = vmatprep.mubr.bf16.mxu0 0
      %1007 = vmatmul.mubr.bf16.gmra.mxu0 %v726
      %v1008 = vpop.f32.mrf.mxu0
      %v1009 = vadd.f32 %v413, %v1008
      %v1010 = vpop.f32.mrf.mxu0
      %v1011 = vpop.f32.mrf.mxu0
      %v1012 = vadd.f32 %v413, %v1011
      %v1013 = vpop.f32.mrf.mxu0
      %1014 = vmatprep.mubr.bf16.mxu0 0
      %1015 = vmatmul.mubr.bf16.gmra.mxu0 %v729
      %v1016 = vpop.f32.mrf.mxu0
      %v1017 = vadd.f32 %v413, %v1016
      %v1018 = vpop.f32.mrf.mxu0
      %v1019 = vpop.f32.mrf.mxu0
      %v1020 = vadd.f32 %v413, %v1019
      %v1021 = vpop.f32.mrf.mxu0
      %1022 = vmatprep.mubr.bf16.mxu0 0
      %1023 = vmatmul.mubr.bf16.gmra.mxu0 %v732
      %v1024 = vpop.f32.mrf.mxu0
      %v1025 = vadd.f32 %v413, %v1024
      %v1026 = vpop.f32.mrf.mxu0
      %v1027 = vpop.f32.mrf.mxu0
      %v1028 = vadd.f32 %v413, %v1027
      %v1029 = vpop.f32.mrf.mxu0
      %1030 = vmatprep.mubr.bf16.mxu0 0
      %1031 = vmatmul.mubr.bf16.gmra.mxu0 %v735
      %v1032 = vpop.f32.mrf.mxu0
      %v1033 = vadd.f32 %v413, %v1032
      %v1034 = vpop.f32.mrf.mxu0
      %v1035 = vpop.f32.mrf.mxu0
      %v1036 = vadd.f32 %v413, %v1035
      %v1037 = vpop.f32.mrf.mxu0
      %1038 = vmatprep.mubr.bf16.mxu0 0
      %1039 = vmatmul.mubr.bf16.gmra.mxu0 %v738
      %v1040 = vpop.f32.mrf.mxu0
      %v1041 = vadd.f32 %v413, %v1040
      %v1042 = vpop.f32.mrf.mxu0
      %v1043 = vpop.f32.mrf.mxu0
      %v1044 = vadd.f32 %v413, %v1043
      %v1045 = vpop.f32.mrf.mxu0
      %1046 = vmatprep.mubr.bf16.mxu0 0
      %1047 = vmatmul.mubr.bf16.gmra.mxu0 %v741
      %v1048 = vpop.f32.mrf.mxu0
      %v1049 = vadd.f32 %v413, %v1048
      %v1050 = vpop.f32.mrf.mxu0
      %v1051 = vpop.f32.mrf.mxu0
      %v1052 = vadd.f32 %v413, %v1051
      %v1053 = vpop.f32.mrf.mxu0
      %1054 = vmatprep.mubr.bf16.mxu0 0
      %1055 = vmatmul.mubr.bf16.gmra.mxu0 %v744
      %v1056 = vpop.f32.mrf.mxu0
      %v1057 = vadd.f32 %v413, %v1056
      %v1058 = vpop.f32.mrf.mxu0
      %v1059 = vpop.f32.mrf.mxu0
      %v1060 = vadd.f32 %v413, %v1059
      %v1061 = vpop.f32.mrf.mxu0
      %1062 = vmatprep.mubr.bf16.mxu0 0
      %1063 = vmatmul.mubr.bf16.gmra.mxu0 %v747
      %v1064 = vpop.f32.mrf.mxu0
      %v1065 = vadd.f32 %v413, %v1064
      %v1066 = vpop.f32.mrf.mxu0
      %v1067 = vpop.f32.mrf.mxu0
      %v1068 = vadd.f32 %v413, %v1067
      %v1069 = vpop.f32.mrf.mxu0
      %1070 = vmatprep.mubr.bf16.mxu0 0
      %1071 = vmatmul.mubr.bf16.gmra.mxu0 %v750
      %v1072 = vpop.f32.mrf.mxu0
      %v1073 = vadd.f32 %v413, %v1072
      %v1074 = vpop.f32.mrf.mxu0
      %v1075 = vpop.f32.mrf.mxu0
      %v1076 = vadd.f32 %v413, %v1075
      %v1077 = vpop.f32.mrf.mxu0
      %1078 = vmatprep.mubr.bf16.mxu0 0
      %1079 = vmatmul.mubr.bf16.gmra.mxu0 %v753
      %v1080 = vpop.f32.mrf.mxu0
      %v1081 = vadd.f32 %v413, %v1080
      %v1082 = vpop.f32.mrf.mxu0
      %v1083 = vpop.f32.mrf.mxu0
      %v1084 = vadd.f32 %v413, %v1083
      %v1085 = vpop.f32.mrf.mxu0
      %1086 = vmatprep.mubr.bf16.mxu0 0
      %1087 = vmatmul.mubr.bf16.gmra.mxu0 %v756
      %v1088 = vpop.f32.mrf.mxu0
      %v1089 = vadd.f32 %v413, %v1088
      %v1090 = vpop.f32.mrf.mxu0
      %v1091 = vpop.f32.mrf.mxu0
      %v1092 = vadd.f32 %v413, %v1091
      %v1093 = vpop.f32.mrf.mxu0
      %1094 = vmatprep.mubr.bf16.mxu0 0
      %1095 = vmatmul.mubr.bf16.gmra.mxu0 %v759
      %v1096 = vpop.f32.mrf.mxu0
      %v1097 = vadd.f32 %v413, %v1096
      %v1098 = vpop.f32.mrf.mxu0
      %v1099 = vpop.f32.mrf.mxu0
      %v1100 = vadd.f32 %v413, %v1099
      %v1101 = vpop.f32.mrf.mxu0
      %1102 = vmatprep.mubr.bf16.mxu0 0
      %1103 = vmatmul.mubr.bf16.gmra.mxu0 %v762
      %v1104 = vpop.f32.mrf.mxu0
      %v1105 = vadd.f32 %v413, %v1104
      %v1106 = vpop.f32.mrf.mxu0
      %v1107 = vpop.f32.mrf.mxu0
      %v1108 = vadd.f32 %v413, %v1107
      %v1109 = vpop.f32.mrf.mxu0
      %1110 = vmatprep.mubr.bf16.mxu0 0
      %1111 = vmatmul.mubr.bf16.gmra.mxu0 %v765
      %v1112 = vpop.f32.mrf.mxu0
      %v1113 = vadd.f32 %v413, %v1112
      %v1114 = vpop.f32.mrf.mxu0
      %v1115 = vpop.f32.mrf.mxu0
      %v1116 = vadd.f32 %v413, %v1115
      %v1117 = vpop.f32.mrf.mxu0
      %1118 = vmatprep.mubr.bf16.mxu0 0
      %1119 = vmatmul.mubr.bf16.gmra.mxu0 %v768
      %v1120 = vpop.f32.mrf.mxu0
      %v1121 = vadd.f32 %v413, %v1120
      %v1122 = vpop.f32.mrf.mxu0
      %v1123 = vpop.f32.mrf.mxu0
      %v1124 = vadd.f32 %v413, %v1123
      %v1125 = vpop.f32.mrf.mxu0
      %1126 = vmatprep.mubr.bf16.mxu0 0
      %1127 = vmatmul.mubr.bf16.gmra.mxu0 %v771
      %v1128 = vpop.f32.mrf.mxu0
      %v1129 = vadd.f32 %v413, %v1128
      %v1130 = vpop.f32.mrf.mxu0
      %v1131 = vpop.f32.mrf.mxu0
      %v1132 = vadd.f32 %v413, %v1131
      %v1133 = vpop.f32.mrf.mxu0
      %1134 = vmatprep.mubr.bf16.mxu0 0
      %1135 = vmatmul.mubr.bf16.gmra.mxu0 %v774
      %v1136 = vpop.f32.mrf.mxu0
      %v1137 = vadd.f32 %v413, %v1136
      %v1138 = vpop.f32.mrf.mxu0
      %v1139 = vpop.f32.mrf.mxu0
      %v1140 = vadd.f32 %v413, %v1139
      %v1141 = vpop.f32.mrf.mxu0
      %1142 = vmatprep.mubr.bf16.mxu0 0
      %1143 = vmatmul.mubr.bf16.gmra.mxu0 %v777
      %v1144 = vpop.f32.mrf.mxu0
      %v1145 = vadd.f32 %v413, %v1144
      %v1146 = vpop.f32.mrf.mxu0
      %v1147 = vpop.f32.mrf.mxu0
      %v1148 = vadd.f32 %v413, %v1147
      %v1149 = vpop.f32.mrf.mxu0
      %1150 = vmatprep.mubr.bf16.mxu0 0
      %1151 = vmatmul.mubr.bf16.gmra.mxu0 %v780
      %v1152 = vpop.f32.mrf.mxu0
      %v1153 = vadd.f32 %v413, %v1152
      %v1154 = vpop.f32.mrf.mxu0
      %v1155 = vpop.f32.mrf.mxu0
      %v1156 = vadd.f32 %v413, %v1155
      %v1157 = vpop.f32.mrf.mxu0
      %1158 = vmatprep.mubr.bf16.mxu0 0
      %1159 = vmatmul.mubr.bf16.gmra.mxu0 %v783
      %v1160 = vpop.f32.mrf.mxu0
      %v1161 = vadd.f32 %v413, %v1160
      %v1162 = vpop.f32.mrf.mxu0
      %v1163 = vpop.f32.mrf.mxu0
      %v1164 = vadd.f32 %v413, %v1163
      %v1165 = vpop.f32.mrf.mxu0
      %1166 = vmatprep.mubr.bf16.mxu0 0
      %1167 = vmatmul.mubr.bf16.gmra.mxu0 %v786
      %v1168 = vpop.f32.mrf.mxu0
      %v1169 = vadd.f32 %v413, %v1168
      %v1170 = vpop.f32.mrf.mxu0
      %v1171 = vpop.f32.mrf.mxu0
      %v1172 = vadd.f32 %v413, %v1171
      %v1173 = vpop.f32.mrf.mxu0
      %1174 = vmatprep.mubr.bf16.mxu0 0
      %1175 = vmatmul.mubr.bf16.gmra.mxu0 %v789
      %v1176 = vpop.f32.mrf.mxu0
      %v1177 = vadd.f32 %v413, %v1176
      %v1178 = vpop.f32.mrf.mxu0
      %v1179 = vpop.f32.mrf.mxu0
      %v1180 = vadd.f32 %v413, %v1179
      %v1181 = vpop.f32.mrf.mxu0
      %1182 = vmatprep.mubr.bf16.mxu0 0
      %1183 = vmatmul.mubr.bf16.gmra.mxu0 %v792
      %v1184 = vpop.f32.mrf.mxu0
      %v1185 = vadd.f32 %v413, %v1184
      %v1186 = vpop.f32.mrf.mxu0
      %v1187 = vpop.f32.mrf.mxu0
      %v1188 = vadd.f32 %v413, %v1187
      %v1189 = vpop.f32.mrf.mxu0
      %1190 = vmatprep.mubr.bf16.mxu0 0
      %1191 = vmatmul.mubr.bf16.gmra.mxu0 %v795
      %v1192 = vpop.f32.mrf.mxu0
      %v1193 = vadd.f32 %v413, %v1192
      %v1194 = vpop.f32.mrf.mxu0
      %v1195 = vpop.f32.mrf.mxu0
      %v1196 = vadd.f32 %v413, %v1195
      %v1197 = vpop.f32.mrf.mxu0
      %1198 = vmatprep.mubr.bf16.mxu0 0
      %1199 = vmatmul.mubr.bf16.gmra.mxu0 %v798
      %v1200 = vpop.f32.mrf.mxu0
      %v1201 = vadd.f32 %v413, %v1200
      %v1202 = vpop.f32.mrf.mxu0
      %v1203 = vpop.f32.mrf.mxu0
      %v1204 = vadd.f32 %v413, %v1203
      %v1205 = vpop.f32.mrf.mxu0
      %1206 = vmatprep.mubr.bf16.mxu0 0
      %1207 = vmatmul.mubr.bf16.gmra.mxu0 %v801
      %v1208 = vpop.f32.mrf.mxu0
      %v1209 = vadd.f32 %v413, %v1208
      %v1210 = vpop.f32.mrf.mxu0
      %v1211 = vpop.f32.mrf.mxu0
      %v1212 = vadd.f32 %v413, %v1211
      %v1213 = vpop.f32.mrf.mxu0
      %1214 = vmatprep.mubr.bf16.mxu0 0
      %1215 = vmatmul.mubr.bf16.gmra.mxu0 %v804
      %v1216 = vpop.f32.mrf.mxu0
      %v1217 = vadd.f32 %v413, %v1216
      %v1218 = vpop.f32.mrf.mxu0
      %v1219 = vpop.f32.mrf.mxu0
      %v1220 = vadd.f32 %v413, %v1219
      %v1221 = vpop.f32.mrf.mxu0
      %1222 = vdwg.mxu0
      %vm1223 = vcmp.ge.f32.partialorder %v841, 0.0
      %vm1224 = vcmp.ge.f32.partialorder %v844, 0.0
      %vm1225 = vcmp.ge.f32.partialorder %v849, 0.0
      %vm1226 = vcmp.ge.f32.partialorder %v852, 0.0
      %vm1227 = vcmp.ge.f32.partialorder %v857, 0.0
      %vm1228 = vcmp.ge.f32.partialorder %v860, 0.0
      %vm1229 = vcmp.ge.f32.partialorder %v865, 0.0
      %vm1230 = vcmp.ge.f32.partialorder %v868, 0.0
      %vm1231 = vcmp.ge.f32.partialorder %v873, 0.0
      %vm1232 = vcmp.ge.f32.partialorder %v876, 0.0
      %vm1233 = vcmp.ge.f32.partialorder %v881, 0.0
      %vm1234 = vcmp.ge.f32.partialorder %v884, 0.0
      %vm1235 = vcmp.ge.f32.partialorder %v889, 0.0
      %vm1236 = vcmp.ge.f32.partialorder %v892, 0.0
      %vm1237 = vcmp.ge.f32.partialorder %v897, 0.0
      %vm1238 = vcmp.ge.f32.partialorder %v900, 0.0
      %vm1239 = vcmp.ge.f32.partialorder %v905, 0.0
      %vm1240 = vcmp.ge.f32.partialorder %v908, 0.0
      %vm1241 = vcmp.ge.f32.partialorder %v913, 0.0
      %vm1242 = vcmp.ge.f32.partialorder %v916, 0.0
      %vm1243 = vcmp.ge.f32.partialorder %v921, 0.0
      %vm1244 = vcmp.ge.f32.partialorder %v924, 0.0
      %vm1245 = vcmp.ge.f32.partialorder %v929, 0.0
      %vm1246 = vcmp.ge.f32.partialorder %v932, 0.0
      %vm1247 = vcmp.ge.f32.partialorder %v937, 0.0
      %vm1248 = vcmp.ge.f32.partialorder %v940, 0.0
      %vm1249 = vcmp.ge.f32.partialorder %v945, 0.0
      %vm1250 = vcmp.ge.f32.partialorder %v948, 0.0
      %vm1251 = vcmp.ge.f32.partialorder %v953, 0.0
      %vm1252 = vcmp.ge.f32.partialorder %v956, 0.0
      %vm1253 = vcmp.ge.f32.partialorder %v961, 0.0
      %vm1254 = vcmp.ge.f32.partialorder %v964, 0.0
      %vm1255 = vcmp.ge.f32.partialorder %v969, 0.0
      %vm1256 = vcmp.ge.f32.partialorder %v972, 0.0
      %vm1257 = vcmp.ge.f32.partialorder %v977, 0.0
      %vm1258 = vcmp.ge.f32.partialorder %v980, 0.0
      %vm1259 = vcmp.ge.f32.partialorder %v985, 0.0
      %vm1260 = vcmp.ge.f32.partialorder %v988, 0.0
      %vm1261 = vcmp.ge.f32.partialorder %v993, 0.0
      %vm1262 = vcmp.ge.f32.partialorder %v996, 0.0
      %vm1263 = vcmp.ge.f32.partialorder %v1001, 0.0
      %vm1264 = vcmp.ge.f32.partialorder %v1004, 0.0
      %vm1265 = vcmp.ge.f32.partialorder %v1009, 0.0
      %vm1266 = vcmp.ge.f32.partialorder %v1012, 0.0
      %vm1267 = vcmp.ge.f32.partialorder %v1017, 0.0
      %vm1268 = vcmp.ge.f32.partialorder %v1020, 0.0
      %vm1269 = vcmp.ge.f32.partialorder %v1025, 0.0
      %vm1270 = vcmp.ge.f32.partialorder %v1028, 0.0
      %vm1271 = vcmp.ge.f32.partialorder %v1033, 0.0
      %vm1272 = vcmp.ge.f32.partialorder %v1036, 0.0
      %vm1273 = vcmp.ge.f32.partialorder %v1041, 0.0
      %vm1274 = vcmp.ge.f32.partialorder %v1044, 0.0
      %vm1275 = vcmp.ge.f32.partialorder %v1049, 0.0
      %vm1276 = vcmp.ge.f32.partialorder %v1052, 0.0
      %vm1277 = vcmp.ge.f32.partialorder %v1057, 0.0
      %vm1278 = vcmp.ge.f32.partialorder %v1060, 0.0
      %vm1279 = vcmp.ge.f32.partialorder %v1065, 0.0
      %vm1280 = vcmp.ge.f32.partialorder %v1068, 0.0
      %vm1281 = vcmp.ge.f32.partialorder %v1073, 0.0
      %vm1282 = vcmp.ge.f32.partialorder %v1076, 0.0
      %vm1283 = vcmp.ge.f32.partialorder %v1081, 0.0
      %vm1284 = vcmp.ge.f32.partialorder %v1084, 0.0
      %vm1285 = vcmp.ge.f32.partialorder %v1089, 0.0
      %vm1286 = vcmp.ge.f32.partialorder %v1092, 0.0
      %vm1287 = vcmp.ge.f32.partialorder %v1097, 0.0
      %vm1288 = vcmp.ge.f32.partialorder %v1100, 0.0
      %vm1289 = vcmp.ge.f32.partialorder %v1105, 0.0
      %vm1290 = vcmp.ge.f32.partialorder %v1108, 0.0
      %vm1291 = vcmp.ge.f32.partialorder %v1113, 0.0
      %vm1292 = vcmp.ge.f32.partialorder %v1116, 0.0
      %vm1293 = vcmp.ge.f32.partialorder %v1121, 0.0
      %vm1294 = vcmp.ge.f32.partialorder %v1124, 0.0
      %vm1295 = vcmp.ge.f32.partialorder %v1129, 0.0
      %vm1296 = vcmp.ge.f32.partialorder %v1132, 0.0
      %vm1297 = vcmp.ge.f32.partialorder %v1137, 0.0
      %vm1298 = vcmp.ge.f32.partialorder %v1140, 0.0
      %vm1299 = vcmp.ge.f32.partialorder %v1145, 0.0
      %vm1300 = vcmp.ge.f32.partialorder %v1148, 0.0
      %vm1301 = vcmp.ge.f32.partialorder %v1153, 0.0
      %vm1302 = vcmp.ge.f32.partialorder %v1156, 0.0
      %vm1303 = vcmp.ge.f32.partialorder %v1161, 0.0
      %vm1304 = vcmp.ge.f32.partialorder %v1164, 0.0
      %vm1305 = vcmp.ge.f32.partialorder %v1169, 0.0
      %vm1306 = vcmp.ge.f32.partialorder %v1172, 0.0
      %vm1307 = vcmp.ge.f32.partialorder %v1177, 0.0
      %vm1308 = vcmp.ge.f32.partialorder %v1180, 0.0
      %vm1309 = vcmp.ge.f32.partialorder %v1185, 0.0
      %vm1310 = vcmp.ge.f32.partialorder %v1188, 0.0
      %vm1311 = vcmp.ge.f32.partialorder %v1193, 0.0
      %vm1312 = vcmp.ge.f32.partialorder %v1196, 0.0
      %vm1313 = vcmp.ge.f32.partialorder %v1201, 0.0
      %vm1314 = vcmp.ge.f32.partialorder %v1204, 0.0
      %vm1315 = vcmp.ge.f32.partialorder %v1209, 0.0
      %vm1316 = vcmp.ge.f32.partialorder %v1212, 0.0
      %vm1317 = vcmp.ge.f32.partialorder %v1217, 0.0
      %vm1318 = vcmp.ge.f32.partialorder %v1220, 0.0
      %v1319 = vmul.f32 %v841, 0.2
      %v1320 = vmul.f32 %v844, 0.2
      %v1321 = vmul.f32 %v849, 0.2
      %v1322 = vmul.f32 %v852, 0.2
      %v1323 = vmul.f32 %v857, 0.2
      %v1324 = vmul.f32 %v860, 0.2
      %v1325 = vmul.f32 %v865, 0.2
      %v1326 = vmul.f32 %v868, 0.2
      %v1327 = vmul.f32 %v873, 0.2
      %v1328 = vmul.f32 %v876, 0.2
      %v1329 = vmul.f32 %v881, 0.2
      %v1330 = vmul.f32 %v884, 0.2
      %v1331 = vmul.f32 %v889, 0.2
      %v1332 = vmul.f32 %v892, 0.2
      %v1333 = vmul.f32 %v897, 0.2
      %v1334 = vmul.f32 %v900, 0.2
      %v1335 = vmul.f32 %v905, 0.2
      %v1336 = vmul.f32 %v908, 0.2
      %v1337 = vmul.f32 %v913, 0.2
      %v1338 = vmul.f32 %v916, 0.2
      %v1339 = vmul.f32 %v921, 0.2
      %v1340 = vmul.f32 %v924, 0.2
      %v1341 = vmul.f32 %v929, 0.2
      %v1342 = vmul.f32 %v932, 0.2
      %v1343 = vmul.f32 %v937, 0.2
      %v1344 = vmul.f32 %v940, 0.2
      %v1345 = vmul.f32 %v945, 0.2
      %v1346 = vmul.f32 %v948, 0.2
      %v1347 = vmul.f32 %v953, 0.2
      %v1348 = vmul.f32 %v956, 0.2
      %v1349 = vmul.f32 %v961, 0.2
      %v1350 = vmul.f32 %v964, 0.2
      %v1351 = vmul.f32 %v969, 0.2
      %v1352 = vmul.f32 %v972, 0.2
      %v1353 = vmul.f32 %v977, 0.2
      %v1354 = vmul.f32 %v980, 0.2
      %v1355 = vmul.f32 %v985, 0.2
      %v1356 = vmul.f32 %v988, 0.2
      %v1357 = vmul.f32 %v993, 0.2
      %v1358 = vmul.f32 %v996, 0.2
      %v1359 = vmul.f32 %v1001, 0.2
      %v1360 = vmul.f32 %v1004, 0.2
      %v1361 = vmul.f32 %v1009, 0.2
      %v1362 = vmul.f32 %v1012, 0.2
      %v1363 = vmul.f32 %v1017, 0.2
      %v1364 = vmul.f32 %v1020, 0.2
      %v1365 = vmul.f32 %v1025, 0.2
      %v1366 = vmul.f32 %v1028, 0.2
      %v1367 = vmul.f32 %v1033, 0.2
      %v1368 = vmul.f32 %v1036, 0.2
      %v1369 = vmul.f32 %v1041, 0.2
      %v1370 = vmul.f32 %v1044, 0.2
      %v1371 = vmul.f32 %v1049, 0.2
      %v1372 = vmul.f32 %v1052, 0.2
      %v1373 = vmul.f32 %v1057, 0.2
      %v1374 = vmul.f32 %v1060, 0.2
      %v1375 = vmul.f32 %v1065, 0.2
      %v1376 = vmul.f32 %v1068, 0.2
      %v1377 = vmul.f32 %v1073, 0.2
      %v1378 = vmul.f32 %v1076, 0.2
      %v1379 = vmul.f32 %v1081, 0.2
      %v1380 = vmul.f32 %v1084, 0.2
      %v1381 = vmul.f32 %v1089, 0.2
      %v1382 = vmul.f32 %v1092, 0.2
      %v1383 = vmul.f32 %v1097, 0.2
      %v1384 = vmul.f32 %v1100, 0.2
      %v1385 = vmul.f32 %v1105, 0.2
      %v1386 = vmul.f32 %v1108, 0.2
      %v1387 = vmul.f32 %v1113, 0.2
      %v1388 = vmul.f32 %v1116, 0.2
      %v1389 = vmul.f32 %v1121, 0.2
      %v1390 = vmul.f32 %v1124, 0.2
      %v1391 = vmul.f32 %v1129, 0.2
      %v1392 = vmul.f32 %v1132, 0.2
      %v1393 = vmul.f32 %v1137, 0.2
      %v1394 = vmul.f32 %v1140, 0.2
      %v1395 = vmul.f32 %v1145, 0.2
      %v1396 = vmul.f32 %v1148, 0.2
      %v1397 = vmul.f32 %v1153, 0.2
      %v1398 = vmul.f32 %v1156, 0.2
      %v1399 = vmul.f32 %v1161, 0.2
      %v1400 = vmul.f32 %v1164, 0.2
      %v1401 = vmul.f32 %v1169, 0.2
      %v1402 = vmul.f32 %v1172, 0.2
      %v1403 = vmul.f32 %v1177, 0.2
      %v1404 = vmul.f32 %v1180, 0.2
      %v1405 = vmul.f32 %v1185, 0.2
      %v1406 = vmul.f32 %v1188, 0.2
      %v1407 = vmul.f32 %v1193, 0.2
      %v1408 = vmul.f32 %v1196, 0.2
      %v1409 = vmul.f32 %v1201, 0.2
      %v1410 = vmul.f32 %v1204, 0.2
      %v1411 = vmul.f32 %v1209, 0.2
      %v1412 = vmul.f32 %v1212, 0.2
      %v1413 = vmul.f32 %v1217, 0.2
      %v1414 = vmul.f32 %v1220, 0.2
      %v1415 = vsel %vm1223, %v841, %v1319
      %v1416 = vsel %vm1224, %v844, %v1320
      %v1417 = vsel %vm1225, %v849, %v1321
      %v1418 = vsel %vm1226, %v852, %v1322
      %v1419 = vsel %vm1227, %v857, %v1323
      %v1420 = vsel %vm1228, %v860, %v1324
      %v1421 = vsel %vm1229, %v865, %v1325
      %v1422 = vsel %vm1230, %v868, %v1326
      %v1423 = vsel %vm1231, %v873, %v1327
      %v1424 = vsel %vm1232, %v876, %v1328
      %v1425 = vsel %vm1233, %v881, %v1329
      %v1426 = vsel %vm1234, %v884, %v1330
      %v1427 = vsel %vm1235, %v889, %v1331
      %v1428 = vsel %vm1236, %v892, %v1332
      %v1429 = vsel %vm1237, %v897, %v1333
      %v1430 = vsel %vm1238, %v900, %v1334
      %v1431 = vsel %vm1239, %v905, %v1335
      %v1432 = vsel %vm1240, %v908, %v1336
      %v1433 = vsel %vm1241, %v913, %v1337
      %v1434 = vsel %vm1242, %v916, %v1338
      %v1435 = vsel %vm1243, %v921, %v1339
      %v1436 = vsel %vm1244, %v924, %v1340
      %v1437 = vsel %vm1245, %v929, %v1341
      %v1438 = vsel %vm1246, %v932, %v1342
      %v1439 = vsel %vm1247, %v937, %v1343
      %v1440 = vsel %vm1248, %v940, %v1344
      %v1441 = vsel %vm1249, %v945, %v1345
      %v1442 = vsel %vm1250, %v948, %v1346
      %v1443 = vsel %vm1251, %v953, %v1347
      %v1444 = vsel %vm1252, %v956, %v1348
      %v1445 = vsel %vm1253, %v961, %v1349
      %v1446 = vsel %vm1254, %v964, %v1350
      %v1447 = vsel %vm1255, %v969, %v1351
      %v1448 = vsel %vm1256, %v972, %v1352
      %v1449 = vsel %vm1257, %v977, %v1353
      %v1450 = vsel %vm1258, %v980, %v1354
      %v1451 = vsel %vm1259, %v985, %v1355
      %v1452 = vsel %vm1260, %v988, %v1356
      %v1453 = vsel %vm1261, %v993, %v1357
      %v1454 = vsel %vm1262, %v996, %v1358
      %v1455 = vsel %vm1263, %v1001, %v1359
      %v1456 = vsel %vm1264, %v1004, %v1360
      %v1457 = vsel %vm1265, %v1009, %v1361
      %v1458 = vsel %vm1266, %v1012, %v1362
      %v1459 = vsel %vm1267, %v1017, %v1363
      %v1460 = vsel %vm1268, %v1020, %v1364
      %v1461 = vsel %vm1269, %v1025, %v1365
      %v1462 = vsel %vm1270, %v1028, %v1366
      %v1463 = vsel %vm1271, %v1033, %v1367
      %v1464 = vsel %vm1272, %v1036, %v1368
      %v1465 = vsel %vm1273, %v1041, %v1369
      %v1466 = vsel %vm1274, %v1044, %v1370
      %v1467 = vsel %vm1275, %v1049, %v1371
      %v1468 = vsel %vm1276, %v1052, %v1372
      %v1469 = vsel %vm1277, %v1057, %v1373
      %v1470 = vsel %vm1278, %v1060, %v1374
      %v1471 = vsel %vm1279, %v1065, %v1375
      %v1472 = vsel %vm1280, %v1068, %v1376
      %v1473 = vsel %vm1281, %v1073, %v1377
      %v1474 = vsel %vm1282, %v1076, %v1378
      %v1475 = vsel %vm1283, %v1081, %v1379
      %v1476 = vsel %vm1284, %v1084, %v1380
      %v1477 = vsel %vm1285, %v1089, %v1381
      %v1478 = vsel %vm1286, %v1092, %v1382
      %v1479 = vsel %vm1287, %v1097, %v1383
      %v1480 = vsel %vm1288, %v1100, %v1384
      %v1481 = vsel %vm1289, %v1105, %v1385
      %v1482 = vsel %vm1290, %v1108, %v1386
      %v1483 = vsel %vm1291, %v1113, %v1387
      %v1484 = vsel %vm1292, %v1116, %v1388
      %v1485 = vsel %vm1293, %v1121, %v1389
      %v1486 = vsel %vm1294, %v1124, %v1390
      %v1487 = vsel %vm1295, %v1129, %v1391
      %v1488 = vsel %vm1296, %v1132, %v1392
      %v1489 = vsel %vm1297, %v1137, %v1393
      %v1490 = vsel %vm1298, %v1140, %v1394
      %v1491 = vsel %vm1299, %v1145, %v1395
      %v1492 = vsel %vm1300, %v1148, %v1396
      %v1493 = vsel %vm1301, %v1153, %v1397
      %v1494 = vsel %vm1302, %v1156, %v1398
      %v1495 = vsel %vm1303, %v1161, %v1399
      %v1496 = vsel %vm1304, %v1164, %v1400
      %v1497 = vsel %vm1305, %v1169, %v1401
      %v1498 = vsel %vm1306, %v1172, %v1402
      %v1499 = vsel %vm1307, %v1177, %v1403
      %v1500 = vsel %vm1308, %v1180, %v1404
      %v1501 = vsel %vm1309, %v1185, %v1405
      %v1502 = vsel %vm1310, %v1188, %v1406
      %v1503 = vsel %vm1311, %v1193, %v1407
      %v1504 = vsel %vm1312, %v1196, %v1408
      %v1505 = vsel %vm1313, %v1201, %v1409
      %v1506 = vsel %vm1314, %v1204, %v1410
      %v1507 = vsel %vm1315, %v1209, %v1411
      %v1508 = vsel %vm1316, %v1212, %v1412
      %v1509 = vsel %vm1317, %v1217, %v1413
      %v1510 = vsel %vm1318, %v1220, %v1414
      %v1511 = vld [vmem:[%s3] sm:$0x7]
      %v1512 = vlaneseq
      %v1513 = vshrl.u32 %v1512, 7
      %v1514 = vsub.s32 0, %v1513
      %v1515 = vrot.slane %v1511, %v1514
      %v1516 = vmul.f32 %v1415, %v1515
      %v1517 = vmul.f32 %v1416, %v1515
      %v1518 = vmul.f32 %v1417, %v1515
      %v1519 = vmul.f32 %v1418, %v1515
      %v1520 = vmul.f32 %v1419, %v1515
      %v1521 = vmul.f32 %v1420, %v1515
      %v1522 = vmul.f32 %v1421, %v1515
      %v1523 = vmul.f32 %v1422, %v1515
      %v1524 = vmul.f32 %v1423, %v1515
      %v1525 = vmul.f32 %v1424, %v1515
      %v1526 = vmul.f32 %v1425, %v1515
      %v1527 = vmul.f32 %v1426, %v1515
      %v1528 = vmul.f32 %v1427, %v1515
      %v1529 = vmul.f32 %v1428, %v1515
      %v1530 = vmul.f32 %v1429, %v1515
      %v1531 = vmul.f32 %v1430, %v1515
      %v1532 = vmul.f32 %v1431, %v1515
      %v1533 = vmul.f32 %v1432, %v1515
      %v1534 = vmul.f32 %v1433, %v1515
      %v1535 = vmul.f32 %v1434, %v1515
      %v1536 = vmul.f32 %v1435, %v1515
      %v1537 = vmul.f32 %v1436, %v1515
      %v1538 = vmul.f32 %v1437, %v1515
      %v1539 = vmul.f32 %v1438, %v1515
      %v1540 = vmul.f32 %v1439, %v1515
      %v1541 = vmul.f32 %v1440, %v1515
      %v1542 = vmul.f32 %v1441, %v1515
      %v1543 = vmul.f32 %v1442, %v1515
      %v1544 = vmul.f32 %v1443, %v1515
      %v1545 = vmul.f32 %v1444, %v1515
      %v1546 = vmul.f32 %v1445, %v1515
      %v1547 = vmul.f32 %v1446, %v1515
      %v1548 = vlaneseq
      %v1549 = vshrl.u32 %v1548, 7
      %v1550 = vsub.s32 1, %v1549
      %v1551 = vrot.slane %v1511, %v1550
      %v1552 = vmul.f32 %v1447, %v1551
      %v1553 = vmul.f32 %v1448, %v1551
      %v1554 = vmul.f32 %v1449, %v1551
      %v1555 = vmul.f32 %v1450, %v1551
      %v1556 = vmul.f32 %v1451, %v1551
      %v1557 = vmul.f32 %v1452, %v1551
      %v1558 = vmul.f32 %v1453, %v1551
      %v1559 = vmul.f32 %v1454, %v1551
      %v1560 = vmul.f32 %v1455, %v1551
      %v1561 = vmul.f32 %v1456, %v1551
      %v1562 = vmul.f32 %v1457, %v1551
      %v1563 = vmul.f32 %v1458, %v1551
      %v1564 = vmul.f32 %v1459, %v1551
      %v1565 = vmul.f32 %v1460, %v1551
      %v1566 = vmul.f32 %v1461, %v1551
      %v1567 = vmul.f32 %v1462, %v1551
      %v1568 = vmul.f32 %v1463, %v1551
      %v1569 = vmul.f32 %v1464, %v1551
      %v1570 = vmul.f32 %v1465, %v1551
      %v1571 = vmul.f32 %v1466, %v1551
      %v1572 = vmul.f32 %v1467, %v1551
      %v1573 = vmul.f32 %v1468, %v1551
      %v1574 = vmul.f32 %v1469, %v1551
      %v1575 = vmul.f32 %v1470, %v1551
      %v1576 = vmul.f32 %v1471, %v1551
      %v1577 = vmul.f32 %v1472, %v1551
      %v1578 = vmul.f32 %v1473, %v1551
      %v1579 = vmul.f32 %v1474, %v1551
      %v1580 = vmul.f32 %v1475, %v1551
      %v1581 = vmul.f32 %v1476, %v1551
      %v1582 = vmul.f32 %v1477, %v1551
      %v1583 = vmul.f32 %v1478, %v1551
      %v1584 = vlaneseq
      %v1585 = vshrl.u32 %v1584, 7
      %v1586 = vsub.s32 2, %v1585
      %v1587 = vrot.slane %v1511, %v1586
      %v1588 = vmul.f32 %v1479, %v1587
      %v1589 = vmul.f32 %v1480, %v1587
      %v1590 = vmul.f32 %v1481, %v1587
      %v1591 = vmul.f32 %v1482, %v1587
      %v1592 = vmul.f32 %v1483, %v1587
      %v1593 = vmul.f32 %v1484, %v1587
      %v1594 = vmul.f32 %v1485, %v1587
      %v1595 = vmul.f32 %v1486, %v1587
      %v1596 = vmul.f32 %v1487, %v1587
      %v1597 = vmul.f32 %v1488, %v1587
      %v1598 = vmul.f32 %v1489, %v1587
      %v1599 = vmul.f32 %v1490, %v1587
      %v1600 = vmul.f32 %v1491, %v1587
      %v1601 = vmul.f32 %v1492, %v1587
      %v1602 = vmul.f32 %v1493, %v1587
      %v1603 = vmul.f32 %v1494, %v1587
      %v1604 = vmul.f32 %v1495, %v1587
      %v1605 = vmul.f32 %v1496, %v1587
      %v1606 = vmul.f32 %v1497, %v1587
      %v1607 = vmul.f32 %v1498, %v1587
      %v1608 = vmul.f32 %v1499, %v1587
      %v1609 = vmul.f32 %v1500, %v1587
      %v1610 = vmul.f32 %v1501, %v1587
      %v1611 = vmul.f32 %v1502, %v1587
      %v1612 = vmul.f32 %v1503, %v1587
      %v1613 = vmul.f32 %v1504, %v1587
      %v1614 = vmul.f32 %v1505, %v1587
      %v1615 = vmul.f32 %v1506, %v1587
      %v1616 = vmul.f32 %v1507, %v1587
      %v1617 = vmul.f32 %v1508, %v1587
      %v1618 = vmul.f32 %v1509, %v1587
      %v1619 = vmul.f32 %v1510, %v1587
      %v1620 = vadd.f32 %v1516, %v1516
      %v1621 = vadd.f32 %v1517, %v1517
      %v1622 = vadd.f32 %v1518, %v1518
      %v1623 = vadd.f32 %v1519, %v1519
      %v1624 = vadd.f32 %v1520, %v1520
      %v1625 = vadd.f32 %v1521, %v1521
      %v1626 = vadd.f32 %v1522, %v1522
      %v1627 = vadd.f32 %v1523, %v1523
      %v1628 = vadd.f32 %v1524, %v1524
      %v1629 = vadd.f32 %v1525, %v1525
      %v1630 = vadd.f32 %v1526, %v1526
      %v1631 = vadd.f32 %v1527, %v1527
      %v1632 = vadd.f32 %v1528, %v1528
      %v1633 = vadd.f32 %v1529, %v1529
      %v1634 = vadd.f32 %v1530, %v1530
      %v1635 = vadd.f32 %v1531, %v1531
      %v1636 = vadd.f32 %v1532, %v1532
      %v1637 = vadd.f32 %v1533, %v1533
      %v1638 = vadd.f32 %v1534, %v1534
      %v1639 = vadd.f32 %v1535, %v1535
      %v1640 = vadd.f32 %v1536, %v1536
      %v1641 = vadd.f32 %v1537, %v1537
      %v1642 = vadd.f32 %v1538, %v1538
      %v1643 = vadd.f32 %v1539, %v1539
      %v1644 = vadd.f32 %v1540, %v1540
      %v1645 = vadd.f32 %v1541, %v1541
      %v1646 = vadd.f32 %v1542, %v1542
      %v1647 = vadd.f32 %v1543, %v1543
      %v1648 = vadd.f32 %v1544, %v1544
      %v1649 = vadd.f32 %v1545, %v1545
      %v1650 = vadd.f32 %v1546, %v1546
      %v1651 = vadd.f32 %v1547, %v1547
      %vm1652 = vcmp.ge.f32.partialorder %v1620, 0.0
      %vm1653 = vcmp.ge.f32.partialorder %v1621, 0.0
      %vm1654 = vcmp.ge.f32.partialorder %v1622, 0.0
      %vm1655 = vcmp.ge.f32.partialorder %v1623, 0.0
      %vm1656 = vcmp.ge.f32.partialorder %v1624, 0.0
      %vm1657 = vcmp.ge.f32.partialorder %v1625, 0.0
      %vm1658 = vcmp.ge.f32.partialorder %v1626, 0.0
      %vm1659 = vcmp.ge.f32.partialorder %v1627, 0.0
      %vm1660 = vcmp.ge.f32.partialorder %v1628, 0.0
      %vm1661 = vcmp.ge.f32.partialorder %v1629, 0.0
      %vm1662 = vcmp.ge.f32.partialorder %v1630, 0.0
      %vm1663 = vcmp.ge.f32.partialorder %v1631, 0.0
      %vm1664 = vcmp.ge.f32.partialorder %v1632, 0.0
      %vm1665 = vcmp.ge.f32.partialorder %v1633, 0.0
      %vm1666 = vcmp.ge.f32.partialorder %v1634, 0.0
      %vm1667 = vcmp.ge.f32.partialorder %v1635, 0.0
      %vm1668 = vcmp.ge.f32.partialorder %v1636, 0.0
      %vm1669 = vcmp.ge.f32.partialorder %v1637, 0.0
      %vm1670 = vcmp.ge.f32.partialorder %v1638, 0.0
      %vm1671 = vcmp.ge.f32.partialorder %v1639, 0.0
      %vm1672 = vcmp.ge.f32.partialorder %v1640, 0.0
      %vm1673 = vcmp.ge.f32.partialorder %v1641, 0.0
      %vm1674 = vcmp.ge.f32.partialorder %v1642, 0.0
      %vm1675 = vcmp.ge.f32.partialorder %v1643, 0.0
      %vm1676 = vcmp.ge.f32.partialorder %v1644, 0.0
      %vm1677 = vcmp.ge.f32.partialorder %v1645, 0.0
      %vm1678 = vcmp.ge.f32.partialorder %v1646, 0.0
      %vm1679 = vcmp.ge.f32.partialorder %v1647, 0.0
      %vm1680 = vcmp.ge.f32.partialorder %v1648, 0.0
      %vm1681 = vcmp.ge.f32.partialorder %v1649, 0.0
      %vm1682 = vcmp.ge.f32.partialorder %v1650, 0.0
      %vm1683 = vcmp.ge.f32.partialorder %v1651, 0.0
      %v1684 = vmul.f32 %v1620, 0.2
      %v1685 = vmul.f32 %v1621, 0.2
      %v1686 = vmul.f32 %v1622, 0.2
      %v1687 = vmul.f32 %v1623, 0.2
      %v1688 = vmul.f32 %v1624, 0.2
      %v1689 = vmul.f32 %v1625, 0.2
      %v1690 = vmul.f32 %v1626, 0.2
      %v1691 = vmul.f32 %v1627, 0.2
      %v1692 = vmul.f32 %v1628, 0.2
      %v1693 = vmul.f32 %v1629, 0.2
      %v1694 = vmul.f32 %v1630, 0.2
      %v1695 = vmul.f32 %v1631, 0.2
      %v1696 = vmul.f32 %v1632, 0.2
      %v1697 = vmul.f32 %v1633, 0.2
      %v1698 = vmul.f32 %v1634, 0.2
      %v1699 = vmul.f32 %v1635, 0.2
      %v1700 = vmul.f32 %v1636, 0.2
      %v1701 = vmul.f32 %v1637, 0.2
      %v1702 = vmul.f32 %v1638, 0.2
      %v1703 = vmul.f32 %v1639, 0.2
      %v1704 = vmul.f32 %v1640, 0.2
      %v1705 = vmul.f32 %v1641, 0.2
      %v1706 = vmul.f32 %v1642, 0.2
      %v1707 = vmul.f32 %v1643, 0.2
      %v1708 = vmul.f32 %v1644, 0.2
      %v1709 = vmul.f32 %v1645, 0.2
      %v1710 = vmul.f32 %v1646, 0.2
      %v1711 = vmul.f32 %v1647, 0.2
      %v1712 = vmul.f32 %v1648, 0.2
      %v1713 = vmul.f32 %v1649, 0.2
      %v1714 = vmul.f32 %v1650, 0.2
      %v1715 = vmul.f32 %v1651, 0.2
      %v1716 = vsel %vm1652, %v1620, %v1684
      %v1717 = vsel %vm1653, %v1621, %v1685
      %v1718 = vsel %vm1654, %v1622, %v1686
      %v1719 = vsel %vm1655, %v1623, %v1687
      %v1720 = vsel %vm1656, %v1624, %v1688
      %v1721 = vsel %vm1657, %v1625, %v1689
      %v1722 = vsel %vm1658, %v1626, %v1690
      %v1723 = vsel %vm1659, %v1627, %v1691
      %v1724 = vsel %vm1660, %v1628, %v1692
      %v1725 = vsel %vm1661, %v1629, %v1693
      %v1726 = vsel %vm1662, %v1630, %v1694
      %v1727 = vsel %vm1663, %v1631, %v1695
      %v1728 = vsel %vm1664, %v1632, %v1696
      %v1729 = vsel %vm1665, %v1633, %v1697
      %v1730 = vsel %vm1666, %v1634, %v1698
      %v1731 = vsel %vm1667, %v1635, %v1699
      %v1732 = vsel %vm1668, %v1636, %v1700
      %v1733 = vsel %vm1669, %v1637, %v1701
      %v1734 = vsel %vm1670, %v1638, %v1702
      %v1735 = vsel %vm1671, %v1639, %v1703
      %v1736 = vsel %vm1672, %v1640, %v1704
      %v1737 = vsel %vm1673, %v1641, %v1705
      %v1738 = vsel %vm1674, %v1642, %v1706
      %v1739 = vsel %vm1675, %v1643, %v1707
      %v1740 = vsel %vm1676, %v1644, %v1708
      %v1741 = vsel %vm1677, %v1645, %v1709
      %v1742 = vsel %vm1678, %v1646, %v1710
      %v1743 = vsel %vm1679, %v1647, %v1711
      %v1744 = vsel %vm1680, %v1648, %v1712
      %v1745 = vsel %vm1681, %v1649, %v1713
      %v1746 = vsel %vm1682, %v1650, %v1714
      %v1747 = vsel %vm1683, %v1651, %v1715
      %v1748 = vadd.f32 %v1516, %v1552
      %v1749 = vadd.f32 %v1517, %v1553
      %v1750 = vadd.f32 %v1518, %v1554
      %v1751 = vadd.f32 %v1519, %v1555
      %v1752 = vadd.f32 %v1520, %v1556
      %v1753 = vadd.f32 %v1521, %v1557
      %v1754 = vadd.f32 %v1522, %v1558
      %v1755 = vadd.f32 %v1523, %v1559
      %v1756 = vadd.f32 %v1524, %v1560
      %v1757 = vadd.f32 %v1525, %v1561
      %v1758 = vadd.f32 %v1526, %v1562
      %v1759 = vadd.f32 %v1527, %v1563
      %v1760 = vadd.f32 %v1528, %v1564
      %v1761 = vadd.f32 %v1529, %v1565
      %v1762 = vadd.f32 %v1530, %v1566
      %v1763 = vadd.f32 %v1531, %v1567
      %v1764 = vadd.f32 %v1532, %v1568
      %v1765 = vadd.f32 %v1533, %v1569
      %v1766 = vadd.f32 %v1534, %v1570
      %v1767 = vadd.f32 %v1535, %v1571
      %v1768 = vadd.f32 %v1536, %v1572
      %v1769 = vadd.f32 %v1537, %v1573
      %v1770 = vadd.f32 %v1538, %v1574
      %v1771 = vadd.f32 %v1539, %v1575
      %v1772 = vadd.f32 %v1540, %v1576
      %v1773 = vadd.f32 %v1541, %v1577
      %v1774 = vadd.f32 %v1542, %v1578
      %v1775 = vadd.f32 %v1543, %v1579
      %v1776 = vadd.f32 %v1544, %v1580
      %v1777 = vadd.f32 %v1545, %v1581
      %v1778 = vadd.f32 %v1546, %v1582
      %v1779 = vadd.f32 %v1547, %v1583
      %vm1780 = vcmp.ge.f32.partialorder %v1748, 0.0
      %vm1781 = vcmp.ge.f32.partialorder %v1749, 0.0
      %vm1782 = vcmp.ge.f32.partialorder %v1750, 0.0
      %vm1783 = vcmp.ge.f32.partialorder %v1751, 0.0
      %vm1784 = vcmp.ge.f32.partialorder %v1752, 0.0
      %vm1785 = vcmp.ge.f32.partialorder %v1753, 0.0
      %vm1786 = vcmp.ge.f32.partialorder %v1754, 0.0
      %vm1787 = vcmp.ge.f32.partialorder %v1755, 0.0
      %vm1788 = vcmp.ge.f32.partialorder %v1756, 0.0
      %vm1789 = vcmp.ge.f32.partialorder %v1757, 0.0
      %vm1790 = vcmp.ge.f32.partialorder %v1758, 0.0
      %vm1791 = vcmp.ge.f32.partialorder %v1759, 0.0
      %vm1792 = vcmp.ge.f32.partialorder %v1760, 0.0
      %vm1793 = vcmp.ge.f32.partialorder %v1761, 0.0
      %vm1794 = vcmp.ge.f32.partialorder %v1762, 0.0
      %vm1795 = vcmp.ge.f32.partialorder %v1763, 0.0
      %vm1796 = vcmp.ge.f32.partialorder %v1764, 0.0
      %vm1797 = vcmp.ge.f32.partialorder %v1765, 0.0
      %vm1798 = vcmp.ge.f32.partialorder %v1766, 0.0
      %vm1799 = vcmp.ge.f32.partialorder %v1767, 0.0
      %vm1800 = vcmp.ge.f32.partialorder %v1768, 0.0
      %vm1801 = vcmp.ge.f32.partialorder %v1769, 0.0
      %vm1802 = vcmp.ge.f32.partialorder %v1770, 0.0
      %vm1803 = vcmp.ge.f32.partialorder %v1771, 0.0
      %vm1804 = vcmp.ge.f32.partialorder %v1772, 0.0
      %vm1805 = vcmp.ge.f32.partialorder %v1773, 0.0
      %vm1806 = vcmp.ge.f32.partialorder %v1774, 0.0
      %vm1807 = vcmp.ge.f32.partialorder %v1775, 0.0
      %vm1808 = vcmp.ge.f32.partialorder %v1776, 0.0
      %vm1809 = vcmp.ge.f32.partialorder %v1777, 0.0
      %vm1810 = vcmp.ge.f32.partialorder %v1778, 0.0
      %vm1811 = vcmp.ge.f32.partialorder %v1779, 0.0
      %v1812 = vmul.f32 %v1748, 0.2
      %v1813 = vmul.f32 %v1749, 0.2
      %v1814 = vmul.f32 %v1750, 0.2
      %v1815 = vmul.f32 %v1751, 0.2
      %v1816 = vmul.f32 %v1752, 0.2
      %v1817 = vmul.f32 %v1753, 0.2
      %v1818 = vmul.f32 %v1754, 0.2
      %v1819 = vmul.f32 %v1755, 0.2
      %v1820 = vmul.f32 %v1756, 0.2
      %v1821 = vmul.f32 %v1757, 0.2
      %v1822 = vmul.f32 %v1758, 0.2
      %v1823 = vmul.f32 %v1759, 0.2
      %v1824 = vmul.f32 %v1760, 0.2
      %v1825 = vmul.f32 %v1761, 0.2
      %v1826 = vmul.f32 %v1762, 0.2
      %v1827 = vmul.f32 %v1763, 0.2
      %v1828 = vmul.f32 %v1764, 0.2
      %v1829 = vmul.f32 %v1765, 0.2
      %v1830 = vmul.f32 %v1766, 0.2
      %v1831 = vmul.f32 %v1767, 0.2
      %v1832 = vmul.f32 %v1768, 0.2
      %v1833 = vmul.f32 %v1769, 0.2
      %v1834 = vmul.f32 %v1770, 0.2
      %v1835 = vmul.f32 %v1771, 0.2
      %v1836 = vmul.f32 %v1772, 0.2
      %v1837 = vmul.f32 %v1773, 0.2
      %v1838 = vmul.f32 %v1774, 0.2
      %v1839 = vmul.f32 %v1775, 0.2
      %v1840 = vmul.f32 %v1776, 0.2
      %v1841 = vmul.f32 %v1777, 0.2
      %v1842 = vmul.f32 %v1778, 0.2
      %v1843 = vmul.f32 %v1779, 0.2
      %v1844 = vsel %vm1780, %v1748, %v1812
      %v1845 = vsel %vm1781, %v1749, %v1813
      %v1846 = vsel %vm1782, %v1750, %v1814
      %v1847 = vsel %vm1783, %v1751, %v1815
      %v1848 = vsel %vm1784, %v1752, %v1816
      %v1849 = vsel %vm1785, %v1753, %v1817
      %v1850 = vsel %vm1786, %v1754, %v1818
      %v1851 = vsel %vm1787, %v1755, %v1819
      %v1852 = vsel %vm1788, %v1756, %v1820
      %v1853 = vsel %vm1789, %v1757, %v1821
      %v1854 = vsel %vm1790, %v1758, %v1822
      %v1855 = vsel %vm1791, %v1759, %v1823
      %v1856 = vsel %vm1792, %v1760, %v1824
      %v1857 = vsel %vm1793, %v1761, %v1825
      %v1858 = vsel %vm1794, %v1762, %v1826
      %v1859 = vsel %vm1795, %v1763, %v1827
      %v1860 = vsel %vm1796, %v1764, %v1828
      %v1861 = vsel %vm1797, %v1765, %v1829
      %v1862 = vsel %vm1798, %v1766, %v1830
      %v1863 = vsel %vm1799, %v1767, %v1831
      %v1864 = vsel %vm1800, %v1768, %v1832
      %v1865 = vsel %vm1801, %v1769, %v1833
      %v1866 = vsel %vm1802, %v1770, %v1834
      %v1867 = vsel %vm1803, %v1771, %v1835
      %v1868 = vsel %vm1804, %v1772, %v1836
      %v1869 = vsel %vm1805, %v1773, %v1837
      %v1870 = vsel %vm1806, %v1774, %v1838
      %v1871 = vsel %vm1807, %v1775, %v1839
      %v1872 = vsel %vm1808, %v1776, %v1840
      %v1873 = vsel %vm1809, %v1777, %v1841
      %v1874 = vsel %vm1810, %v1778, %v1842
      %v1875 = vsel %vm1811, %v1779, %v1843
      %v1876 = vadd.f32 %v1516, %v1588
      %v1877 = vadd.f32 %v1517, %v1589
      %v1878 = vadd.f32 %v1518, %v1590
      %v1879 = vadd.f32 %v1519, %v1591
      %v1880 = vadd.f32 %v1520, %v1592
      %v1881 = vadd.f32 %v1521, %v1593
      %v1882 = vadd.f32 %v1522, %v1594
      %v1883 = vadd.f32 %v1523, %v1595
      %v1884 = vadd.f32 %v1524, %v1596
      %v1885 = vadd.f32 %v1525, %v1597
      %v1886 = vadd.f32 %v1526, %v1598
      %v1887 = vadd.f32 %v1527, %v1599
      %v1888 = vadd.f32 %v1528, %v1600
      %v1889 = vadd.f32 %v1529, %v1601
      %v1890 = vadd.f32 %v1530, %v1602
      %v1891 = vadd.f32 %v1531, %v1603
      %v1892 = vadd.f32 %v1532, %v1604
      %v1893 = vadd.f32 %v1533, %v1605
      %v1894 = vadd.f32 %v1534, %v1606
      %v1895 = vadd.f32 %v1535, %v1607
      %v1896 = vadd.f32 %v1536, %v1608
      %v1897 = vadd.f32 %v1537, %v1609
      %v1898 = vadd.f32 %v1538, %v1610
      %v1899 = vadd.f32 %v1539, %v1611
      %v1900 = vadd.f32 %v1540, %v1612
      %v1901 = vadd.f32 %v1541, %v1613
      %v1902 = vadd.f32 %v1542, %v1614
      %v1903 = vadd.f32 %v1543, %v1615
      %v1904 = vadd.f32 %v1544, %v1616
      %v1905 = vadd.f32 %v1545, %v1617
      %v1906 = vadd.f32 %v1546, %v1618
      %v1907 = vadd.f32 %v1547, %v1619
      %vm1908 = vcmp.ge.f32.partialorder %v1876, 0.0
      %vm1909 = vcmp.ge.f32.partialorder %v1877, 0.0
      %vm1910 = vcmp.ge.f32.partialorder %v1878, 0.0
      %vm1911 = vcmp.ge.f32.partialorder %v1879, 0.0
      %vm1912 = vcmp.ge.f32.partialorder %v1880, 0.0
      %vm1913 = vcmp.ge.f32.partialorder %v1881, 0.0
      %vm1914 = vcmp.ge.f32.partialorder %v1882, 0.0
      %vm1915 = vcmp.ge.f32.partialorder %v1883, 0.0
      %vm1916 = vcmp.ge.f32.partialorder %v1884, 0.0
      %vm1917 = vcmp.ge.f32.partialorder %v1885, 0.0
      %vm1918 = vcmp.ge.f32.partialorder %v1886, 0.0
      %vm1919 = vcmp.ge.f32.partialorder %v1887, 0.0
      %vm1920 = vcmp.ge.f32.partialorder %v1888, 0.0
      %vm1921 = vcmp.ge.f32.partialorder %v1889, 0.0
      %vm1922 = vcmp.ge.f32.partialorder %v1890, 0.0
      %vm1923 = vcmp.ge.f32.partialorder %v1891, 0.0
      %vm1924 = vcmp.ge.f32.partialorder %v1892, 0.0
      %vm1925 = vcmp.ge.f32.partialorder %v1893, 0.0
      %vm1926 = vcmp.ge.f32.partialorder %v1894, 0.0
      %vm1927 = vcmp.ge.f32.partialorder %v1895, 0.0
      %vm1928 = vcmp.ge.f32.partialorder %v1896, 0.0
      %vm1929 = vcmp.ge.f32.partialorder %v1897, 0.0
      %vm1930 = vcmp.ge.f32.partialorder %v1898, 0.0
      %vm1931 = vcmp.ge.f32.partialorder %v1899, 0.0
      %vm1932 = vcmp.ge.f32.partialorder %v1900, 0.0
      %vm1933 = vcmp.ge.f32.partialorder %v1901, 0.0
      %vm1934 = vcmp.ge.f32.partialorder %v1902, 0.0
      %vm1935 = vcmp.ge.f32.partialorder %v1903, 0.0
      %vm1936 = vcmp.ge.f32.partialorder %v1904, 0.0
      %vm1937 = vcmp.ge.f32.partialorder %v1905, 0.0
      %vm1938 = vcmp.ge.f32.partialorder %v1906, 0.0
      %vm1939 = vcmp.ge.f32.partialorder %v1907, 0.0
      %v1940 = vmul.f32 %v1876, 0.2
      %v1941 = vmul.f32 %v1877, 0.2
      %v1942 = vmul.f32 %v1878, 0.2
      %v1943 = vmul.f32 %v1879, 0.2
      %v1944 = vmul.f32 %v1880, 0.2
      %v1945 = vmul.f32 %v1881, 0.2
      %v1946 = vmul.f32 %v1882, 0.2
      %v1947 = vmul.f32 %v1883, 0.2
      %v1948 = vmul.f32 %v1884, 0.2
      %v1949 = vmul.f32 %v1885, 0.2
      %v1950 = vmul.f32 %v1886, 0.2
      %v1951 = vmul.f32 %v1887, 0.2
      %v1952 = vmul.f32 %v1888, 0.2
      %v1953 = vmul.f32 %v1889, 0.2
      %v1954 = vmul.f32 %v1890, 0.2
      %v1955 = vmul.f32 %v1891, 0.2
      %v1956 = vmul.f32 %v1892, 0.2
      %v1957 = vmul.f32 %v1893, 0.2
      %v1958 = vmul.f32 %v1894, 0.2
      %v1959 = vmul.f32 %v1895, 0.2
      %v1960 = vmul.f32 %v1896, 0.2
      %v1961 = vmul.f32 %v1897, 0.2
      %v1962 = vmul.f32 %v1898, 0.2
      %v1963 = vmul.f32 %v1899, 0.2
      %v1964 = vmul.f32 %v1900, 0.2
      %v1965 = vmul.f32 %v1901, 0.2
      %v1966 = vmul.f32 %v1902, 0.2
      %v1967 = vmul.f32 %v1903, 0.2
      %v1968 = vmul.f32 %v1904, 0.2
      %v1969 = vmul.f32 %v1905, 0.2
      %v1970 = vmul.f32 %v1906, 0.2
      %v1971 = vmul.f32 %v1907, 0.2
      %v1972 = vsel %vm1908, %v1876, %v1940
      %v1973 = vsel %vm1909, %v1877, %v1941
      %v1974 = vsel %vm1910, %v1878, %v1942
      %v1975 = vsel %vm1911, %v1879, %v1943
      %v1976 = vsel %vm1912, %v1880, %v1944
      %v1977 = vsel %vm1913, %v1881, %v1945
      %v1978 = vsel %vm1914, %v1882, %v1946
      %v1979 = vsel %vm1915, %v1883, %v1947
      %v1980 = vsel %vm1916, %v1884, %v1948
      %v1981 = vsel %vm1917, %v1885, %v1949
      %v1982 = vsel %vm1918, %v1886, %v1950
      %v1983 = vsel %vm1919, %v1887, %v1951
      %v1984 = vsel %vm1920, %v1888, %v1952
      %v1985 = vsel %vm1921, %v1889, %v1953
      %v1986 = vsel %vm1922, %v1890, %v1954
      %v1987 = vsel %vm1923, %v1891, %v1955
      %v1988 = vsel %vm1924, %v1892, %v1956
      %v1989 = vsel %vm1925, %v1893, %v1957
      %v1990 = vsel %vm1926, %v1894, %v1958
      %v1991 = vsel %vm1927, %v1895, %v1959
      %v1992 = vsel %vm1928, %v1896, %v1960
      %v1993 = vsel %vm1929, %v1897, %v1961
      %v1994 = vsel %vm1930, %v1898, %v1962
      %v1995 = vsel %vm1931, %v1899, %v1963
      %v1996 = vsel %vm1932, %v1900, %v1964
      %v1997 = vsel %vm1933, %v1901, %v1965
      %v1998 = vsel %vm1934, %v1902, %v1966
      %v1999 = vsel %vm1935, %v1903, %v1967
      %v2000 = vsel %vm1936, %v1904, %v1968
      %v2001 = vsel %vm1937, %v1905, %v1969
      %v2002 = vsel %vm1938, %v1906, %v1970
      %v2003 = vsel %vm1939, %v1907, %v1971
      %v2004 = vmax.f32 %v1716, %v1844
      %v2005 = vmax.f32 %v1717, %v1845
      %v2006 = vmax.f32 %v1718, %v1846
      %v2007 = vmax.f32 %v1719, %v1847
      %v2008 = vmax.f32 %v1720, %v1848
      %v2009 = vmax.f32 %v1721, %v1849
      %v2010 = vmax.f32 %v1722, %v1850
      %v2011 = vmax.f32 %v1723, %v1851
      %v2012 = vmax.f32 %v1724, %v1852
      %v2013 = vmax.f32 %v1725, %v1853
      %v2014 = vmax.f32 %v1726, %v1854
      %v2015 = vmax.f32 %v1727, %v1855
      %v2016 = vmax.f32 %v1728, %v1856
      %v2017 = vmax.f32 %v1729, %v1857
      %v2018 = vmax.f32 %v1730, %v1858
      %v2019 = vmax.f32 %v1731, %v1859
      %v2020 = vmax.f32 %v1732, %v1860
      %v2021 = vmax.f32 %v1733, %v1861
      %v2022 = vmax.f32 %v1734, %v1862
      %v2023 = vmax.f32 %v1735, %v1863
      %v2024 = vmax.f32 %v1736, %v1864
      %v2025 = vmax.f32 %v1737, %v1865
      %v2026 = vmax.f32 %v1738, %v1866
      %v2027 = vmax.f32 %v1739, %v1867
      %v2028 = vmax.f32 %v1740, %v1868
      %v2029 = vmax.f32 %v1741, %v1869
      %v2030 = vmax.f32 %v1742, %v1870
      %v2031 = vmax.f32 %v1743, %v1871
      %v2032 = vmax.f32 %v1744, %v1872
      %v2033 = vmax.f32 %v1745, %v1873
      %v2034 = vmax.f32 %v1746, %v1874
      %v2035 = vmax.f32 %v1747, %v1875
      %v2036 = vmax.f32 %v2004, %v1972
      %v2037 = vmax.f32 %v2005, %v1973
      %v2038 = vmax.f32 %v2006, %v1974
      %v2039 = vmax.f32 %v2007, %v1975
      %v2040 = vmax.f32 %v2008, %v1976
      %v2041 = vmax.f32 %v2009, %v1977
      %v2042 = vmax.f32 %v2010, %v1978
      %v2043 = vmax.f32 %v2011, %v1979
      %v2044 = vmax.f32 %v2012, %v1980
      %v2045 = vmax.f32 %v2013, %v1981
      %v2046 = vmax.f32 %v2014, %v1982
      %v2047 = vmax.f32 %v2015, %v1983
      %v2048 = vmax.f32 %v2016, %v1984
      %v2049 = vmax.f32 %v2017, %v1985
      %v2050 = vmax.f32 %v2018, %v1986
      %v2051 = vmax.f32 %v2019, %v1987
      %v2052 = vmax.f32 %v2020, %v1988
      %v2053 = vmax.f32 %v2021, %v1989
      %v2054 = vmax.f32 %v2022, %v1990
      %v2055 = vmax.f32 %v2023, %v1991
      %v2056 = vmax.f32 %v2024, %v1992
      %v2057 = vmax.f32 %v2025, %v1993
      %v2058 = vmax.f32 %v2026, %v1994
      %v2059 = vmax.f32 %v2027, %v1995
      %v2060 = vmax.f32 %v2028, %v1996
      %v2061 = vmax.f32 %v2029, %v1997
      %v2062 = vmax.f32 %v2030, %v1998
      %v2063 = vmax.f32 %v2031, %v1999
      %v2064 = vmax.f32 %v2032, %v2000
      %v2065 = vmax.f32 %v2033, %v2001
      %v2066 = vmax.f32 %v2034, %v2002
      %v2067 = vmax.f32 %v2035, %v2003
      %v2068 = vsub.f32 %v1716, %v2036
      %v2069 = vsub.f32 %v1717, %v2037
      %v2070 = vsub.f32 %v1718, %v2038
      %v2071 = vsub.f32 %v1719, %v2039
      %v2072 = vsub.f32 %v1720, %v2040
      %v2073 = vsub.f32 %v1721, %v2041
      %v2074 = vsub.f32 %v1722, %v2042
      %v2075 = vsub.f32 %v1723, %v2043
      %v2076 = vsub.f32 %v1724, %v2044
      %v2077 = vsub.f32 %v1725, %v2045
      %v2078 = vsub.f32 %v1726, %v2046
      %v2079 = vsub.f32 %v1727, %v2047
      %v2080 = vsub.f32 %v1728, %v2048
      %v2081 = vsub.f32 %v1729, %v2049
      %v2082 = vsub.f32 %v1730, %v2050
      %v2083 = vsub.f32 %v1731, %v2051
      %v2084 = vsub.f32 %v1732, %v2052
      %v2085 = vsub.f32 %v1733, %v2053
      %v2086 = vsub.f32 %v1734, %v2054
      %v2087 = vsub.f32 %v1735, %v2055
      %v2088 = vsub.f32 %v1736, %v2056
      %v2089 = vsub.f32 %v1737, %v2057
      %v2090 = vsub.f32 %v1738, %v2058
      %v2091 = vsub.f32 %v1739, %v2059
      %v2092 = vsub.f32 %v1740, %v2060
      %v2093 = vsub.f32 %v1741, %v2061
      %v2094 = vsub.f32 %v1742, %v2062
      %v2095 = vsub.f32 %v1743, %v2063
      %v2096 = vsub.f32 %v1744, %v2064
      %v2097 = vsub.f32 %v1745, %v2065
      %v2098 = vsub.f32 %v1746, %v2066
      %v2099 = vsub.f32 %v1747, %v2067
      %v2100 = vmul.f32 %v2068, 1.442695
      %v2101 = vpow.pop %v2100
      %v2102 = vmul.f32 %v2069, 1.442695
      %v2103 = vpow.pop %v2102
      %v2104 = vmul.f32 %v2070, 1.442695
      %v2105 = vpow.pop %v2104
      %v2106 = vmul.f32 %v2071, 1.442695
      %v2107 = vpow.pop %v2106
      %v2108 = vmul.f32 %v2072, 1.442695
      %v2109 = vpow.pop %v2108
      %v2110 = vmul.f32 %v2073, 1.442695
      %v2111 = vpow.pop %v2110
      %v2112 = vmul.f32 %v2074, 1.442695
      %v2113 = vpow.pop %v2112
      %v2114 = vmul.f32 %v2075, 1.442695
      %v2115 = vpow.pop %v2114
      %v2116 = vmul.f32 %v2076, 1.442695
      %v2117 = vpow.pop %v2116
      %v2118 = vmul.f32 %v2077, 1.442695
      %v2119 = vpow.pop %v2118
      %v2120 = vmul.f32 %v2078, 1.442695
      %v2121 = vpow.pop %v2120
      %v2122 = vmul.f32 %v2079, 1.442695
      %v2123 = vpow.pop %v2122
      %v2124 = vmul.f32 %v2080, 1.442695
      %v2125 = vpow.pop %v2124
      %v2126 = vmul.f32 %v2081, 1.442695
      %v2127 = vpow.pop %v2126
      %v2128 = vmul.f32 %v2082, 1.442695
      %v2129 = vpow.pop %v2128
      %v2130 = vmul.f32 %v2083, 1.442695
      %v2131 = vpow.pop %v2130
      %v2132 = vmul.f32 %v2084, 1.442695
      %v2133 = vpow.pop %v2132
      %v2134 = vmul.f32 %v2085, 1.442695
      %v2135 = vpow.pop %v2134
      %v2136 = vmul.f32 %v2086, 1.442695
      %v2137 = vpow.pop %v2136
      %v2138 = vmul.f32 %v2087, 1.442695
      %v2139 = vpow.pop %v2138
      %v2140 = vmul.f32 %v2088, 1.442695
      %v2141 = vpow.pop %v2140
      %v2142 = vmul.f32 %v2089, 1.442695
      %v2143 = vpow.pop %v2142
      %v2144 = vmul.f32 %v2090, 1.442695
      %v2145 = vpow.pop %v2144
      %v2146 = vmul.f32 %v2091, 1.442695
      %v2147 = vpow.pop %v2146
      %v2148 = vmul.f32 %v2092, 1.442695
      %v2149 = vpow.pop %v2148
      %v2150 = vmul.f32 %v2093, 1.442695
      %v2151 = vpow.pop %v2150
      %v2152 = vmul.f32 %v2094, 1.442695
      %v2153 = vpow.pop %v2152
      %v2154 = vmul.f32 %v2095, 1.442695
      %v2155 = vpow.pop %v2154
      %v2156 = vmul.f32 %v2096, 1.442695
      %v2157 = vpow.pop %v2156
      %v2158 = vmul.f32 %v2097, 1.442695
      %v2159 = vpow.pop %v2158
      %v2160 = vmul.f32 %v2098, 1.442695
      %v2161 = vpow.pop %v2160
      %v2162 = vmul.f32 %v2099, 1.442695
      %v2163 = vpow.pop %v2162
      %v2164 = vsub.f32 %v1844, %v2036
      %v2165 = vsub.f32 %v1845, %v2037
      %v2166 = vsub.f32 %v1846, %v2038
      %v2167 = vsub.f32 %v1847, %v2039
      %v2168 = vsub.f32 %v1848, %v2040
      %v2169 = vsub.f32 %v1849, %v2041
      %v2170 = vsub.f32 %v1850, %v2042
      %v2171 = vsub.f32 %v1851, %v2043
      %v2172 = vsub.f32 %v1852, %v2044
      %v2173 = vsub.f32 %v1853, %v2045
      %v2174 = vsub.f32 %v1854, %v2046
      %v2175 = vsub.f32 %v1855, %v2047
      %v2176 = vsub.f32 %v1856, %v2048
      %v2177 = vsub.f32 %v1857, %v2049
      %v2178 = vsub.f32 %v1858, %v2050
      %v2179 = vsub.f32 %v1859, %v2051
      %v2180 = vsub.f32 %v1860, %v2052
      %v2181 = vsub.f32 %v1861, %v2053
      %v2182 = vsub.f32 %v1862, %v2054
      %v2183 = vsub.f32 %v1863, %v2055
      %v2184 = vsub.f32 %v1864, %v2056
      %v2185 = vsub.f32 %v1865, %v2057
      %v2186 = vsub.f32 %v1866, %v2058
      %v2187 = vsub.f32 %v1867, %v2059
      %v2188 = vsub.f32 %v1868, %v2060
      %v2189 = vsub.f32 %v1869, %v2061
      %v2190 = vsub.f32 %v1870, %v2062
      %v2191 = vsub.f32 %v1871, %v2063
      %v2192 = vsub.f32 %v1872, %v2064
      %v2193 = vsub.f32 %v1873, %v2065
      %v2194 = vsub.f32 %v1874, %v2066
      %v2195 = vsub.f32 %v1875, %v2067
      %v2196 = vmul.f32 %v2164, 1.442695
      %v2197 = vpow.pop %v2196
      %v2198 = vmul.f32 %v2165, 1.442695
      %v2199 = vpow.pop %v2198
      %v2200 = vmul.f32 %v2166, 1.442695
      %v2201 = vpow.pop %v2200
      %v2202 = vmul.f32 %v2167, 1.442695
      %v2203 = vpow.pop %v2202
      %v2204 = vmul.f32 %v2168, 1.442695
      %v2205 = vpow.pop %v2204
      %v2206 = vmul.f32 %v2169, 1.442695
      %v2207 = vpow.pop %v2206
      %v2208 = vmul.f32 %v2170, 1.442695
      %v2209 = vpow.pop %v2208
      %v2210 = vmul.f32 %v2171, 1.442695
      %v2211 = vpow.pop %v2210
      %v2212 = vmul.f32 %v2172, 1.442695
      %v2213 = vpow.pop %v2212
      %v2214 = vmul.f32 %v2173, 1.442695
      %v2215 = vpow.pop %v2214
      %v2216 = vmul.f32 %v2174, 1.442695
      %v2217 = vpow.pop %v2216
      %v2218 = vmul.f32 %v2175, 1.442695
      %v2219 = vpow.pop %v2218
      %v2220 = vmul.f32 %v2176, 1.442695
      %v2221 = vpow.pop %v2220
      %v2222 = vmul.f32 %v2177, 1.442695
      %v2223 = vpow.pop %v2222
      %v2224 = vmul.f32 %v2178, 1.442695
      %v2225 = vpow.pop %v2224
      %v2226 = vmul.f32 %v2179, 1.442695
      %v2227 = vpow.pop %v2226
      %v2228 = vmul.f32 %v2180, 1.442695
      %v2229 = vpow.pop %v2228
      %v2230 = vmul.f32 %v2181, 1.442695
      %v2231 = vpow.pop %v2230
      %v2232 = vmul.f32 %v2182, 1.442695
      %v2233 = vpow.pop %v2232
      %v2234 = vmul.f32 %v2183, 1.442695
      %v2235 = vpow.pop %v2234
      %v2236 = vmul.f32 %v2184, 1.442695
      %v2237 = vpow.pop %v2236
      %v2238 = vmul.f32 %v2185, 1.442695
      %v2239 = vpow.pop %v2238
      %v2240 = vmul.f32 %v2186, 1.442695
      %v2241 = vpow.pop %v2240
      %v2242 = vmul.f32 %v2187, 1.442695
      %v2243 = vpow.pop %v2242
      %v2244 = vmul.f32 %v2188, 1.442695
      %v2245 = vpow.pop %v2244
      %v2246 = vmul.f32 %v2189, 1.442695
      %v2247 = vpow.pop %v2246
      %v2248 = vmul.f32 %v2190, 1.442695
      %v2249 = vpow.pop %v2248
      %v2250 = vmul.f32 %v2191, 1.442695
      %v2251 = vpow.pop %v2250
      %v2252 = vmul.f32 %v2192, 1.442695
      %v2253 = vpow.pop %v2252
      %v2254 = vmul.f32 %v2193, 1.442695
      %v2255 = vpow.pop %v2254
      %v2256 = vmul.f32 %v2194, 1.442695
      %v2257 = vpow.pop %v2256
      %v2258 = vmul.f32 %v2195, 1.442695
      %v2259 = vpow.pop %v2258
      %v2260 = vsub.f32 %v1972, %v2036
      %v2261 = vsub.f32 %v1973, %v2037
      %v2262 = vsub.f32 %v1974, %v2038
      %v2263 = vsub.f32 %v1975, %v2039
      %v2264 = vsub.f32 %v1976, %v2040
      %v2265 = vsub.f32 %v1977, %v2041
      %v2266 = vsub.f32 %v1978, %v2042
      %v2267 = vsub.f32 %v1979, %v2043
      %v2268 = vsub.f32 %v1980, %v2044
      %v2269 = vsub.f32 %v1981, %v2045
      %v2270 = vsub.f32 %v1982, %v2046
      %v2271 = vsub.f32 %v1983, %v2047
      %v2272 = vsub.f32 %v1984, %v2048
      %v2273 = vsub.f32 %v1985, %v2049
      %v2274 = vsub.f32 %v1986, %v2050
      %v2275 = vsub.f32 %v1987, %v2051
      %v2276 = vsub.f32 %v1988, %v2052
      %v2277 = vsub.f32 %v1989, %v2053
      %v2278 = vsub.f32 %v1990, %v2054
      %v2279 = vsub.f32 %v1991, %v2055
      %v2280 = vsub.f32 %v1992, %v2056
      %v2281 = vsub.f32 %v1993, %v2057
      %v2282 = vsub.f32 %v1994, %v2058
      %v2283 = vsub.f32 %v1995, %v2059
      %v2284 = vsub.f32 %v1996, %v2060
      %v2285 = vsub.f32 %v1997, %v2061
      %v2286 = vsub.f32 %v1998, %v2062
      %v2287 = vsub.f32 %v1999, %v2063
      %v2288 = vsub.f32 %v2000, %v2064
      %v2289 = vsub.f32 %v2001, %v2065
      %v2290 = vsub.f32 %v2002, %v2066
      %v2291 = vsub.f32 %v2003, %v2067
      %v2292 = vmul.f32 %v2260, 1.442695
      %v2293 = vpow.pop %v2292
      %v2294 = vmul.f32 %v2261, 1.442695
      %v2295 = vpow.pop %v2294
      %v2296 = vmul.f32 %v2262, 1.442695
      %v2297 = vpow.pop %v2296
      %v2298 = vmul.f32 %v2263, 1.442695
      %v2299 = vpow.pop %v2298
      %v2300 = vmul.f32 %v2264, 1.442695
      %v2301 = vpow.pop %v2300
      %v2302 = vmul.f32 %v2265, 1.442695
      %v2303 = vpow.pop %v2302
      %v2304 = vmul.f32 %v2266, 1.442695
      %v2305 = vpow.pop %v2304
      %v2306 = vmul.f32 %v2267, 1.442695
      %v2307 = vpow.pop %v2306
      %v2308 = vmul.f32 %v2268, 1.442695
      %v2309 = vpow.pop %v2308
      %v2310 = vmul.f32 %v2269, 1.442695
      %v2311 = vpow.pop %v2310
      %v2312 = vmul.f32 %v2270, 1.442695
      %v2313 = vpow.pop %v2312
      %v2314 = vmul.f32 %v2271, 1.442695
      %v2315 = vpow.pop %v2314
      %v2316 = vmul.f32 %v2272, 1.442695
      %v2317 = vpow.pop %v2316
      %v2318 = vmul.f32 %v2273, 1.442695
      %v2319 = vpow.pop %v2318
      %v2320 = vmul.f32 %v2274, 1.442695
      %v2321 = vpow.pop %v2320
      %v2322 = vmul.f32 %v2275, 1.442695
      %v2323 = vpow.pop %v2322
      %v2324 = vmul.f32 %v2276, 1.442695
      %v2325 = vpow.pop %v2324
      %v2326 = vmul.f32 %v2277, 1.442695
      %v2327 = vpow.pop %v2326
      %v2328 = vmul.f32 %v2278, 1.442695
      %v2329 = vpow.pop %v2328
      %v2330 = vmul.f32 %v2279, 1.442695
      %v2331 = vpow.pop %v2330
      %v2332 = vmul.f32 %v2280, 1.442695
      %v2333 = vpow.pop %v2332
      %v2334 = vmul.f32 %v2281, 1.442695
      %v2335 = vpow.pop %v2334
      %v2336 = vmul.f32 %v2282, 1.442695
      %v2337 = vpow.pop %v2336
      %v2338 = vmul.f32 %v2283, 1.442695
      %v2339 = vpow.pop %v2338
      %v2340 = vmul.f32 %v2284, 1.442695
      %v2341 = vpow.pop %v2340
      %v2342 = vmul.f32 %v2285, 1.442695
      %v2343 = vpow.pop %v2342
      %v2344 = vmul.f32 %v2286, 1.442695
      %v2345 = vpow.pop %v2344
      %v2346 = vmul.f32 %v2287, 1.442695
      %v2347 = vpow.pop %v2346
      %v2348 = vmul.f32 %v2288, 1.442695
      %v2349 = vpow.pop %v2348
      %v2350 = vmul.f32 %v2289, 1.442695
      %v2351 = vpow.pop %v2350
      %v2352 = vmul.f32 %v2290, 1.442695
      %v2353 = vpow.pop %v2352
      %v2354 = vmul.f32 %v2291, 1.442695
      %v2355 = vpow.pop %v2354
      %v2356 = vmul.f32 %v1415, %v2101
      %v2357 = vmul.f32 %v1416, %v2103
      %v2358 = vmul.f32 %v1417, %v2105
      %v2359 = vmul.f32 %v1418, %v2107
      %v2360 = vmul.f32 %v1419, %v2109
      %v2361 = vmul.f32 %v1420, %v2111
      %v2362 = vmul.f32 %v1421, %v2113
      %v2363 = vmul.f32 %v1422, %v2115
      %v2364 = vmul.f32 %v1423, %v2117
      %v2365 = vmul.f32 %v1424, %v2119
      %v2366 = vmul.f32 %v1425, %v2121
      %v2367 = vmul.f32 %v1426, %v2123
      %v2368 = vmul.f32 %v1427, %v2125
      %v2369 = vmul.f32 %v1428, %v2127
      %v2370 = vmul.f32 %v1429, %v2129
      %v2371 = vmul.f32 %v1430, %v2131
      %v2372 = vmul.f32 %v1431, %v2133
      %v2373 = vmul.f32 %v1432, %v2135
      %v2374 = vmul.f32 %v1433, %v2137
      %v2375 = vmul.f32 %v1434, %v2139
      %v2376 = vmul.f32 %v1435, %v2141
      %v2377 = vmul.f32 %v1436, %v2143
      %v2378 = vmul.f32 %v1437, %v2145
      %v2379 = vmul.f32 %v1438, %v2147
      %v2380 = vmul.f32 %v1439, %v2149
      %v2381 = vmul.f32 %v1440, %v2151
      %v2382 = vmul.f32 %v1441, %v2153
      %v2383 = vmul.f32 %v1442, %v2155
      %v2384 = vmul.f32 %v1443, %v2157
      %v2385 = vmul.f32 %v1444, %v2159
      %v2386 = vmul.f32 %v1445, %v2161
      %v2387 = vmul.f32 %v1446, %v2163
      %v2388 = vadd.f32 %v2101, %v2197
      %v2389 = vadd.f32 %v2103, %v2199
      %v2390 = vadd.f32 %v2105, %v2201
      %v2391 = vadd.f32 %v2107, %v2203
      %v2392 = vadd.f32 %v2109, %v2205
      %v2393 = vadd.f32 %v2111, %v2207
      %v2394 = vadd.f32 %v2113, %v2209
      %v2395 = vadd.f32 %v2115, %v2211
      %v2396 = vadd.f32 %v2117, %v2213
      %v2397 = vadd.f32 %v2119, %v2215
      %v2398 = vadd.f32 %v2121, %v2217
      %v2399 = vadd.f32 %v2123, %v2219
      %v2400 = vadd.f32 %v2125, %v2221
      %v2401 = vadd.f32 %v2127, %v2223
      %v2402 = vadd.f32 %v2129, %v2225
      %v2403 = vadd.f32 %v2131, %v2227
      %v2404 = vadd.f32 %v2133, %v2229
      %v2405 = vadd.f32 %v2135, %v2231
      %v2406 = vadd.f32 %v2137, %v2233
      %v2407 = vadd.f32 %v2139, %v2235
      %v2408 = vadd.f32 %v2141, %v2237
      %v2409 = vadd.f32 %v2143, %v2239
      %v2410 = vadd.f32 %v2145, %v2241
      %v2411 = vadd.f32 %v2147, %v2243
      %v2412 = vadd.f32 %v2149, %v2245
      %v2413 = vadd.f32 %v2151, %v2247
      %v2414 = vadd.f32 %v2153, %v2249
      %v2415 = vadd.f32 %v2155, %v2251
      %v2416 = vadd.f32 %v2157, %v2253
      %v2417 = vadd.f32 %v2159, %v2255
      %v2418 = vadd.f32 %v2161, %v2257
      %v2419 = vadd.f32 %v2163, %v2259
      %v2420 = vmul.f32 %v1447, %v2197
      %v2421 = vmul.f32 %v1448, %v2199
      %v2422 = vmul.f32 %v1449, %v2201
      %v2423 = vmul.f32 %v1450, %v2203
      %v2424 = vmul.f32 %v1451, %v2205
      %v2425 = vmul.f32 %v1452, %v2207
      %v2426 = vmul.f32 %v1453, %v2209
      %v2427 = vmul.f32 %v1454, %v2211
      %v2428 = vmul.f32 %v1455, %v2213
      %v2429 = vmul.f32 %v1456, %v2215
      %v2430 = vmul.f32 %v1457, %v2217
      %v2431 = vmul.f32 %v1458, %v2219
      %v2432 = vmul.f32 %v1459, %v2221
      %v2433 = vmul.f32 %v1460, %v2223
      %v2434 = vmul.f32 %v1461, %v2225
      %v2435 = vmul.f32 %v1462, %v2227
      %v2436 = vmul.f32 %v1463, %v2229
      %v2437 = vmul.f32 %v1464, %v2231
      %v2438 = vmul.f32 %v1465, %v2233
      %v2439 = vmul.f32 %v1466, %v2235
      %v2440 = vmul.f32 %v1467, %v2237
      %v2441 = vmul.f32 %v1468, %v2239
      %v2442 = vmul.f32 %v1469, %v2241
      %v2443 = vmul.f32 %v1470, %v2243
      %v2444 = vmul.f32 %v1471, %v2245
      %v2445 = vmul.f32 %v1472, %v2247
      %v2446 = vmul.f32 %v1473, %v2249
      %v2447 = vmul.f32 %v1474, %v2251
      %v2448 = vmul.f32 %v1475, %v2253
      %v2449 = vmul.f32 %v1476, %v2255
      %v2450 = vmul.f32 %v1477, %v2257
      %v2451 = vmul.f32 %v1478, %v2259
      %v2452 = vadd.f32 %v2356, %v2420
      %v2453 = vadd.f32 %v2357, %v2421
      %v2454 = vadd.f32 %v2358, %v2422
      %v2455 = vadd.f32 %v2359, %v2423
      %v2456 = vadd.f32 %v2360, %v2424
      %v2457 = vadd.f32 %v2361, %v2425
      %v2458 = vadd.f32 %v2362, %v2426
      %v2459 = vadd.f32 %v2363, %v2427
      %v2460 = vadd.f32 %v2364, %v2428
      %v2461 = vadd.f32 %v2365, %v2429
      %v2462 = vadd.f32 %v2366, %v2430
      %v2463 = vadd.f32 %v2367, %v2431
      %v2464 = vadd.f32 %v2368, %v2432
      %v2465 = vadd.f32 %v2369, %v2433
      %v2466 = vadd.f32 %v2370, %v2434
      %v2467 = vadd.f32 %v2371, %v2435
      %v2468 = vadd.f32 %v2372, %v2436
      %v2469 = vadd.f32 %v2373, %v2437
      %v2470 = vadd.f32 %v2374, %v2438
      %v2471 = vadd.f32 %v2375, %v2439
      %v2472 = vadd.f32 %v2376, %v2440
      %v2473 = vadd.f32 %v2377, %v2441
      %v2474 = vadd.f32 %v2378, %v2442
      %v2475 = vadd.f32 %v2379, %v2443
      %v2476 = vadd.f32 %v2380, %v2444
      %v2477 = vadd.f32 %v2381, %v2445
      %v2478 = vadd.f32 %v2382, %v2446
      %v2479 = vadd.f32 %v2383, %v2447
      %v2480 = vadd.f32 %v2384, %v2448
      %v2481 = vadd.f32 %v2385, %v2449
      %v2482 = vadd.f32 %v2386, %v2450
      %v2483 = vadd.f32 %v2387, %v2451
      %v2484 = vadd.f32 %v2388, %v2293
      %v2485 = vadd.f32 %v2389, %v2295
      %v2486 = vadd.f32 %v2390, %v2297
      %v2487 = vadd.f32 %v2391, %v2299
      %v2488 = vadd.f32 %v2392, %v2301
      %v2489 = vadd.f32 %v2393, %v2303
      %v2490 = vadd.f32 %v2394, %v2305
      %v2491 = vadd.f32 %v2395, %v2307
      %v2492 = vadd.f32 %v2396, %v2309
      %v2493 = vadd.f32 %v2397, %v2311
      %v2494 = vadd.f32 %v2398, %v2313
      %v2495 = vadd.f32 %v2399, %v2315
      %v2496 = vadd.f32 %v2400, %v2317
      %v2497 = vadd.f32 %v2401, %v2319
      %v2498 = vadd.f32 %v2402, %v2321
      %v2499 = vadd.f32 %v2403, %v2323
      %v2500 = vadd.f32 %v2404, %v2325
      %v2501 = vadd.f32 %v2405, %v2327
      %v2502 = vadd.f32 %v2406, %v2329
      %v2503 = vadd.f32 %v2407, %v2331
      %v2504 = vadd.f32 %v2408, %v2333
      %v2505 = vadd.f32 %v2409, %v2335
      %v2506 = vadd.f32 %v2410, %v2337
      %v2507 = vadd.f32 %v2411, %v2339
      %v2508 = vadd.f32 %v2412, %v2341
      %v2509 = vadd.f32 %v2413, %v2343
      %v2510 = vadd.f32 %v2414, %v2345
      %v2511 = vadd.f32 %v2415, %v2347
      %v2512 = vadd.f32 %v2416, %v2349
      %v2513 = vadd.f32 %v2417, %v2351
      %v2514 = vadd.f32 %v2418, %v2353
      %v2515 = vadd.f32 %v2419, %v2355
      %v2516 = vmul.f32 %v1479, %v2293
      %v2517 = vmul.f32 %v1480, %v2295
      %v2518 = vmul.f32 %v1481, %v2297
      %v2519 = vmul.f32 %v1482, %v2299
      %v2520 = vmul.f32 %v1483, %v2301
      %v2521 = vmul.f32 %v1484, %v2303
      %v2522 = vmul.f32 %v1485, %v2305
      %v2523 = vmul.f32 %v1486, %v2307
      %v2524 = vmul.f32 %v1487, %v2309
      %v2525 = vmul.f32 %v1488, %v2311
      %v2526 = vmul.f32 %v1489, %v2313
      %v2527 = vmul.f32 %v1490, %v2315
      %v2528 = vmul.f32 %v1491, %v2317
      %v2529 = vmul.f32 %v1492, %v2319
      %v2530 = vmul.f32 %v1493, %v2321
      %v2531 = vmul.f32 %v1494, %v2323
      %v2532 = vmul.f32 %v1495, %v2325
      %v2533 = vmul.f32 %v1496, %v2327
      %v2534 = vmul.f32 %v1497, %v2329
      %v2535 = vmul.f32 %v1498, %v2331
      %v2536 = vmul.f32 %v1499, %v2333
      %v2537 = vmul.f32 %v1500, %v2335
      %v2538 = vmul.f32 %v1501, %v2337
      %v2539 = vmul.f32 %v1502, %v2339
      %v2540 = vmul.f32 %v1503, %v2341
      %v2541 = vmul.f32 %v1504, %v2343
      %v2542 = vmul.f32 %v1505, %v2345
      %v2543 = vmul.f32 %v1506, %v2347
      %v2544 = vmul.f32 %v1507, %v2349
      %v2545 = vmul.f32 %v1508, %v2351
      %v2546 = vmul.f32 %v1509, %v2353
      %v2547 = vmul.f32 %v1510, %v2355
      %v2548 = vadd.f32 %v2452, %v2516
      %v2549 = vadd.f32 %v2453, %v2517
      %v2550 = vadd.f32 %v2454, %v2518
      %v2551 = vadd.f32 %v2455, %v2519
      %v2552 = vadd.f32 %v2456, %v2520
      %v2553 = vadd.f32 %v2457, %v2521
      %v2554 = vadd.f32 %v2458, %v2522
      %v2555 = vadd.f32 %v2459, %v2523
      %v2556 = vadd.f32 %v2460, %v2524
      %v2557 = vadd.f32 %v2461, %v2525
      %v2558 = vadd.f32 %v2462, %v2526
      %v2559 = vadd.f32 %v2463, %v2527
      %v2560 = vadd.f32 %v2464, %v2528
      %v2561 = vadd.f32 %v2465, %v2529
      %v2562 = vadd.f32 %v2466, %v2530
      %v2563 = vadd.f32 %v2467, %v2531
      %v2564 = vadd.f32 %v2468, %v2532
      %v2565 = vadd.f32 %v2469, %v2533
      %v2566 = vadd.f32 %v2470, %v2534
      %v2567 = vadd.f32 %v2471, %v2535
      %v2568 = vadd.f32 %v2472, %v2536
      %v2569 = vadd.f32 %v2473, %v2537
      %v2570 = vadd.f32 %v2474, %v2538
      %v2571 = vadd.f32 %v2475, %v2539
      %v2572 = vadd.f32 %v2476, %v2540
      %v2573 = vadd.f32 %v2477, %v2541
      %v2574 = vadd.f32 %v2478, %v2542
      %v2575 = vadd.f32 %v2479, %v2543
      %v2576 = vadd.f32 %v2480, %v2544
      %v2577 = vadd.f32 %v2481, %v2545
      %v2578 = vadd.f32 %v2482, %v2546
      %v2579 = vadd.f32 %v2483, %v2547
      %v2580 = vrcp.pop %v2484
      %v2581 = vrcp.pop %v2485
      %v2582 = vrcp.pop %v2486
      %v2583 = vrcp.pop %v2487
      %v2584 = vrcp.pop %v2488
      %v2585 = vrcp.pop %v2489
      %v2586 = vrcp.pop %v2490
      %v2587 = vrcp.pop %v2491
      %v2588 = vrcp.pop %v2492
      %v2589 = vrcp.pop %v2493
      %v2590 = vrcp.pop %v2494
      %v2591 = vrcp.pop %v2495
      %v2592 = vrcp.pop %v2496
      %v2593 = vrcp.pop %v2497
      %v2594 = vrcp.pop %v2498
      %v2595 = vrcp.pop %v2499
      %v2596 = vrcp.pop %v2500
      %v2597 = vrcp.pop %v2501
      %v2598 = vrcp.pop %v2502
      %v2599 = vrcp.pop %v2503
      %v2600 = vrcp.pop %v2504
      %v2601 = vrcp.pop %v2505
      %v2602 = vrcp.pop %v2506
      %v2603 = vrcp.pop %v2507
      %v2604 = vrcp.pop %v2508
      %v2605 = vrcp.pop %v2509
      %v2606 = vrcp.pop %v2510
      %v2607 = vrcp.pop %v2511
      %v2608 = vrcp.pop %v2512
      %v2609 = vrcp.pop %v2513
      %v2610 = vrcp.pop %v2514
      %v2611 = vrcp.pop %v2515
      %v2612 = vmul.f32 %v2548, %v2580
      %v2613 = vmul.f32 %v2549, %v2581
      %v2614 = vmul.f32 %v2550, %v2582
      %v2615 = vmul.f32 %v2551, %v2583
      %v2616 = vmul.f32 %v2552, %v2584
      %v2617 = vmul.f32 %v2553, %v2585
      %v2618 = vmul.f32 %v2554, %v2586
      %v2619 = vmul.f32 %v2555, %v2587
      %v2620 = vmul.f32 %v2556, %v2588
      %v2621 = vmul.f32 %v2557, %v2589
      %v2622 = vmul.f32 %v2558, %v2590
      %v2623 = vmul.f32 %v2559, %v2591
      %v2624 = vmul.f32 %v2560, %v2592
      %v2625 = vmul.f32 %v2561, %v2593
      %v2626 = vmul.f32 %v2562, %v2594
      %v2627 = vmul.f32 %v2563, %v2595
      %v2628 = vmul.f32 %v2564, %v2596
      %v2629 = vmul.f32 %v2565, %v2597
      %v2630 = vmul.f32 %v2566, %v2598
      %v2631 = vmul.f32 %v2567, %v2599
      %v2632 = vmul.f32 %v2568, %v2600
      %v2633 = vmul.f32 %v2569, %v2601
      %v2634 = vmul.f32 %v2570, %v2602
      %v2635 = vmul.f32 %v2571, %v2603
      %v2636 = vmul.f32 %v2572, %v2604
      %v2637 = vmul.f32 %v2573, %v2605
      %v2638 = vmul.f32 %v2574, %v2606
      %v2639 = vmul.f32 %v2575, %v2607
      %v2640 = vmul.f32 %v2576, %v2608
      %v2641 = vmul.f32 %v2577, %v2609
      %v2642 = vmul.f32 %v2578, %v2610
      %v2643 = vmul.f32 %v2579, %v2611
      %v2644 = vld [vmem:[%s4] sm:$0xff]
      %v2645 = vld [vmem:[%s4 + $0x8] sm:$0xff]
      %v2646 = vld [vmem:[%s4 + $0x10] sm:$0xff]
      %v2647 = vld [vmem:[%s4 + $0x18] sm:$0xff]
      %v2648 = vld [vmem:[%s4 + $0x20] sm:$0xff]
      %v2649 = vld [vmem:[%s4 + $0x28] sm:$0xff]
      %v2650 = vld [vmem:[%s4 + $0x30] sm:$0xff]
      %v2651 = vld [vmem:[%s4 + $0x38] sm:$0xff]
      %v2652 = vld [vmem:[%s5] sm:$0x1]
      %v2654 = vlaneseq
      %v2655 = vshrl.u32 %v2654, 7
      %v2656 = vsub.s32 0, %v2655
      %v2657 = vrot.slane %v2652, %v2656
      %vm2659 = vcmask 523264
      %v2661 = vsel %vm2659, %v2612, 0
      %v2664 = vsel %vm2659, %v2613, 0
      %v2667 = vsel %vm2659, %v2614, 0
      %v2670 = vsel %vm2659, %v2615, 0
      %v2673 = vsel %vm2659, %v2616, 0
      %v2676 = vsel %vm2659, %v2617, 0
      %v2679 = vsel %vm2659, %v2618, 0
      %v2682 = vsel %vm2659, %v2619, 0
      %v2685 = vsel %vm2659, %v2620, 0
      %v2688 = vsel %vm2659, %v2621, 0
      %v2691 = vsel %vm2659, %v2622, 0
      %v2694 = vsel %vm2659, %v2623, 0
      %v2697 = vsel %vm2659, %v2624, 0
      %v2700 = vsel %vm2659, %v2625, 0
      %v2703 = vsel %vm2659, %v2626, 0
      %v2706 = vsel %vm2659, %v2627, 0
      %v2709 = vsel %vm2659, %v2628, 0
      %v2712 = vsel %vm2659, %v2629, 0
      %v2715 = vsel %vm2659, %v2630, 0
      %v2718 = vsel %vm2659, %v2631, 0
      %v2721 = vsel %vm2659, %v2632, 0
      %v2724 = vsel %vm2659, %v2633, 0
      %v2727 = vsel %vm2659, %v2634, 0
      %v2730 = vsel %vm2659, %v2635, 0
      %v2733 = vsel %vm2659, %v2636, 0
      %v2736 = vsel %vm2659, %v2637, 0
      %v2739 = vsel %vm2659, %v2638, 0
      %v2742 = vsel %vm2659, %v2639, 0
      %v2745 = vsel %vm2659, %v2640, 0
      %v2748 = vsel %vm2659, %v2641, 0
      %v2751 = vsel %vm2659, %v2642, 0
      %v2754 = vsel %vm2659, %v2643, 0
      %2756 = vmatprep.subr.mxu0 0.0
      %2757 = vmatpush1.msra.mxu0 0.0
      %2758 = vmatprep.subr.mxu0 0.0
      %2759 = vmatpush1.msra.mxu0 0.0
      %2760 = vmatprep.subr.mxu0 0.0
      %2761 = vmatpush1.msra.mxu0 0.0
      %2762 = vmatprep.subr.mxu0 0.0
      %2763 = vmatpush1.msra.mxu0 0.0
      %2764 = vmatprep.subr.mxu0 0.0
      %2765 = vmatpush1.msra.mxu0 0.0
      %2766 = vmatprep.subr.mxu0 0.0
      %2767 = vmatpush1.msra.mxu0 0.0
      %2768 = vmatprep.subr.mxu0 0.0
      %2769 = vmatpush1.msra.mxu0 0.0
      %2770 = vmatprep.subr.mxu0 0.0
      %2771 = vmatpush1.msra.mxu0 0.0
      %2772 = vmatprep.subr.mxu0 0.0
      %2773 = vmatpush1.msra.mxu0 %v2651
      %2774 = vmatprep.subr.mxu0 0.0
      %2775 = vmatpush1.msra.mxu0 %v2650
      %2776 = vmatprep.subr.mxu0 0.0
      %2777 = vmatpush1.msra.mxu0 %v2649
      %2778 = vmatprep.subr.mxu0 0.0
      %2779 = vmatpush1.msra.mxu0 %v2648
      %2780 = vmatprep.subr.mxu0 0.0
      %2781 = vmatpush1.msra.mxu0 %v2647
      %2782 = vmatprep.subr.mxu0 0.0
      %2783 = vmatpush1.msra.mxu0 %v2646
      %2784 = vmatprep.subr.mxu0 0.0
      %2785 = vmatpush1.msra.mxu0 %v2645
      %2786 = vmatprep.subr.mxu0 0.0
      %2787 = vmatpush1.msra.mxu0 %v2644
      %2788 = vmatprep.subr.mxu0 0.0
      %2789 = vmatpush2.msra.mxu0 0.0
      %2790 = vmatprep.subr.mxu0 0.0
      %2791 = vmatpush2.msra.mxu0 0.0
      %2792 = vmatprep.subr.mxu0 0.0
      %2793 = vmatpush2.msra.mxu0 0.0
      %2794 = vmatprep.subr.mxu0 0.0
      %2795 = vmatpush2.msra.mxu0 0.0
      %2796 = vmatprep.subr.mxu0 0.0
      %2797 = vmatpush2.msra.mxu0 0.0
      %2798 = vmatprep.subr.mxu0 0.0
      %2799 = vmatpush2.msra.mxu0 0.0
      %2800 = vmatprep.subr.mxu0 0.0
      %2801 = vmatpush2.msra.mxu0 0.0
      %2802 = vmatprep.subr.mxu0 0.0
      %2803 = vmatpush2.msra.mxu0 0.0
      %2804 = vmatprep.subr.mxu0 0.0
      %2805 = vmatpush2.msra.mxu0 0.0
      %2806 = vmatprep.subr.mxu0 0.0
      %2807 = vmatpush2.msra.mxu0 0.0
      %2808 = vmatprep.subr.mxu0 0.0
      %2809 = vmatpush2.msra.mxu0 0.0
      %2810 = vmatprep.subr.mxu0 0.0
      %2811 = vmatpush2.msra.mxu0 0.0
      %2812 = vmatprep.subr.mxu0 0.0
      %2813 = vmatpush2.msra.mxu0 0.0
      %2814 = vmatprep.subr.mxu0 0.0
      %2815 = vmatpush2.msra.mxu0 0.0
      %2816 = vmatprep.subr.mxu0 0.0
      %2817 = vmatpush2.msra.mxu0 0.0
      %2818 = vmatprep.subr.mxu0 0.0
      %2819 = vmatpush2.msra.mxu0 0.0
      %2820 = vmatprep.mubr.f32.mxu0 0.0
      %2821 = vmatmul.mubr.f32.gmra.mxu0 %v2661
      %v2822 = vpop.f32.mrf.mxu0
      %v2823 = vadd.f32 %v2657, %v2822
      %v2824 = vpop.f32.mrf.mxu0
      %2825 = vmatprep.mubr.f32.mxu0 0.0
      %2826 = vmatmul.mubr.f32.gmra.mxu0 %v2664
      %v2827 = vpop.f32.mrf.mxu0
      %v2828 = vadd.f32 %v2657, %v2827
      %v2829 = vpop.f32.mrf.mxu0
      %2830 = vmatprep.mubr.f32.mxu0 0.0
      %2831 = vmatmul.mubr.f32.gmra.mxu0 %v2667
      %v2832 = vpop.f32.mrf.mxu0
      %v2833 = vadd.f32 %v2657, %v2832
      %v2834 = vpop.f32.mrf.mxu0
      %2835 = vmatprep.mubr.f32.mxu0 0.0
      %2836 = vmatmul.mubr.f32.gmra.mxu0 %v2670
      %v2837 = vpop.f32.mrf.mxu0
      %v2838 = vadd.f32 %v2657, %v2837
      %v2839 = vpop.f32.mrf.mxu0
      %2840 = vmatprep.mubr.f32.mxu0 0.0
      %2841 = vmatmul.mubr.f32.gmra.mxu0 %v2673
      %v2842 = vpop.f32.mrf.mxu0
      %v2843 = vadd.f32 %v2657, %v2842
      %v2844 = vpop.f32.mrf.mxu0
      %2845 = vmatprep.mubr.f32.mxu0 0.0
      %2846 = vmatmul.mubr.f32.gmra.mxu0 %v2676
      %v2847 = vpop.f32.mrf.mxu0
      %v2848 = vadd.f32 %v2657, %v2847
      %v2849 = vpop.f32.mrf.mxu0
      %2850 = vmatprep.mubr.f32.mxu0 0.0
      %2851 = vmatmul.mubr.f32.gmra.mxu0 %v2679
      %v2852 = vpop.f32.mrf.mxu0
      %v2853 = vadd.f32 %v2657, %v2852
      %v2854 = vpop.f32.mrf.mxu0
      %2855 = vmatprep.mubr.f32.mxu0 0.0
      %2856 = vmatmul.mubr.f32.gmra.mxu0 %v2682
      %v2857 = vpop.f32.mrf.mxu0
      %v2858 = vadd.f32 %v2657, %v2857
      %v2859 = vpop.f32.mrf.mxu0
      %2860 = vmatprep.mubr.f32.mxu0 0.0
      %2861 = vmatmul.mubr.f32.gmra.mxu0 %v2685
      %v2862 = vpop.f32.mrf.mxu0
      %v2863 = vadd.f32 %v2657, %v2862
      %v2864 = vpop.f32.mrf.mxu0
      %2865 = vmatprep.mubr.f32.mxu0 0.0
      %2866 = vmatmul.mubr.f32.gmra.mxu0 %v2688
      %v2867 = vpop.f32.mrf.mxu0
      %v2868 = vadd.f32 %v2657, %v2867
      %v2869 = vpop.f32.mrf.mxu0
      %2870 = vmatprep.mubr.f32.mxu0 0.0
      %2871 = vmatmul.mubr.f32.gmra.mxu0 %v2691
      %v2872 = vpop.f32.mrf.mxu0
      %v2873 = vadd.f32 %v2657, %v2872
      %v2874 = vpop.f32.mrf.mxu0
      %2875 = vmatprep.mubr.f32.mxu0 0.0
      %2876 = vmatmul.mubr.f32.gmra.mxu0 %v2694
      %v2877 = vpop.f32.mrf.mxu0
      %v2878 = vadd.f32 %v2657, %v2877
      %v2879 = vpop.f32.mrf.mxu0
      %2880 = vmatprep.mubr.f32.mxu0 0.0
      %2881 = vmatmul.mubr.f32.gmra.mxu0 %v2697
      %v2882 = vpop.f32.mrf.mxu0
      %v2883 = vadd.f32 %v2657, %v2882
      %v2884 = vpop.f32.mrf.mxu0
      %2885 = vmatprep.mubr.f32.mxu0 0.0
      %2886 = vmatmul.mubr.f32.gmra.mxu0 %v2700
      %v2887 = vpop.f32.mrf.mxu0
      %v2888 = vadd.f32 %v2657, %v2887
      %v2889 = vpop.f32.mrf.mxu0
      %2890 = vmatprep.mubr.f32.mxu0 0.0
      %2891 = vmatmul.mubr.f32.gmra.mxu0 %v2703
      %v2892 = vpop.f32.mrf.mxu0
      %v2893 = vadd.f32 %v2657, %v2892
      %v2894 = vpop.f32.mrf.mxu0
      %2895 = vmatprep.mubr.f32.mxu0 0.0
      %2896 = vmatmul.mubr.f32.gmra.mxu0 %v2706
      %v2897 = vpop.f32.mrf.mxu0
      %v2898 = vadd.f32 %v2657, %v2897
      %v2899 = vpop.f32.mrf.mxu0
      %2900 = vmatprep.mubr.f32.mxu0 0.0
      %2901 = vmatmul.mubr.f32.gmra.mxu0 %v2709
      %v2902 = vpop.f32.mrf.mxu0
      %v2903 = vadd.f32 %v2657, %v2902
      %v2904 = vpop.f32.mrf.mxu0
      %2905 = vmatprep.mubr.f32.mxu0 0.0
      %2906 = vmatmul.mubr.f32.gmra.mxu0 %v2712
      %v2907 = vpop.f32.mrf.mxu0
      %v2908 = vadd.f32 %v2657, %v2907
      %v2909 = vpop.f32.mrf.mxu0
      %2910 = vmatprep.mubr.f32.mxu0 0.0
      %2911 = vmatmul.mubr.f32.gmra.mxu0 %v2715
      %v2912 = vpop.f32.mrf.mxu0
      %v2913 = vadd.f32 %v2657, %v2912
      %v2914 = vpop.f32.mrf.mxu0
      %2915 = vmatprep.mubr.f32.mxu0 0.0
      %2916 = vmatmul.mubr.f32.gmra.mxu0 %v2718
      %v2917 = vpop.f32.mrf.mxu0
      %v2918 = vadd.f32 %v2657, %v2917
      %v2919 = vpop.f32.mrf.mxu0
      %2920 = vmatprep.mubr.f32.mxu0 0.0
      %2921 = vmatmul.mubr.f32.gmra.mxu0 %v2721
      %v2922 = vpop.f32.mrf.mxu0
      %v2923 = vadd.f32 %v2657, %v2922
      %v2924 = vpop.f32.mrf.mxu0
      %2925 = vmatprep.mubr.f32.mxu0 0.0
      %2926 = vmatmul.mubr.f32.gmra.mxu0 %v2724
      %v2927 = vpop.f32.mrf.mxu0
      %v2928 = vadd.f32 %v2657, %v2927
      %v2929 = vpop.f32.mrf.mxu0
      %2930 = vmatprep.mubr.f32.mxu0 0.0
      %2931 = vmatmul.mubr.f32.gmra.mxu0 %v2727
      %v2932 = vpop.f32.mrf.mxu0
      %v2933 = vadd.f32 %v2657, %v2932
      %v2934 = vpop.f32.mrf.mxu0
      %2935 = vmatprep.mubr.f32.mxu0 0.0
      %2936 = vmatmul.mubr.f32.gmra.mxu0 %v2730
      %v2937 = vpop.f32.mrf.mxu0
      %v2938 = vadd.f32 %v2657, %v2937
      %v2939 = vpop.f32.mrf.mxu0
      %2940 = vmatprep.mubr.f32.mxu0 0.0
      %2941 = vmatmul.mubr.f32.gmra.mxu0 %v2733
      %v2942 = vpop.f32.mrf.mxu0
      %v2943 = vadd.f32 %v2657, %v2942
      %v2944 = vpop.f32.mrf.mxu0
      %2945 = vmatprep.mubr.f32.mxu0 0.0
      %2946 = vmatmul.mubr.f32.gmra.mxu0 %v2736
      %v2947 = vpop.f32.mrf.mxu0
      %v2948 = vadd.f32 %v2657, %v2947
      %v2949 = vpop.f32.mrf.mxu0
      %2950 = vmatprep.mubr.f32.mxu0 0.0
      %2951 = vmatmul.mubr.f32.gmra.mxu0 %v2739
      %v2952 = vpop.f32.mrf.mxu0
      %v2953 = vadd.f32 %v2657, %v2952
      %v2954 = vpop.f32.mrf.mxu0
      %2955 = vmatprep.mubr.f32.mxu0 0.0
      %2956 = vmatmul.mubr.f32.gmra.mxu0 %v2742
      %v2957 = vpop.f32.mrf.mxu0
      %v2958 = vadd.f32 %v2657, %v2957
      %v2959 = vpop.f32.mrf.mxu0
      %2960 = vmatprep.mubr.f32.mxu0 0.0
      %2961 = vmatmul.mubr.f32.gmra.mxu0 %v2745
      %v2962 = vpop.f32.mrf.mxu0
      %v2963 = vadd.f32 %v2657, %v2962
      %v2964 = vpop.f32.mrf.mxu0
      %2965 = vmatprep.mubr.f32.mxu0 0.0
      %2966 = vmatmul.mubr.f32.gmra.mxu0 %v2748
      %v2967 = vpop.f32.mrf.mxu0
      %v2968 = vadd.f32 %v2657, %v2967
      %v2969 = vpop.f32.mrf.mxu0
      %2970 = vmatprep.mubr.f32.mxu0 0.0
      %2971 = vmatmul.mubr.f32.gmra.mxu0 %v2751
      %v2972 = vpop.f32.mrf.mxu0
      %v2973 = vadd.f32 %v2657, %v2972
      %v2974 = vpop.f32.mrf.mxu0
      %2975 = vmatprep.mubr.f32.mxu0 0.0
      %2976 = vmatmul.mubr.f32.gmra.mxu0 %v2754
      %v2977 = vpop.f32.mrf.mxu0
      %v2978 = vadd.f32 %v2657, %v2977
      %v2979 = vpop.f32.mrf.mxu0
      %2980 = vdwg.mxu0
      %vm2981 = vcmp.ge.f32.partialorder %v2823, 0.0
      %vm2982 = vcmp.ge.f32.partialorder %v2828, 0.0
      %vm2983 = vcmp.ge.f32.partialorder %v2833, 0.0
      %vm2984 = vcmp.ge.f32.partialorder %v2838, 0.0
      %vm2985 = vcmp.ge.f32.partialorder %v2843, 0.0
      %vm2986 = vcmp.ge.f32.partialorder %v2848, 0.0
      %vm2987 = vcmp.ge.f32.partialorder %v2853, 0.0
      %vm2988 = vcmp.ge.f32.partialorder %v2858, 0.0
      %vm2989 = vcmp.ge.f32.partialorder %v2863, 0.0
      %vm2990 = vcmp.ge.f32.partialorder %v2868, 0.0
      %vm2991 = vcmp.ge.f32.partialorder %v2873, 0.0
      %vm2992 = vcmp.ge.f32.partialorder %v2878, 0.0
      %vm2993 = vcmp.ge.f32.partialorder %v2883, 0.0
      %vm2994 = vcmp.ge.f32.partialorder %v2888, 0.0
      %vm2995 = vcmp.ge.f32.partialorder %v2893, 0.0
      %vm2996 = vcmp.ge.f32.partialorder %v2898, 0.0
      %vm2997 = vcmp.ge.f32.partialorder %v2903, 0.0
      %vm2998 = vcmp.ge.f32.partialorder %v2908, 0.0
      %vm2999 = vcmp.ge.f32.partialorder %v2913, 0.0
      %vm3000 = vcmp.ge.f32.partialorder %v2918, 0.0
      %vm3001 = vcmp.ge.f32.partialorder %v2923, 0.0
      %vm3002 = vcmp.ge.f32.partialorder %v2928, 0.0
      %vm3003 = vcmp.ge.f32.partialorder %v2933, 0.0
      %vm3004 = vcmp.ge.f32.partialorder %v2938, 0.0
      %vm3005 = vcmp.ge.f32.partialorder %v2943, 0.0
      %vm3006 = vcmp.ge.f32.partialorder %v2948, 0.0
      %vm3007 = vcmp.ge.f32.partialorder %v2953, 0.0
      %vm3008 = vcmp.ge.f32.partialorder %v2958, 0.0
      %vm3009 = vcmp.ge.f32.partialorder %v2963, 0.0
      %vm3010 = vcmp.ge.f32.partialorder %v2968, 0.0
      %vm3011 = vcmp.ge.f32.partialorder %v2973, 0.0
      %vm3012 = vcmp.ge.f32.partialorder %v2978, 0.0
      %v3013 = vmul.f32 %v2823, 0.2
      %v3014 = vmul.f32 %v2828, 0.2
      %v3015 = vmul.f32 %v2833, 0.2
      %v3016 = vmul.f32 %v2838, 0.2
      %v3017 = vmul.f32 %v2843, 0.2
      %v3018 = vmul.f32 %v2848, 0.2
      %v3019 = vmul.f32 %v2853, 0.2
      %v3020 = vmul.f32 %v2858, 0.2
      %v3021 = vmul.f32 %v2863, 0.2
      %v3022 = vmul.f32 %v2868, 0.2
      %v3023 = vmul.f32 %v2873, 0.2
      %v3024 = vmul.f32 %v2878, 0.2
      %v3025 = vmul.f32 %v2883, 0.2
      %v3026 = vmul.f32 %v2888, 0.2
      %v3027 = vmul.f32 %v2893, 0.2
      %v3028 = vmul.f32 %v2898, 0.2
      %v3029 = vmul.f32 %v2903, 0.2
      %v3030 = vmul.f32 %v2908, 0.2
      %v3031 = vmul.f32 %v2913, 0.2
      %v3032 = vmul.f32 %v2918, 0.2
      %v3033 = vmul.f32 %v2923, 0.2
      %v3034 = vmul.f32 %v2928, 0.2
      %v3035 = vmul.f32 %v2933, 0.2
      %v3036 = vmul.f32 %v2938, 0.2
      %v3037 = vmul.f32 %v2943, 0.2
      %v3038 = vmul.f32 %v2948, 0.2
      %v3039 = vmul.f32 %v2953, 0.2
      %v3040 = vmul.f32 %v2958, 0.2
      %v3041 = vmul.f32 %v2963, 0.2
      %v3042 = vmul.f32 %v2968, 0.2
      %v3043 = vmul.f32 %v2973, 0.2
      %v3044 = vmul.f32 %v2978, 0.2
      %v3045 = vsel %vm2981, %v2823, %v3013
      %v3046 = vsel %vm2982, %v2828, %v3014
      %v3047 = vsel %vm2983, %v2833, %v3015
      %v3048 = vsel %vm2984, %v2838, %v3016
      %v3049 = vsel %vm2985, %v2843, %v3017
      %v3050 = vsel %vm2986, %v2848, %v3018
      %v3051 = vsel %vm2987, %v2853, %v3019
      %v3052 = vsel %vm2988, %v2858, %v3020
      %v3053 = vsel %vm2989, %v2863, %v3021
      %v3054 = vsel %vm2990, %v2868, %v3022
      %v3055 = vsel %vm2991, %v2873, %v3023
      %v3056 = vsel %vm2992, %v2878, %v3024
      %v3057 = vsel %vm2993, %v2883, %v3025
      %v3058 = vsel %vm2994, %v2888, %v3026
      %v3059 = vsel %vm2995, %v2893, %v3027
      %v3060 = vsel %vm2996, %v2898, %v3028
      %v3061 = vsel %vm2997, %v2903, %v3029
      %v3062 = vsel %vm2998, %v2908, %v3030
      %v3063 = vsel %vm2999, %v2913, %v3031
      %v3064 = vsel %vm3000, %v2918, %v3032
      %v3065 = vsel %vm3001, %v2923, %v3033
      %v3066 = vsel %vm3002, %v2928, %v3034
      %v3067 = vsel %vm3003, %v2933, %v3035
      %v3068 = vsel %vm3004, %v2938, %v3036
      %v3069 = vsel %vm3005, %v2943, %v3037
      %v3070 = vsel %vm3006, %v2948, %v3038
      %v3071 = vsel %vm3007, %v2953, %v3039
      %v3072 = vsel %vm3008, %v2958, %v3040
      %v3073 = vsel %vm3009, %v2963, %v3041
      %v3074 = vsel %vm3010, %v2968, %v3042
      %v3075 = vsel %vm3011, %v2973, %v3043
      %v3076 = vsel %vm3012, %v2978, %v3044
      %v3077 = vld [vmem:[%s6] sm:$0xff]
      %v3078 = vld [vmem:[%s6 + $0x8] sm:$0xff]
      %v3079 = vld [vmem:[%s6 + $0x10] sm:$0xff]
      %v3080 = vld [vmem:[%s6 + $0x18] sm:$0xff]
      %v3081 = vld [vmem:[%s6 + $0x20] sm:$0xff]
      %v3082 = vld [vmem:[%s6 + $0x28] sm:$0xff]
      %v3083 = vld [vmem:[%s6 + $0x30] sm:$0xff]
      %v3084 = vld [vmem:[%s6 + $0x38] sm:$0xff]
      %v3085 = vld [vmem:[%s6 + $0x40] sm:$0xff]
      %v3086 = vld [vmem:[%s6 + $0x48] sm:$0xff]
      %v3087 = vld [vmem:[%s6 + $0x50] sm:$0xff]
      %v3088 = vld [vmem:[%s6 + $0x58] sm:$0xff]
      %v3089 = vld [vmem:[%s6 + $0x60] sm:$0xff]
      %v3090 = vld [vmem:[%s6 + $0x68] sm:$0xff]
      %v3091 = vld [vmem:[%s6 + $0x70] sm:$0xff]
      %v3092 = vld [vmem:[%s6 + $0x78] sm:$0xff]
      %3093 = vmatprep.subr.mxu0 0.0
      %3094 = vmatpush1.msra.mxu0 %v3092
      %3095 = vmatprep.subr.mxu0 0.0
      %3096 = vmatpush1.msra.mxu0 %v3091
      %3097 = vmatprep.subr.mxu0 0.0
      %3098 = vmatpush1.msra.mxu0 %v3090
      %3099 = vmatprep.subr.mxu0 0.0
      %3100 = vmatpush1.msra.mxu0 %v3089
      %3101 = vmatprep.subr.mxu0 0.0
      %3102 = vmatpush1.msra.mxu0 %v3088
      %3103 = vmatprep.subr.mxu0 0.0
      %3104 = vmatpush1.msra.mxu0 %v3087
      %3105 = vmatprep.subr.mxu0 0.0
      %3106 = vmatpush1.msra.mxu0 %v3086
      %3107 = vmatprep.subr.mxu0 0.0
      %3108 = vmatpush1.msra.mxu0 %v3085
      %3109 = vmatprep.subr.mxu0 0.0
      %3110 = vmatpush1.msra.mxu0 %v3084
      %3111 = vmatprep.subr.mxu0 0.0
      %3112 = vmatpush1.msra.mxu0 %v3083
      %3113 = vmatprep.subr.mxu0 0.0
      %3114 = vmatpush1.msra.mxu0 %v3082
      %3115 = vmatprep.subr.mxu0 0.0
      %3116 = vmatpush1.msra.mxu0 %v3081
      %3117 = vmatprep.subr.mxu0 0.0
      %3118 = vmatpush1.msra.mxu0 %v3080
      %3119 = vmatprep.subr.mxu0 0.0
      %3120 = vmatpush1.msra.mxu0 %v3079
      %3121 = vmatprep.subr.mxu0 0.0
      %3122 = vmatpush1.msra.mxu0 %v3078
      %3123 = vmatprep.subr.mxu0 0.0
      %3124 = vmatpush1.msra.mxu0 %v3077
      %3125 = vmatprep.subr.mxu0 0.0
      %3126 = vmatpush2.msra.mxu0 0.0
      %3127 = vmatprep.subr.mxu0 0.0
      %3128 = vmatpush2.msra.mxu0 0.0
      %3129 = vmatprep.subr.mxu0 0.0
      %3130 = vmatpush2.msra.mxu0 0.0
      %3131 = vmatprep.subr.mxu0 0.0
      %3132 = vmatpush2.msra.mxu0 0.0
      %3133 = vmatprep.subr.mxu0 0.0
      %3134 = vmatpush2.msra.mxu0 0.0
      %3135 = vmatprep.subr.mxu0 0.0
      %3136 = vmatpush2.msra.mxu0 0.0
      %3137 = vmatprep.subr.mxu0 0.0
      %3138 = vmatpush2.msra.mxu0 0.0
      %3139 = vmatprep.subr.mxu0 0.0
      %3140 = vmatpush2.msra.mxu0 0.0
      %3141 = vmatprep.subr.mxu0 0.0
      %3142 = vmatpush2.msra.mxu0 0.0
      %3143 = vmatprep.subr.mxu0 0.0
      %3144 = vmatpush2.msra.mxu0 0.0
      %3145 = vmatprep.subr.mxu0 0.0
      %3146 = vmatpush2.msra.mxu0 0.0
      %3147 = vmatprep.subr.mxu0 0.0
      %3148 = vmatpush2.msra.mxu0 0.0
      %3149 = vmatprep.subr.mxu0 0.0
      %3150 = vmatpush2.msra.mxu0 0.0
      %3151 = vmatprep.subr.mxu0 0.0
      %3152 = vmatpush2.msra.mxu0 0.0
      %3153 = vmatprep.subr.mxu0 0.0
      %3154 = vmatpush2.msra.mxu0 0.0
      %3155 = vmatprep.subr.mxu0 0.0
      %3156 = vmatpush2.msra.mxu0 0.0
      %3157 = vmatprep.mubr.f32.mxu0 0.0
      %3158 = vmatmul.mubr.f32.gmra.mxu0 %v3045
      %v3159 = vpop.f32.mrf.mxu0
      %v3160 = vadd.f32 0.0, %v3159
      %v3161 = vpop.f32.mrf.mxu0
      %3162 = vmatprep.mubr.f32.mxu0 0.0
      %3163 = vmatmul.mubr.f32.gmra.mxu0 %v3046
      %v3164 = vpop.f32.mrf.mxu0
      %v3165 = vadd.f32 0.0, %v3164
      %v3166 = vpop.f32.mrf.mxu0
      %3167 = vmatprep.mubr.f32.mxu0 0.0
      %3168 = vmatmul.mubr.f32.gmra.mxu0 %v3047
      %v3169 = vpop.f32.mrf.mxu0
      %v3170 = vadd.f32 0.0, %v3169
      %v3171 = vpop.f32.mrf.mxu0
      %3172 = vmatprep.mubr.f32.mxu0 0.0
      %3173 = vmatmul.mubr.f32.gmra.mxu0 %v3048
      %v3174 = vpop.f32.mrf.mxu0
      %v3175 = vadd.f32 0.0, %v3174
      %v3176 = vpop.f32.mrf.mxu0
      %3177 = vmatprep.mubr.f32.mxu0 0.0
      %3178 = vmatmul.mubr.f32.gmra.mxu0 %v3049
      %v3179 = vpop.f32.mrf.mxu0
      %v3180 = vadd.f32 0.0, %v3179
      %v3181 = vpop.f32.mrf.mxu0
      %3182 = vmatprep.mubr.f32.mxu0 0.0
      %3183 = vmatmul.mubr.f32.gmra.mxu0 %v3050
      %v3184 = vpop.f32.mrf.mxu0
      %v3185 = vadd.f32 0.0, %v3184
      %v3186 = vpop.f32.mrf.mxu0
      %3187 = vmatprep.mubr.f32.mxu0 0.0
      %3188 = vmatmul.mubr.f32.gmra.mxu0 %v3051
      %v3189 = vpop.f32.mrf.mxu0
      %v3190 = vadd.f32 0.0, %v3189
      %v3191 = vpop.f32.mrf.mxu0
      %3192 = vmatprep.mubr.f32.mxu0 0.0
      %3193 = vmatmul.mubr.f32.gmra.mxu0 %v3052
      %v3194 = vpop.f32.mrf.mxu0
      %v3195 = vadd.f32 0.0, %v3194
      %v3196 = vpop.f32.mrf.mxu0
      %3197 = vmatprep.mubr.f32.mxu0 0.0
      %3198 = vmatmul.mubr.f32.gmra.mxu0 %v3053
      %v3199 = vpop.f32.mrf.mxu0
      %v3200 = vadd.f32 0.0, %v3199
      %v3201 = vpop.f32.mrf.mxu0
      %3202 = vmatprep.mubr.f32.mxu0 0.0
      %3203 = vmatmul.mubr.f32.gmra.mxu0 %v3054
      %v3204 = vpop.f32.mrf.mxu0
      %v3205 = vadd.f32 0.0, %v3204
      %v3206 = vpop.f32.mrf.mxu0
      %3207 = vmatprep.mubr.f32.mxu0 0.0
      %3208 = vmatmul.mubr.f32.gmra.mxu0 %v3055
      %v3209 = vpop.f32.mrf.mxu0
      %v3210 = vadd.f32 0.0, %v3209
      %v3211 = vpop.f32.mrf.mxu0
      %3212 = vmatprep.mubr.f32.mxu0 0.0
      %3213 = vmatmul.mubr.f32.gmra.mxu0 %v3056
      %v3214 = vpop.f32.mrf.mxu0
      %v3215 = vadd.f32 0.0, %v3214
      %v3216 = vpop.f32.mrf.mxu0
      %3217 = vmatprep.mubr.f32.mxu0 0.0
      %3218 = vmatmul.mubr.f32.gmra.mxu0 %v3057
      %v3219 = vpop.f32.mrf.mxu0
      %v3220 = vadd.f32 0.0, %v3219
      %v3221 = vpop.f32.mrf.mxu0
      %3222 = vmatprep.mubr.f32.mxu0 0.0
      %3223 = vmatmul.mubr.f32.gmra.mxu0 %v3058
      %v3224 = vpop.f32.mrf.mxu0
      %v3225 = vadd.f32 0.0, %v3224
      %v3226 = vpop.f32.mrf.mxu0
      %3227 = vmatprep.mubr.f32.mxu0 0.0
      %3228 = vmatmul.mubr.f32.gmra.mxu0 %v3059
      %v3229 = vpop.f32.mrf.mxu0
      %v3230 = vadd.f32 0.0, %v3229
      %v3231 = vpop.f32.mrf.mxu0
      %3232 = vmatprep.mubr.f32.mxu0 0.0
      %3233 = vmatmul.mubr.f32.gmra.mxu0 %v3060
      %v3234 = vpop.f32.mrf.mxu0
      %v3235 = vadd.f32 0.0, %v3234
      %v3236 = vpop.f32.mrf.mxu0
      %3237 = vmatprep.mubr.f32.mxu0 0.0
      %3238 = vmatmul.mubr.f32.gmra.mxu0 %v3061
      %v3239 = vpop.f32.mrf.mxu0
      %v3240 = vadd.f32 0.0, %v3239
      %v3241 = vpop.f32.mrf.mxu0
      %3242 = vmatprep.mubr.f32.mxu0 0.0
      %3243 = vmatmul.mubr.f32.gmra.mxu0 %v3062
      %v3244 = vpop.f32.mrf.mxu0
      %v3245 = vadd.f32 0.0, %v3244
      %v3246 = vpop.f32.mrf.mxu0
      %3247 = vmatprep.mubr.f32.mxu0 0.0
      %3248 = vmatmul.mubr.f32.gmra.mxu0 %v3063
      %v3249 = vpop.f32.mrf.mxu0
      %v3250 = vadd.f32 0.0, %v3249
      %v3251 = vpop.f32.mrf.mxu0
      %3252 = vmatprep.mubr.f32.mxu0 0.0
      %3253 = vmatmul.mubr.f32.gmra.mxu0 %v3064
      %v3254 = vpop.f32.mrf.mxu0
      %v3255 = vadd.f32 0.0, %v3254
      %v3256 = vpop.f32.mrf.mxu0
      %3257 = vmatprep.mubr.f32.mxu0 0.0
      %3258 = vmatmul.mubr.f32.gmra.mxu0 %v3065
      %v3259 = vpop.f32.mrf.mxu0
      %v3260 = vadd.f32 0.0, %v3259
      %v3261 = vpop.f32.mrf.mxu0
      %3262 = vmatprep.mubr.f32.mxu0 0.0
      %3263 = vmatmul.mubr.f32.gmra.mxu0 %v3066
      %v3264 = vpop.f32.mrf.mxu0
      %v3265 = vadd.f32 0.0, %v3264
      %v3266 = vpop.f32.mrf.mxu0
      %3267 = vmatprep.mubr.f32.mxu0 0.0
      %3268 = vmatmul.mubr.f32.gmra.mxu0 %v3067
      %v3269 = vpop.f32.mrf.mxu0
      %v3270 = vadd.f32 0.0, %v3269
      %v3271 = vpop.f32.mrf.mxu0
      %3272 = vmatprep.mubr.f32.mxu0 0.0
      %3273 = vmatmul.mubr.f32.gmra.mxu0 %v3068
      %v3274 = vpop.f32.mrf.mxu0
      %v3275 = vadd.f32 0.0, %v3274
      %v3276 = vpop.f32.mrf.mxu0
      %3277 = vmatprep.mubr.f32.mxu0 0.0
      %3278 = vmatmul.mubr.f32.gmra.mxu0 %v3069
      %v3279 = vpop.f32.mrf.mxu0
      %v3280 = vadd.f32 0.0, %v3279
      %v3281 = vpop.f32.mrf.mxu0
      %3282 = vmatprep.mubr.f32.mxu0 0.0
      %3283 = vmatmul.mubr.f32.gmra.mxu0 %v3070
      %v3284 = vpop.f32.mrf.mxu0
      %v3285 = vadd.f32 0.0, %v3284
      %v3286 = vpop.f32.mrf.mxu0
      %3287 = vmatprep.mubr.f32.mxu0 0.0
      %3288 = vmatmul.mubr.f32.gmra.mxu0 %v3071
      %v3289 = vpop.f32.mrf.mxu0
      %v3290 = vadd.f32 0.0, %v3289
      %v3291 = vpop.f32.mrf.mxu0
      %3292 = vmatprep.mubr.f32.mxu0 0.0
      %3293 = vmatmul.mubr.f32.gmra.mxu0 %v3072
      %v3294 = vpop.f32.mrf.mxu0
      %v3295 = vadd.f32 0.0, %v3294
      %v3296 = vpop.f32.mrf.mxu0
      %3297 = vmatprep.mubr.f32.mxu0 0.0
      %3298 = vmatmul.mubr.f32.gmra.mxu0 %v3073
      %v3299 = vpop.f32.mrf.mxu0
      %v3300 = vadd.f32 0.0, %v3299
      %v3301 = vpop.f32.mrf.mxu0
      %3302 = vmatprep.mubr.f32.mxu0 0.0
      %3303 = vmatmul.mubr.f32.gmra.mxu0 %v3074
      %v3304 = vpop.f32.mrf.mxu0
      %v3305 = vadd.f32 0.0, %v3304
      %v3306 = vpop.f32.mrf.mxu0
      %3307 = vmatprep.mubr.f32.mxu0 0.0
      %3308 = vmatmul.mubr.f32.gmra.mxu0 %v3075
      %v3309 = vpop.f32.mrf.mxu0
      %v3310 = vadd.f32 0.0, %v3309
      %v3311 = vpop.f32.mrf.mxu0
      %3312 = vmatprep.mubr.f32.mxu0 0.0
      %3313 = vmatmul.mubr.f32.gmra.mxu0 %v3076
      %v3314 = vpop.f32.mrf.mxu0
      %v3315 = vadd.f32 0.0, %v3314
      %v3316 = vpop.f32.mrf.mxu0
      %3317 = vdwg.mxu0
      %v3318 = vld [vmem:[%s7] sm:$0xff]
      %v3319 = vmul.f32 %v3045, %v3045
      %v3320 = vmul.f32 %v3046, %v3046
      %v3321 = vmul.f32 %v3047, %v3047
      %v3322 = vmul.f32 %v3048, %v3048
      %v3323 = vmul.f32 %v3049, %v3049
      %v3324 = vmul.f32 %v3050, %v3050
      %v3325 = vmul.f32 %v3051, %v3051
      %v3326 = vmul.f32 %v3052, %v3052
      %v3327 = vmul.f32 %v3053, %v3053
      %v3328 = vmul.f32 %v3054, %v3054
      %v3329 = vmul.f32 %v3055, %v3055
      %v3330 = vmul.f32 %v3056, %v3056
      %v3331 = vmul.f32 %v3057, %v3057
      %v3332 = vmul.f32 %v3058, %v3058
      %v3333 = vmul.f32 %v3059, %v3059
      %v3334 = vmul.f32 %v3060, %v3060
      %v3335 = vmul.f32 %v3061, %v3061
      %v3336 = vmul.f32 %v3062, %v3062
      %v3337 = vmul.f32 %v3063, %v3063
      %v3338 = vmul.f32 %v3064, %v3064
      %v3339 = vmul.f32 %v3065, %v3065
      %v3340 = vmul.f32 %v3066, %v3066
      %v3341 = vmul.f32 %v3067, %v3067
      %v3342 = vmul.f32 %v3068, %v3068
      %v3343 = vmul.f32 %v3069, %v3069
      %v3344 = vmul.f32 %v3070, %v3070
      %v3345 = vmul.f32 %v3071, %v3071
      %v3346 = vmul.f32 %v3072, %v3072
      %v3347 = vmul.f32 %v3073, %v3073
      %v3348 = vmul.f32 %v3074, %v3074
      %v3349 = vmul.f32 %v3075, %v3075
      %v3350 = vmul.f32 %v3076, %v3076
      %3351 = vadd.xlane.f32.xlu0 %v3319
      %v3352 = vpop.xlane.xlu0 %3351
      %3353 = vadd.xlane.f32.xlu0 %v3320
      %v3354 = vpop.xlane.xlu0 %3353
      %3355 = vadd.xlane.f32.xlu0 %v3321
      %v3356 = vpop.xlane.xlu0 %3355
      %3357 = vadd.xlane.f32.xlu0 %v3322
      %v3358 = vpop.xlane.xlu0 %3357
      %3359 = vadd.xlane.f32.xlu0 %v3323
      %v3360 = vpop.xlane.xlu0 %3359
      %3361 = vadd.xlane.f32.xlu0 %v3324
      %v3362 = vpop.xlane.xlu0 %3361
      %3363 = vadd.xlane.f32.xlu0 %v3325
      %v3364 = vpop.xlane.xlu0 %3363
      %3365 = vadd.xlane.f32.xlu0 %v3326
      %v3366 = vpop.xlane.xlu0 %3365
      %3367 = vadd.xlane.f32.xlu0 %v3327
      %v3368 = vpop.xlane.xlu0 %3367
      %3369 = vadd.xlane.f32.xlu0 %v3328
      %v3370 = vpop.xlane.xlu0 %3369
      %3371 = vadd.xlane.f32.xlu0 %v3329
      %v3372 = vpop.xlane.xlu0 %3371
      %3373 = vadd.xlane.f32.xlu0 %v3330
      %v3374 = vpop.xlane.xlu0 %3373
      %3375 = vadd.xlane.f32.xlu0 %v3331
      %v3376 = vpop.xlane.xlu0 %3375
      %3377 = vadd.xlane.f32.xlu0 %v3332
      %v3378 = vpop.xlane.xlu0 %3377
      %3379 = vadd.xlane.f32.xlu0 %v3333
      %v3380 = vpop.xlane.xlu0 %3379
      %3381 = vadd.xlane.f32.xlu0 %v3334
      %v3382 = vpop.xlane.xlu0 %3381
      %3383 = vadd.xlane.f32.xlu0 %v3335
      %v3384 = vpop.xlane.xlu0 %3383
      %3385 = vadd.xlane.f32.xlu0 %v3336
      %v3386 = vpop.xlane.xlu0 %3385
      %3387 = vadd.xlane.f32.xlu0 %v3337
      %v3388 = vpop.xlane.xlu0 %3387
      %3389 = vadd.xlane.f32.xlu0 %v3338
      %v3390 = vpop.xlane.xlu0 %3389
      %3391 = vadd.xlane.f32.xlu0 %v3339
      %v3392 = vpop.xlane.xlu0 %3391
      %3393 = vadd.xlane.f32.xlu0 %v3340
      %v3394 = vpop.xlane.xlu0 %3393
      %3395 = vadd.xlane.f32.xlu0 %v3341
      %v3396 = vpop.xlane.xlu0 %3395
      %3397 = vadd.xlane.f32.xlu0 %v3342
      %v3398 = vpop.xlane.xlu0 %3397
      %3399 = vadd.xlane.f32.xlu0 %v3343
      %v3400 = vpop.xlane.xlu0 %3399
      %3401 = vadd.xlane.f32.xlu0 %v3344
      %v3402 = vpop.xlane.xlu0 %3401
      %3403 = vadd.xlane.f32.xlu0 %v3345
      %v3404 = vpop.xlane.xlu0 %3403
      %3405 = vadd.xlane.f32.xlu0 %v3346
      %v3406 = vpop.xlane.xlu0 %3405
      %3407 = vadd.xlane.f32.xlu0 %v3347
      %v3408 = vpop.xlane.xlu0 %3407
      %3409 = vadd.xlane.f32.xlu0 %v3348
      %v3410 = vpop.xlane.xlu0 %3409
      %3411 = vadd.xlane.f32.xlu0 %v3349
      %v3412 = vpop.xlane.xlu0 %3411
      %3413 = vadd.xlane.f32.xlu0 %v3350
      %v3414 = vpop.xlane.xlu0 %3413
      %v3415 = vrsqrt.pop %v3352
      %v3416 = vmul.f32 %v3352, %v3415
      %vm3417 = vcmp.eq.f32.partialorder %v3352, inf
      %v3418 = vsel %vm3417, %v3352, %v3416
      %vm3419 = vcmp.eq.f32.partialorder %v3352, 0.0
      %v3420 = vand.u32 %v3352, 2147483648
      %v3421 = vsel %vm3419, %v3420, %v3418
      %v3422 = vrsqrt.pop %v3354
      %v3423 = vmul.f32 %v3354, %v3422
      %vm3424 = vcmp.eq.f32.partialorder %v3354, inf
      %v3425 = vsel %vm3424, %v3354, %v3423
      %vm3426 = vcmp.eq.f32.partialorder %v3354, 0.0
      %v3427 = vand.u32 %v3354, 2147483648
      %v3428 = vsel %vm3426, %v3427, %v3425
      %v3429 = vrsqrt.pop %v3356
      %v3430 = vmul.f32 %v3356, %v3429
      %vm3431 = vcmp.eq.f32.partialorder %v3356, inf
      %v3432 = vsel %vm3431, %v3356, %v3430
      %vm3433 = vcmp.eq.f32.partialorder %v3356, 0.0
      %v3434 = vand.u32 %v3356, 2147483648
      %v3435 = vsel %vm3433, %v3434, %v3432
      %v3436 = vrsqrt.pop %v3358
      %v3437 = vmul.f32 %v3358, %v3436
      %vm3438 = vcmp.eq.f32.partialorder %v3358, inf
      %v3439 = vsel %vm3438, %v3358, %v3437
      %vm3440 = vcmp.eq.f32.partialorder %v3358, 0.0
      %v3441 = vand.u32 %v3358, 2147483648
      %v3442 = vsel %vm3440, %v3441, %v3439
      %v3443 = vrsqrt.pop %v3360
      %v3444 = vmul.f32 %v3360, %v3443
      %vm3445 = vcmp.eq.f32.partialorder %v3360, inf
      %v3446 = vsel %vm3445, %v3360, %v3444
      %vm3447 = vcmp.eq.f32.partialorder %v3360, 0.0
      %v3448 = vand.u32 %v3360, 2147483648
      %v3449 = vsel %vm3447, %v3448, %v3446
      %v3450 = vrsqrt.pop %v3362
      %v3451 = vmul.f32 %v3362, %v3450
      %vm3452 = vcmp.eq.f32.partialorder %v3362, inf
      %v3453 = vsel %vm3452, %v3362, %v3451
      %vm3454 = vcmp.eq.f32.partialorder %v3362, 0.0
      %v3455 = vand.u32 %v3362, 2147483648
      %v3456 = vsel %vm3454, %v3455, %v3453
      %v3457 = vrsqrt.pop %v3364
      %v3458 = vmul.f32 %v3364, %v3457
      %vm3459 = vcmp.eq.f32.partialorder %v3364, inf
      %v3460 = vsel %vm3459, %v3364, %v3458
      %vm3461 = vcmp.eq.f32.partialorder %v3364, 0.0
      %v3462 = vand.u32 %v3364, 2147483648
      %v3463 = vsel %vm3461, %v3462, %v3460
      %v3464 = vrsqrt.pop %v3366
      %v3465 = vmul.f32 %v3366, %v3464
      %vm3466 = vcmp.eq.f32.partialorder %v3366, inf
      %v3467 = vsel %vm3466, %v3366, %v3465
      %vm3468 = vcmp.eq.f32.partialorder %v3366, 0.0
      %v3469 = vand.u32 %v3366, 2147483648
      %v3470 = vsel %vm3468, %v3469, %v3467
      %v3471 = vrsqrt.pop %v3368
      %v3472 = vmul.f32 %v3368, %v3471
      %vm3473 = vcmp.eq.f32.partialorder %v3368, inf
      %v3474 = vsel %vm3473, %v3368, %v3472
      %vm3475 = vcmp.eq.f32.partialorder %v3368, 0.0
      %v3476 = vand.u32 %v3368, 2147483648
      %v3477 = vsel %vm3475, %v3476, %v3474
      %v3478 = vrsqrt.pop %v3370
      %v3479 = vmul.f32 %v3370, %v3478
      %vm3480 = vcmp.eq.f32.partialorder %v3370, inf
      %v3481 = vsel %vm3480, %v3370, %v3479
      %vm3482 = vcmp.eq.f32.partialorder %v3370, 0.0
      %v3483 = vand.u32 %v3370, 2147483648
      %v3484 = vsel %vm3482, %v3483, %v3481
      %v3485 = vrsqrt.pop %v3372
      %v3486 = vmul.f32 %v3372, %v3485
      %vm3487 = vcmp.eq.f32.partialorder %v3372, inf
      %v3488 = vsel %vm3487, %v3372, %v3486
      %vm3489 = vcmp.eq.f32.partialorder %v3372, 0.0
      %v3490 = vand.u32 %v3372, 2147483648
      %v3491 = vsel %vm3489, %v3490, %v3488
      %v3492 = vrsqrt.pop %v3374
      %v3493 = vmul.f32 %v3374, %v3492
      %vm3494 = vcmp.eq.f32.partialorder %v3374, inf
      %v3495 = vsel %vm3494, %v3374, %v3493
      %vm3496 = vcmp.eq.f32.partialorder %v3374, 0.0
      %v3497 = vand.u32 %v3374, 2147483648
      %v3498 = vsel %vm3496, %v3497, %v3495
      %v3499 = vrsqrt.pop %v3376
      %v3500 = vmul.f32 %v3376, %v3499
      %vm3501 = vcmp.eq.f32.partialorder %v3376, inf
      %v3502 = vsel %vm3501, %v3376, %v3500
      %vm3503 = vcmp.eq.f32.partialorder %v3376, 0.0
      %v3504 = vand.u32 %v3376, 2147483648
      %v3505 = vsel %vm3503, %v3504, %v3502
      %v3506 = vrsqrt.pop %v3378
      %v3507 = vmul.f32 %v3378, %v3506
      %vm3508 = vcmp.eq.f32.partialorder %v3378, inf
      %v3509 = vsel %vm3508, %v3378, %v3507
      %vm3510 = vcmp.eq.f32.partialorder %v3378, 0.0
      %v3511 = vand.u32 %v3378, 2147483648
      %v3512 = vsel %vm3510, %v3511, %v3509
      %v3513 = vrsqrt.pop %v3380
      %v3514 = vmul.f32 %v3380, %v3513
      %vm3515 = vcmp.eq.f32.partialorder %v3380, inf
      %v3516 = vsel %vm3515, %v3380, %v3514
      %vm3517 = vcmp.eq.f32.partialorder %v3380, 0.0
      %v3518 = vand.u32 %v3380, 2147483648
      %v3519 = vsel %vm3517, %v3518, %v3516
      %v3520 = vrsqrt.pop %v3382
      %v3521 = vmul.f32 %v3382, %v3520
      %vm3522 = vcmp.eq.f32.partialorder %v3382, inf
      %v3523 = vsel %vm3522, %v3382, %v3521
      %vm3524 = vcmp.eq.f32.partialorder %v3382, 0.0
      %v3525 = vand.u32 %v3382, 2147483648
      %v3526 = vsel %vm3524, %v3525, %v3523
      %v3527 = vrsqrt.pop %v3384
      %v3528 = vmul.f32 %v3384, %v3527
      %vm3529 = vcmp.eq.f32.partialorder %v3384, inf
      %v3530 = vsel %vm3529, %v3384, %v3528
      %vm3531 = vcmp.eq.f32.partialorder %v3384, 0.0
      %v3532 = vand.u32 %v3384, 2147483648
      %v3533 = vsel %vm3531, %v3532, %v3530
      %v3534 = vrsqrt.pop %v3386
      %v3535 = vmul.f32 %v3386, %v3534
      %vm3536 = vcmp.eq.f32.partialorder %v3386, inf
      %v3537 = vsel %vm3536, %v3386, %v3535
      %vm3538 = vcmp.eq.f32.partialorder %v3386, 0.0
      %v3539 = vand.u32 %v3386, 2147483648
      %v3540 = vsel %vm3538, %v3539, %v3537
      %v3541 = vrsqrt.pop %v3388
      %v3542 = vmul.f32 %v3388, %v3541
      %vm3543 = vcmp.eq.f32.partialorder %v3388, inf
      %v3544 = vsel %vm3543, %v3388, %v3542
      %vm3545 = vcmp.eq.f32.partialorder %v3388, 0.0
      %v3546 = vand.u32 %v3388, 2147483648
      %v3547 = vsel %vm3545, %v3546, %v3544
      %v3548 = vrsqrt.pop %v3390
      %v3549 = vmul.f32 %v3390, %v3548
      %vm3550 = vcmp.eq.f32.partialorder %v3390, inf
      %v3551 = vsel %vm3550, %v3390, %v3549
      %vm3552 = vcmp.eq.f32.partialorder %v3390, 0.0
      %v3553 = vand.u32 %v3390, 2147483648
      %v3554 = vsel %vm3552, %v3553, %v3551
      %v3555 = vrsqrt.pop %v3392
      %v3556 = vmul.f32 %v3392, %v3555
      %vm3557 = vcmp.eq.f32.partialorder %v3392, inf
      %v3558 = vsel %vm3557, %v3392, %v3556
      %vm3559 = vcmp.eq.f32.partialorder %v3392, 0.0
      %v3560 = vand.u32 %v3392, 2147483648
      %v3561 = vsel %vm3559, %v3560, %v3558
      %v3562 = vrsqrt.pop %v3394
      %v3563 = vmul.f32 %v3394, %v3562
      %vm3564 = vcmp.eq.f32.partialorder %v3394, inf
      %v3565 = vsel %vm3564, %v3394, %v3563
      %vm3566 = vcmp.eq.f32.partialorder %v3394, 0.0
      %v3567 = vand.u32 %v3394, 2147483648
      %v3568 = vsel %vm3566, %v3567, %v3565
      %v3569 = vrsqrt.pop %v3396
      %v3570 = vmul.f32 %v3396, %v3569
      %vm3571 = vcmp.eq.f32.partialorder %v3396, inf
      %v3572 = vsel %vm3571, %v3396, %v3570
      %vm3573 = vcmp.eq.f32.partialorder %v3396, 0.0
      %v3574 = vand.u32 %v3396, 2147483648
      %v3575 = vsel %vm3573, %v3574, %v3572
      %v3576 = vrsqrt.pop %v3398
      %v3577 = vmul.f32 %v3398, %v3576
      %vm3578 = vcmp.eq.f32.partialorder %v3398, inf
      %v3579 = vsel %vm3578, %v3398, %v3577
      %vm3580 = vcmp.eq.f32.partialorder %v3398, 0.0
      %v3581 = vand.u32 %v3398, 2147483648
      %v3582 = vsel %vm3580, %v3581, %v3579
      %v3583 = vrsqrt.pop %v3400
      %v3584 = vmul.f32 %v3400, %v3583
      %vm3585 = vcmp.eq.f32.partialorder %v3400, inf
      %v3586 = vsel %vm3585, %v3400, %v3584
      %vm3587 = vcmp.eq.f32.partialorder %v3400, 0.0
      %v3588 = vand.u32 %v3400, 2147483648
      %v3589 = vsel %vm3587, %v3588, %v3586
      %v3590 = vrsqrt.pop %v3402
      %v3591 = vmul.f32 %v3402, %v3590
      %vm3592 = vcmp.eq.f32.partialorder %v3402, inf
      %v3593 = vsel %vm3592, %v3402, %v3591
      %vm3594 = vcmp.eq.f32.partialorder %v3402, 0.0
      %v3595 = vand.u32 %v3402, 2147483648
      %v3596 = vsel %vm3594, %v3595, %v3593
      %v3597 = vrsqrt.pop %v3404
      %v3598 = vmul.f32 %v3404, %v3597
      %vm3599 = vcmp.eq.f32.partialorder %v3404, inf
      %v3600 = vsel %vm3599, %v3404, %v3598
      %vm3601 = vcmp.eq.f32.partialorder %v3404, 0.0
      %v3602 = vand.u32 %v3404, 2147483648
      %v3603 = vsel %vm3601, %v3602, %v3600
      %v3604 = vrsqrt.pop %v3406
      %v3605 = vmul.f32 %v3406, %v3604
      %vm3606 = vcmp.eq.f32.partialorder %v3406, inf
      %v3607 = vsel %vm3606, %v3406, %v3605
      %vm3608 = vcmp.eq.f32.partialorder %v3406, 0.0
      %v3609 = vand.u32 %v3406, 2147483648
      %v3610 = vsel %vm3608, %v3609, %v3607
      %v3611 = vrsqrt.pop %v3408
      %v3612 = vmul.f32 %v3408, %v3611
      %vm3613 = vcmp.eq.f32.partialorder %v3408, inf
      %v3614 = vsel %vm3613, %v3408, %v3612
      %vm3615 = vcmp.eq.f32.partialorder %v3408, 0.0
      %v3616 = vand.u32 %v3408, 2147483648
      %v3617 = vsel %vm3615, %v3616, %v3614
      %v3618 = vrsqrt.pop %v3410
      %v3619 = vmul.f32 %v3410, %v3618
      %vm3620 = vcmp.eq.f32.partialorder %v3410, inf
      %v3621 = vsel %vm3620, %v3410, %v3619
      %vm3622 = vcmp.eq.f32.partialorder %v3410, 0.0
      %v3623 = vand.u32 %v3410, 2147483648
      %v3624 = vsel %vm3622, %v3623, %v3621
      %v3625 = vrsqrt.pop %v3412
      %v3626 = vmul.f32 %v3412, %v3625
      %vm3627 = vcmp.eq.f32.partialorder %v3412, inf
      %v3628 = vsel %vm3627, %v3412, %v3626
      %vm3629 = vcmp.eq.f32.partialorder %v3412, 0.0
      %v3630 = vand.u32 %v3412, 2147483648
      %v3631 = vsel %vm3629, %v3630, %v3628
      %v3632 = vrsqrt.pop %v3414
      %v3633 = vmul.f32 %v3414, %v3632
      %vm3634 = vcmp.eq.f32.partialorder %v3414, inf
      %v3635 = vsel %vm3634, %v3414, %v3633
      %vm3636 = vcmp.eq.f32.partialorder %v3414, 0.0
      %v3637 = vand.u32 %v3414, 2147483648
      %v3638 = vsel %vm3636, %v3637, %v3635
      %v3639 = vlaneseq
      %v3640 = vshrl.u32 %v3639, 7
      %v3641 = vsub.s32 0, %v3640
      %v3642 = vrot.slane %v3318, %v3641
      %v3643 = vadd.f32 %v3352, %v3642
      %v3644 = vadd.f32 %v3354, %v3642
      %v3645 = vadd.f32 %v3356, %v3642
      %v3646 = vadd.f32 %v3358, %v3642
      %v3647 = vadd.f32 %v3360, %v3642
      %v3648 = vadd.f32 %v3362, %v3642
      %v3649 = vadd.f32 %v3364, %v3642
      %v3650 = vadd.f32 %v3366, %v3642
      %v3651 = vadd.f32 %v3368, %v3642
      %v3652 = vadd.f32 %v3370, %v3642
      %v3653 = vadd.f32 %v3372, %v3642
      %v3654 = vadd.f32 %v3374, %v3642
      %v3655 = vadd.f32 %v3376, %v3642
      %v3656 = vadd.f32 %v3378, %v3642
      %v3657 = vadd.f32 %v3380, %v3642
      %v3658 = vadd.f32 %v3382, %v3642
      %v3659 = vadd.f32 %v3384, %v3642
      %v3660 = vadd.f32 %v3386, %v3642
      %v3661 = vadd.f32 %v3388, %v3642
      %v3662 = vadd.f32 %v3390, %v3642
      %v3663 = vadd.f32 %v3392, %v3642
      %v3664 = vadd.f32 %v3394, %v3642
      %v3665 = vadd.f32 %v3396, %v3642
      %v3666 = vadd.f32 %v3398, %v3642
      %v3667 = vadd.f32 %v3400, %v3642
      %v3668 = vadd.f32 %v3402, %v3642
      %v3669 = vadd.f32 %v3404, %v3642
      %v3670 = vadd.f32 %v3406, %v3642
      %v3671 = vadd.f32 %v3408, %v3642
      %v3672 = vadd.f32 %v3410, %v3642
      %v3673 = vadd.f32 %v3412, %v3642
      %v3674 = vadd.f32 %v3414, %v3642
      %v3675 = vmul.f32 %v3160, 2.0
      %v3676 = vmul.f32 %v3165, 2.0
      %v3677 = vmul.f32 %v3170, 2.0
      %v3678 = vmul.f32 %v3175, 2.0
      %v3679 = vmul.f32 %v3180, 2.0
      %v3680 = vmul.f32 %v3185, 2.0
      %v3681 = vmul.f32 %v3190, 2.0
      %v3682 = vmul.f32 %v3195, 2.0
      %v3683 = vmul.f32 %v3200, 2.0
      %v3684 = vmul.f32 %v3205, 2.0
      %v3685 = vmul.f32 %v3210, 2.0
      %v3686 = vmul.f32 %v3215, 2.0
      %v3687 = vmul.f32 %v3220, 2.0
      %v3688 = vmul.f32 %v3225, 2.0
      %v3689 = vmul.f32 %v3230, 2.0
      %v3690 = vmul.f32 %v3235, 2.0
      %v3691 = vmul.f32 %v3240, 2.0
      %v3692 = vmul.f32 %v3245, 2.0
      %v3693 = vmul.f32 %v3250, 2.0
      %v3694 = vmul.f32 %v3255, 2.0
      %v3695 = vmul.f32 %v3260, 2.0
      %v3696 = vmul.f32 %v3265, 2.0
      %v3697 = vmul.f32 %v3270, 2.0
      %v3698 = vmul.f32 %v3275, 2.0
      %v3699 = vmul.f32 %v3280, 2.0
      %v3700 = vmul.f32 %v3285, 2.0
      %v3701 = vmul.f32 %v3290, 2.0
      %v3702 = vmul.f32 %v3295, 2.0
      %v3703 = vmul.f32 %v3300, 2.0
      %v3704 = vmul.f32 %v3305, 2.0
      %v3705 = vmul.f32 %v3310, 2.0
      %v3706 = vmul.f32 %v3315, 2.0
      %v3707 = vsub.f32 %v3643, %v3675
      %v3708 = vsub.f32 %v3644, %v3676
      %v3709 = vsub.f32 %v3645, %v3677
      %v3710 = vsub.f32 %v3646, %v3678
      %v3711 = vsub.f32 %v3647, %v3679
      %v3712 = vsub.f32 %v3648, %v3680
      %v3713 = vsub.f32 %v3649, %v3681
      %v3714 = vsub.f32 %v3650, %v3682
      %v3715 = vsub.f32 %v3651, %v3683
      %v3716 = vsub.f32 %v3652, %v3684
      %v3717 = vsub.f32 %v3653, %v3685
      %v3718 = vsub.f32 %v3654, %v3686
      %v3719 = vsub.f32 %v3655, %v3687
      %v3720 = vsub.f32 %v3656, %v3688
      %v3721 = vsub.f32 %v3657, %v3689
      %v3722 = vsub.f32 %v3658, %v3690
      %v3723 = vsub.f32 %v3659, %v3691
      %v3724 = vsub.f32 %v3660, %v3692
      %v3725 = vsub.f32 %v3661, %v3693
      %v3726 = vsub.f32 %v3662, %v3694
      %v3727 = vsub.f32 %v3663, %v3695
      %v3728 = vsub.f32 %v3664, %v3696
      %v3729 = vsub.f32 %v3665, %v3697
      %v3730 = vsub.f32 %v3666, %v3698
      %v3731 = vsub.f32 %v3667, %v3699
      %v3732 = vsub.f32 %v3668, %v3700
      %v3733 = vsub.f32 %v3669, %v3701
      %v3734 = vsub.f32 %v3670, %v3702
      %v3735 = vsub.f32 %v3671, %v3703
      %v3736 = vsub.f32 %v3672, %v3704
      %v3737 = vsub.f32 %v3673, %v3705
      %v3738 = vsub.f32 %v3674, %v3706
      %v3739 = vmax.f32 %v3707, 0.0
      %v3740 = vmax.f32 %v3708, 0.0
      %v3741 = vmax.f32 %v3709, 0.0
      %v3742 = vmax.f32 %v3710, 0.0
      %v3743 = vmax.f32 %v3711, 0.0
      %v3744 = vmax.f32 %v3712, 0.0
      %v3745 = vmax.f32 %v3713, 0.0
      %v3746 = vmax.f32 %v3714, 0.0
      %v3747 = vmax.f32 %v3715, 0.0
      %v3748 = vmax.f32 %v3716, 0.0
      %v3749 = vmax.f32 %v3717, 0.0
      %v3750 = vmax.f32 %v3718, 0.0
      %v3751 = vmax.f32 %v3719, 0.0
      %v3752 = vmax.f32 %v3720, 0.0
      %v3753 = vmax.f32 %v3721, 0.0
      %v3754 = vmax.f32 %v3722, 0.0
      %v3755 = vmax.f32 %v3723, 0.0
      %v3756 = vmax.f32 %v3724, 0.0
      %v3757 = vmax.f32 %v3725, 0.0
      %v3758 = vmax.f32 %v3726, 0.0
      %v3759 = vmax.f32 %v3727, 0.0
      %v3760 = vmax.f32 %v3728, 0.0
      %v3761 = vmax.f32 %v3729, 0.0
      %v3762 = vmax.f32 %v3730, 0.0
      %v3763 = vmax.f32 %v3731, 0.0
      %v3764 = vmax.f32 %v3732, 0.0
      %v3765 = vmax.f32 %v3733, 0.0
      %v3766 = vmax.f32 %v3734, 0.0
      %v3767 = vmax.f32 %v3735, 0.0
      %v3768 = vmax.f32 %v3736, 0.0
      %v3769 = vmax.f32 %v3737, 0.0
      %v3770 = vmax.f32 %v3738, 0.0
      %v3771 = vrsqrt.pop %v3739
      %v3772 = vmul.f32 %v3739, %v3771
      %vm3773 = vcmp.eq.f32.partialorder %v3739, inf
      %v3774 = vsel %vm3773, %v3739, %v3772
      %vm3775 = vcmp.eq.f32.partialorder %v3739, 0.0
      %v3776 = vand.u32 %v3739, 2147483648
      %v3777 = vsel %vm3775, %v3776, %v3774
      %v3778 = vrsqrt.pop %v3740
      %v3779 = vmul.f32 %v3740, %v3778
      %vm3780 = vcmp.eq.f32.partialorder %v3740, inf
      %v3781 = vsel %vm3780, %v3740, %v3779
      %vm3782 = vcmp.eq.f32.partialorder %v3740, 0.0
      %v3783 = vand.u32 %v3740, 2147483648
      %v3784 = vsel %vm3782, %v3783, %v3781
      %v3785 = vrsqrt.pop %v3741
      %v3786 = vmul.f32 %v3741, %v3785
      %vm3787 = vcmp.eq.f32.partialorder %v3741, inf
      %v3788 = vsel %vm3787, %v3741, %v3786
      %vm3789 = vcmp.eq.f32.partialorder %v3741, 0.0
      %v3790 = vand.u32 %v3741, 2147483648
      %v3791 = vsel %vm3789, %v3790, %v3788
      %v3792 = vrsqrt.pop %v3742
      %v3793 = vmul.f32 %v3742, %v3792
      %vm3794 = vcmp.eq.f32.partialorder %v3742, inf
      %v3795 = vsel %vm3794, %v3742, %v3793
      %vm3796 = vcmp.eq.f32.partialorder %v3742, 0.0
      %v3797 = vand.u32 %v3742, 2147483648
      %v3798 = vsel %vm3796, %v3797, %v3795
      %v3799 = vrsqrt.pop %v3743
      %v3800 = vmul.f32 %v3743, %v3799
      %vm3801 = vcmp.eq.f32.partialorder %v3743, inf
      %v3802 = vsel %vm3801, %v3743, %v3800
      %vm3803 = vcmp.eq.f32.partialorder %v3743, 0.0
      %v3804 = vand.u32 %v3743, 2147483648
      %v3805 = vsel %vm3803, %v3804, %v3802
      %v3806 = vrsqrt.pop %v3744
      %v3807 = vmul.f32 %v3744, %v3806
      %vm3808 = vcmp.eq.f32.partialorder %v3744, inf
      %v3809 = vsel %vm3808, %v3744, %v3807
      %vm3810 = vcmp.eq.f32.partialorder %v3744, 0.0
      %v3811 = vand.u32 %v3744, 2147483648
      %v3812 = vsel %vm3810, %v3811, %v3809
      %v3813 = vrsqrt.pop %v3745
      %v3814 = vmul.f32 %v3745, %v3813
      %vm3815 = vcmp.eq.f32.partialorder %v3745, inf
      %v3816 = vsel %vm3815, %v3745, %v3814
      %vm3817 = vcmp.eq.f32.partialorder %v3745, 0.0
      %v3818 = vand.u32 %v3745, 2147483648
      %v3819 = vsel %vm3817, %v3818, %v3816
      %v3820 = vrsqrt.pop %v3746
      %v3821 = vmul.f32 %v3746, %v3820
      %vm3822 = vcmp.eq.f32.partialorder %v3746, inf
      %v3823 = vsel %vm3822, %v3746, %v3821
      %vm3824 = vcmp.eq.f32.partialorder %v3746, 0.0
      %v3825 = vand.u32 %v3746, 2147483648
      %v3826 = vsel %vm3824, %v3825, %v3823
      %v3827 = vrsqrt.pop %v3747
      %v3828 = vmul.f32 %v3747, %v3827
      %vm3829 = vcmp.eq.f32.partialorder %v3747, inf
      %v3830 = vsel %vm3829, %v3747, %v3828
      %vm3831 = vcmp.eq.f32.partialorder %v3747, 0.0
      %v3832 = vand.u32 %v3747, 2147483648
      %v3833 = vsel %vm3831, %v3832, %v3830
      %v3834 = vrsqrt.pop %v3748
      %v3835 = vmul.f32 %v3748, %v3834
      %vm3836 = vcmp.eq.f32.partialorder %v3748, inf
      %v3837 = vsel %vm3836, %v3748, %v3835
      %vm3838 = vcmp.eq.f32.partialorder %v3748, 0.0
      %v3839 = vand.u32 %v3748, 2147483648
      %v3840 = vsel %vm3838, %v3839, %v3837
      %v3841 = vrsqrt.pop %v3749
      %v3842 = vmul.f32 %v3749, %v3841
      %vm3843 = vcmp.eq.f32.partialorder %v3749, inf
      %v3844 = vsel %vm3843, %v3749, %v3842
      %vm3845 = vcmp.eq.f32.partialorder %v3749, 0.0
      %v3846 = vand.u32 %v3749, 2147483648
      %v3847 = vsel %vm3845, %v3846, %v3844
      %v3848 = vrsqrt.pop %v3750
      %v3849 = vmul.f32 %v3750, %v3848
      %vm3850 = vcmp.eq.f32.partialorder %v3750, inf
      %v3851 = vsel %vm3850, %v3750, %v3849
      %vm3852 = vcmp.eq.f32.partialorder %v3750, 0.0
      %v3853 = vand.u32 %v3750, 2147483648
      %v3854 = vsel %vm3852, %v3853, %v3851
      %v3855 = vrsqrt.pop %v3751
      %v3856 = vmul.f32 %v3751, %v3855
      %vm3857 = vcmp.eq.f32.partialorder %v3751, inf
      %v3858 = vsel %vm3857, %v3751, %v3856
      %vm3859 = vcmp.eq.f32.partialorder %v3751, 0.0
      %v3860 = vand.u32 %v3751, 2147483648
      %v3861 = vsel %vm3859, %v3860, %v3858
      %v3862 = vrsqrt.pop %v3752
      %v3863 = vmul.f32 %v3752, %v3862
      %vm3864 = vcmp.eq.f32.partialorder %v3752, inf
      %v3865 = vsel %vm3864, %v3752, %v3863
      %vm3866 = vcmp.eq.f32.partialorder %v3752, 0.0
      %v3867 = vand.u32 %v3752, 2147483648
      %v3868 = vsel %vm3866, %v3867, %v3865
      %v3869 = vrsqrt.pop %v3753
      %v3870 = vmul.f32 %v3753, %v3869
      %vm3871 = vcmp.eq.f32.partialorder %v3753, inf
      %v3872 = vsel %vm3871, %v3753, %v3870
      %vm3873 = vcmp.eq.f32.partialorder %v3753, 0.0
      %v3874 = vand.u32 %v3753, 2147483648
      %v3875 = vsel %vm3873, %v3874, %v3872
      %v3876 = vrsqrt.pop %v3754
      %v3877 = vmul.f32 %v3754, %v3876
      %vm3878 = vcmp.eq.f32.partialorder %v3754, inf
      %v3879 = vsel %vm3878, %v3754, %v3877
      %vm3880 = vcmp.eq.f32.partialorder %v3754, 0.0
      %v3881 = vand.u32 %v3754, 2147483648
      %v3882 = vsel %vm3880, %v3881, %v3879
      %v3883 = vrsqrt.pop %v3755
      %v3884 = vmul.f32 %v3755, %v3883
      %vm3885 = vcmp.eq.f32.partialorder %v3755, inf
      %v3886 = vsel %vm3885, %v3755, %v3884
      %vm3887 = vcmp.eq.f32.partialorder %v3755, 0.0
      %v3888 = vand.u32 %v3755, 2147483648
      %v3889 = vsel %vm3887, %v3888, %v3886
      %v3890 = vrsqrt.pop %v3756
      %v3891 = vmul.f32 %v3756, %v3890
      %vm3892 = vcmp.eq.f32.partialorder %v3756, inf
      %v3893 = vsel %vm3892, %v3756, %v3891
      %vm3894 = vcmp.eq.f32.partialorder %v3756, 0.0
      %v3895 = vand.u32 %v3756, 2147483648
      %v3896 = vsel %vm3894, %v3895, %v3893
      %v3897 = vrsqrt.pop %v3757
      %v3898 = vmul.f32 %v3757, %v3897
      %vm3899 = vcmp.eq.f32.partialorder %v3757, inf
      %v3900 = vsel %vm3899, %v3757, %v3898
      %vm3901 = vcmp.eq.f32.partialorder %v3757, 0.0
      %v3902 = vand.u32 %v3757, 2147483648
      %v3903 = vsel %vm3901, %v3902, %v3900
      %v3904 = vrsqrt.pop %v3758
      %v3905 = vmul.f32 %v3758, %v3904
      %vm3906 = vcmp.eq.f32.partialorder %v3758, inf
      %v3907 = vsel %vm3906, %v3758, %v3905
      %vm3908 = vcmp.eq.f32.partialorder %v3758, 0.0
      %v3909 = vand.u32 %v3758, 2147483648
      %v3910 = vsel %vm3908, %v3909, %v3907
      %v3911 = vrsqrt.pop %v3759
      %v3912 = vmul.f32 %v3759, %v3911
      %vm3913 = vcmp.eq.f32.partialorder %v3759, inf
      %v3914 = vsel %vm3913, %v3759, %v3912
      %vm3915 = vcmp.eq.f32.partialorder %v3759, 0.0
      %v3916 = vand.u32 %v3759, 2147483648
      %v3917 = vsel %vm3915, %v3916, %v3914
      %v3918 = vrsqrt.pop %v3760
      %v3919 = vmul.f32 %v3760, %v3918
      %vm3920 = vcmp.eq.f32.partialorder %v3760, inf
      %v3921 = vsel %vm3920, %v3760, %v3919
      %vm3922 = vcmp.eq.f32.partialorder %v3760, 0.0
      %v3923 = vand.u32 %v3760, 2147483648
      %v3924 = vsel %vm3922, %v3923, %v3921
      %v3925 = vrsqrt.pop %v3761
      %v3926 = vmul.f32 %v3761, %v3925
      %vm3927 = vcmp.eq.f32.partialorder %v3761, inf
      %v3928 = vsel %vm3927, %v3761, %v3926
      %vm3929 = vcmp.eq.f32.partialorder %v3761, 0.0
      %v3930 = vand.u32 %v3761, 2147483648
      %v3931 = vsel %vm3929, %v3930, %v3928
      %v3932 = vrsqrt.pop %v3762
      %v3933 = vmul.f32 %v3762, %v3932
      %vm3934 = vcmp.eq.f32.partialorder %v3762, inf
      %v3935 = vsel %vm3934, %v3762, %v3933
      %vm3936 = vcmp.eq.f32.partialorder %v3762, 0.0
      %v3937 = vand.u32 %v3762, 2147483648
      %v3938 = vsel %vm3936, %v3937, %v3935
      %v3939 = vrsqrt.pop %v3763
      %v3940 = vmul.f32 %v3763, %v3939
      %vm3941 = vcmp.eq.f32.partialorder %v3763, inf
      %v3942 = vsel %vm3941, %v3763, %v3940
      %vm3943 = vcmp.eq.f32.partialorder %v3763, 0.0
      %v3944 = vand.u32 %v3763, 2147483648
      %v3945 = vsel %vm3943, %v3944, %v3942
      %v3946 = vrsqrt.pop %v3764
      %v3947 = vmul.f32 %v3764, %v3946
      %vm3948 = vcmp.eq.f32.partialorder %v3764, inf
      %v3949 = vsel %vm3948, %v3764, %v3947
      %vm3950 = vcmp.eq.f32.partialorder %v3764, 0.0
      %v3951 = vand.u32 %v3764, 2147483648
      %v3952 = vsel %vm3950, %v3951, %v3949
      %v3953 = vrsqrt.pop %v3765
      %v3954 = vmul.f32 %v3765, %v3953
      %vm3955 = vcmp.eq.f32.partialorder %v3765, inf
      %v3956 = vsel %vm3955, %v3765, %v3954
      %vm3957 = vcmp.eq.f32.partialorder %v3765, 0.0
      %v3958 = vand.u32 %v3765, 2147483648
      %v3959 = vsel %vm3957, %v3958, %v3956
      %v3960 = vrsqrt.pop %v3766
      %v3961 = vmul.f32 %v3766, %v3960
      %vm3962 = vcmp.eq.f32.partialorder %v3766, inf
      %v3963 = vsel %vm3962, %v3766, %v3961
      %vm3964 = vcmp.eq.f32.partialorder %v3766, 0.0
      %v3965 = vand.u32 %v3766, 2147483648
      %v3966 = vsel %vm3964, %v3965, %v3963
      %v3967 = vrsqrt.pop %v3767
      %v3968 = vmul.f32 %v3767, %v3967
      %vm3969 = vcmp.eq.f32.partialorder %v3767, inf
      %v3970 = vsel %vm3969, %v3767, %v3968
      %vm3971 = vcmp.eq.f32.partialorder %v3767, 0.0
      %v3972 = vand.u32 %v3767, 2147483648
      %v3973 = vsel %vm3971, %v3972, %v3970
      %v3974 = vrsqrt.pop %v3768
      %v3975 = vmul.f32 %v3768, %v3974
      %vm3976 = vcmp.eq.f32.partialorder %v3768, inf
      %v3977 = vsel %vm3976, %v3768, %v3975
      %vm3978 = vcmp.eq.f32.partialorder %v3768, 0.0
      %v3979 = vand.u32 %v3768, 2147483648
      %v3980 = vsel %vm3978, %v3979, %v3977
      %v3981 = vrsqrt.pop %v3769
      %v3982 = vmul.f32 %v3769, %v3981
      %vm3983 = vcmp.eq.f32.partialorder %v3769, inf
      %v3984 = vsel %vm3983, %v3769, %v3982
      %vm3985 = vcmp.eq.f32.partialorder %v3769, 0.0
      %v3986 = vand.u32 %v3769, 2147483648
      %v3987 = vsel %vm3985, %v3986, %v3984
      %v3988 = vrsqrt.pop %v3770
      %v3989 = vmul.f32 %v3770, %v3988
      %vm3990 = vcmp.eq.f32.partialorder %v3770, inf
      %v3991 = vsel %vm3990, %v3770, %v3989
      %vm3992 = vcmp.eq.f32.partialorder %v3770, 0.0
      %v3993 = vand.u32 %v3770, 2147483648
      %v3994 = vsel %vm3992, %v3993, %v3991
      %v3995 = vsub.f32 0.0, %v3777
      %v3996 = vsub.f32 0.0, %v3784
      %v3997 = vsub.f32 0.0, %v3791
      %v3998 = vsub.f32 0.0, %v3798
      %v3999 = vsub.f32 0.0, %v3805
      %v4000 = vsub.f32 0.0, %v3812
      %v4001 = vsub.f32 0.0, %v3819
      %v4002 = vsub.f32 0.0, %v3826
      %v4003 = vsub.f32 0.0, %v3833
      %v4004 = vsub.f32 0.0, %v3840
      %v4005 = vsub.f32 0.0, %v3847
      %v4006 = vsub.f32 0.0, %v3854
      %v4007 = vsub.f32 0.0, %v3861
      %v4008 = vsub.f32 0.0, %v3868
      %v4009 = vsub.f32 0.0, %v3875
      %v4010 = vsub.f32 0.0, %v3882
      %v4011 = vsub.f32 0.0, %v3889
      %v4012 = vsub.f32 0.0, %v3896
      %v4013 = vsub.f32 0.0, %v3903
      %v4014 = vsub.f32 0.0, %v3910
      %v4015 = vsub.f32 0.0, %v3917
      %v4016 = vsub.f32 0.0, %v3924
      %v4017 = vsub.f32 0.0, %v3931
      %v4018 = vsub.f32 0.0, %v3938
      %v4019 = vsub.f32 0.0, %v3945
      %v4020 = vsub.f32 0.0, %v3952
      %v4021 = vsub.f32 0.0, %v3959
      %v4022 = vsub.f32 0.0, %v3966
      %v4023 = vsub.f32 0.0, %v3973
      %v4024 = vsub.f32 0.0, %v3980
      %v4025 = vsub.f32 0.0, %v3987
      %v4026 = vsub.f32 0.0, %v3994
      %v4027 = vlaneseq
      %v4028 = vshrl.u32 %v4027, 7
      %v4029 = vsub.s32 2, %v4028
      %v4030 = vrot.slane %v3318, %v4029
      %v4031 = vadd.f32 %v3995, %v4030
      %v4032 = vadd.f32 %v3996, %v4030
      %v4033 = vadd.f32 %v3997, %v4030
      %v4034 = vadd.f32 %v3998, %v4030
      %v4035 = vadd.f32 %v3999, %v4030
      %v4036 = vadd.f32 %v4000, %v4030
      %v4037 = vadd.f32 %v4001, %v4030
      %v4038 = vadd.f32 %v4002, %v4030
      %v4039 = vadd.f32 %v4003, %v4030
      %v4040 = vadd.f32 %v4004, %v4030
      %v4041 = vadd.f32 %v4005, %v4030
      %v4042 = vadd.f32 %v4006, %v4030
      %v4043 = vadd.f32 %v4007, %v4030
      %v4044 = vadd.f32 %v4008, %v4030
      %v4045 = vadd.f32 %v4009, %v4030
      %v4046 = vadd.f32 %v4010, %v4030
      %v4047 = vadd.f32 %v4011, %v4030
      %v4048 = vadd.f32 %v4012, %v4030
      %v4049 = vadd.f32 %v4013, %v4030
      %v4050 = vadd.f32 %v4014, %v4030
      %v4051 = vadd.f32 %v4015, %v4030
      %v4052 = vadd.f32 %v4016, %v4030
      %v4053 = vadd.f32 %v4017, %v4030
      %v4054 = vadd.f32 %v4018, %v4030
      %v4055 = vadd.f32 %v4019, %v4030
      %v4056 = vadd.f32 %v4020, %v4030
      %v4057 = vadd.f32 %v4021, %v4030
      %v4058 = vadd.f32 %v4022, %v4030
      %v4059 = vadd.f32 %v4023, %v4030
      %v4060 = vadd.f32 %v4024, %v4030
      %v4061 = vadd.f32 %v4025, %v4030
      %v4062 = vadd.f32 %v4026, %v4030
      %v4063 = vlaneseq
      %v4064 = vshrl.u32 %v4063, 7
      %v4065 = vsub.s32 1, %v4064
      %v4066 = vrot.slane %v3318, %v4065
      %v4067 = vmul.f32 %v3421, %v4066
      %v4068 = vmul.f32 %v3428, %v4066
      %v4069 = vmul.f32 %v3435, %v4066
      %v4070 = vmul.f32 %v3442, %v4066
      %v4071 = vmul.f32 %v3449, %v4066
      %v4072 = vmul.f32 %v3456, %v4066
      %v4073 = vmul.f32 %v3463, %v4066
      %v4074 = vmul.f32 %v3470, %v4066
      %v4075 = vmul.f32 %v3477, %v4066
      %v4076 = vmul.f32 %v3484, %v4066
      %v4077 = vmul.f32 %v3491, %v4066
      %v4078 = vmul.f32 %v3498, %v4066
      %v4079 = vmul.f32 %v3505, %v4066
      %v4080 = vmul.f32 %v3512, %v4066
      %v4081 = vmul.f32 %v3519, %v4066
      %v4082 = vmul.f32 %v3526, %v4066
      %v4083 = vmul.f32 %v3533, %v4066
      %v4084 = vmul.f32 %v3540, %v4066
      %v4085 = vmul.f32 %v3547, %v4066
      %v4086 = vmul.f32 %v3554, %v4066
      %v4087 = vmul.f32 %v3561, %v4066
      %v4088 = vmul.f32 %v3568, %v4066
      %v4089 = vmul.f32 %v3575, %v4066
      %v4090 = vmul.f32 %v3582, %v4066
      %v4091 = vmul.f32 %v3589, %v4066
      %v4092 = vmul.f32 %v3596, %v4066
      %v4093 = vmul.f32 %v3603, %v4066
      %v4094 = vmul.f32 %v3610, %v4066
      %v4095 = vmul.f32 %v3617, %v4066
      %v4096 = vmul.f32 %v3624, %v4066
      %v4097 = vmul.f32 %v3631, %v4066
      %v4098 = vmul.f32 %v3638, %v4066
      %v4099 = vmax.f32 %v4067, 1e-06
      %v4100 = vmax.f32 %v4068, 1e-06
      %v4101 = vmax.f32 %v4069, 1e-06
      %v4102 = vmax.f32 %v4070, 1e-06
      %v4103 = vmax.f32 %v4071, 1e-06
      %v4104 = vmax.f32 %v4072, 1e-06
      %v4105 = vmax.f32 %v4073, 1e-06
      %v4106 = vmax.f32 %v4074, 1e-06
      %v4107 = vmax.f32 %v4075, 1e-06
      %v4108 = vmax.f32 %v4076, 1e-06
      %v4109 = vmax.f32 %v4077, 1e-06
      %v4110 = vmax.f32 %v4078, 1e-06
      %v4111 = vmax.f32 %v4079, 1e-06
      %v4112 = vmax.f32 %v4080, 1e-06
      %v4113 = vmax.f32 %v4081, 1e-06
      %v4114 = vmax.f32 %v4082, 1e-06
      %v4115 = vmax.f32 %v4083, 1e-06
      %v4116 = vmax.f32 %v4084, 1e-06
      %v4117 = vmax.f32 %v4085, 1e-06
      %v4118 = vmax.f32 %v4086, 1e-06
      %v4119 = vmax.f32 %v4087, 1e-06
      %v4120 = vmax.f32 %v4088, 1e-06
      %v4121 = vmax.f32 %v4089, 1e-06
      %v4122 = vmax.f32 %v4090, 1e-06
      %v4123 = vmax.f32 %v4091, 1e-06
      %v4124 = vmax.f32 %v4092, 1e-06
      %v4125 = vmax.f32 %v4093, 1e-06
      %v4126 = vmax.f32 %v4094, 1e-06
      %v4127 = vmax.f32 %v4095, 1e-06
      %v4128 = vmax.f32 %v4096, 1e-06
      %v4129 = vmax.f32 %v4097, 1e-06
      %v4130 = vmax.f32 %v4098, 1e-06
      %v4131 = vrcp.pop %v4099
      %v4132 = vmul.f32 %v3160, %v4131
      %v4133 = vrcp.pop %v4100
      %v4134 = vmul.f32 %v3165, %v4133
      %v4135 = vrcp.pop %v4101
      %v4136 = vmul.f32 %v3170, %v4135
      %v4137 = vrcp.pop %v4102
      %v4138 = vmul.f32 %v3175, %v4137
      %v4139 = vrcp.pop %v4103
      %v4140 = vmul.f32 %v3180, %v4139
      %v4141 = vrcp.pop %v4104
      %v4142 = vmul.f32 %v3185, %v4141
      %v4143 = vrcp.pop %v4105
      %v4144 = vmul.f32 %v3190, %v4143
      %v4145 = vrcp.pop %v4106
      %v4146 = vmul.f32 %v3195, %v4145
      %v4147 = vrcp.pop %v4107
      %v4148 = vmul.f32 %v3200, %v4147
      %v4149 = vrcp.pop %v4108
      %v4150 = vmul.f32 %v3205, %v4149
      %v4151 = vrcp.pop %v4109
      %v4152 = vmul.f32 %v3210, %v4151
      %v4153 = vrcp.pop %v4110
      %v4154 = vmul.f32 %v3215, %v4153
      %v4155 = vrcp.pop %v4111
      %v4156 = vmul.f32 %v3220, %v4155
      %v4157 = vrcp.pop %v4112
      %v4158 = vmul.f32 %v3225, %v4157
      %v4159 = vrcp.pop %v4113
      %v4160 = vmul.f32 %v3230, %v4159
      %v4161 = vrcp.pop %v4114
      %v4162 = vmul.f32 %v3235, %v4161
      %v4163 = vrcp.pop %v4115
      %v4164 = vmul.f32 %v3240, %v4163
      %v4165 = vrcp.pop %v4116
      %v4166 = vmul.f32 %v3245, %v4165
      %v4167 = vrcp.pop %v4117
      %v4168 = vmul.f32 %v3250, %v4167
      %v4169 = vrcp.pop %v4118
      %v4170 = vmul.f32 %v3255, %v4169
      %v4171 = vrcp.pop %v4119
      %v4172 = vmul.f32 %v3260, %v4171
      %v4173 = vrcp.pop %v4120
      %v4174 = vmul.f32 %v3265, %v4173
      %v4175 = vrcp.pop %v4121
      %v4176 = vmul.f32 %v3270, %v4175
      %v4177 = vrcp.pop %v4122
      %v4178 = vmul.f32 %v3275, %v4177
      %v4179 = vrcp.pop %v4123
      %v4180 = vmul.f32 %v3280, %v4179
      %v4181 = vrcp.pop %v4124
      %v4182 = vmul.f32 %v3285, %v4181
      %v4183 = vrcp.pop %v4125
      %v4184 = vmul.f32 %v3290, %v4183
      %v4185 = vrcp.pop %v4126
      %v4186 = vmul.f32 %v3295, %v4185
      %v4187 = vrcp.pop %v4127
      %v4188 = vmul.f32 %v3300, %v4187
      %v4189 = vrcp.pop %v4128
      %v4190 = vmul.f32 %v3305, %v4189
      %v4191 = vrcp.pop %v4129
      %v4192 = vmul.f32 %v3310, %v4191
      %v4193 = vrcp.pop %v4130
      %v4194 = vmul.f32 %v3315, %v4193
      %v4195 = vadd.f32 %v4132, %v4030
      %v4196 = vadd.f32 %v4134, %v4030
      %v4197 = vadd.f32 %v4136, %v4030
      %v4198 = vadd.f32 %v4138, %v4030
      %v4199 = vadd.f32 %v4140, %v4030
      %v4200 = vadd.f32 %v4142, %v4030
      %v4201 = vadd.f32 %v4144, %v4030
      %v4202 = vadd.f32 %v4146, %v4030
      %v4203 = vadd.f32 %v4148, %v4030
      %v4204 = vadd.f32 %v4150, %v4030
      %v4205 = vadd.f32 %v4152, %v4030
      %v4206 = vadd.f32 %v4154, %v4030
      %v4207 = vadd.f32 %v4156, %v4030
      %v4208 = vadd.f32 %v4158, %v4030
      %v4209 = vadd.f32 %v4160, %v4030
      %v4210 = vadd.f32 %v4162, %v4030
      %v4211 = vadd.f32 %v4164, %v4030
      %v4212 = vadd.f32 %v4166, %v4030
      %v4213 = vadd.f32 %v4168, %v4030
      %v4214 = vadd.f32 %v4170, %v4030
      %v4215 = vadd.f32 %v4172, %v4030
      %v4216 = vadd.f32 %v4174, %v4030
      %v4217 = vadd.f32 %v4176, %v4030
      %v4218 = vadd.f32 %v4178, %v4030
      %v4219 = vadd.f32 %v4180, %v4030
      %v4220 = vadd.f32 %v4182, %v4030
      %v4221 = vadd.f32 %v4184, %v4030
      %v4222 = vadd.f32 %v4186, %v4030
      %v4223 = vadd.f32 %v4188, %v4030
      %v4224 = vadd.f32 %v4190, %v4030
      %v4225 = vadd.f32 %v4192, %v4030
      %v4226 = vadd.f32 %v4194, %v4030
      %4227 = vmax.xlane.f32.xlu0 %v4031
      %v4228 = vpop.xlane.xlu0 %4227
      %4229 = vmax.xlane.f32.xlu0 %v4032
      %v4230 = vpop.xlane.xlu0 %4229
      %4231 = vmax.xlane.f32.xlu0 %v4033
      %v4232 = vpop.xlane.xlu0 %4231
      %4233 = vmax.xlane.f32.xlu0 %v4034
      %v4234 = vpop.xlane.xlu0 %4233
      %4235 = vmax.xlane.f32.xlu0 %v4035
      %v4236 = vpop.xlane.xlu0 %4235
      %4237 = vmax.xlane.f32.xlu0 %v4036
      %v4238 = vpop.xlane.xlu0 %4237
      %4239 = vmax.xlane.f32.xlu0 %v4037
      %v4240 = vpop.xlane.xlu0 %4239
      %4241 = vmax.xlane.f32.xlu0 %v4038
      %v4242 = vpop.xlane.xlu0 %4241
      %4243 = vmax.xlane.f32.xlu0 %v4039
      %v4244 = vpop.xlane.xlu0 %4243
      %4245 = vmax.xlane.f32.xlu0 %v4040
      %v4246 = vpop.xlane.xlu0 %4245
      %4247 = vmax.xlane.f32.xlu0 %v4041
      %v4248 = vpop.xlane.xlu0 %4247
      %4249 = vmax.xlane.f32.xlu0 %v4042
      %v4250 = vpop.xlane.xlu0 %4249
      %4251 = vmax.xlane.f32.xlu0 %v4043
      %v4252 = vpop.xlane.xlu0 %4251
      %4253 = vmax.xlane.f32.xlu0 %v4044
      %v4254 = vpop.xlane.xlu0 %4253
      %4255 = vmax.xlane.f32.xlu0 %v4045
      %v4256 = vpop.xlane.xlu0 %4255
      %4257 = vmax.xlane.f32.xlu0 %v4046
      %v4258 = vpop.xlane.xlu0 %4257
      %4259 = vmax.xlane.f32.xlu0 %v4047
      %v4260 = vpop.xlane.xlu0 %4259
      %4261 = vmax.xlane.f32.xlu0 %v4048
      %v4262 = vpop.xlane.xlu0 %4261
      %4263 = vmax.xlane.f32.xlu0 %v4049
      %v4264 = vpop.xlane.xlu0 %4263
      %4265 = vmax.xlane.f32.xlu0 %v4050
      %v4266 = vpop.xlane.xlu0 %4265
      %4267 = vmax.xlane.f32.xlu0 %v4051
      %v4268 = vpop.xlane.xlu0 %4267
      %4269 = vmax.xlane.f32.xlu0 %v4052
      %v4270 = vpop.xlane.xlu0 %4269
      %4271 = vmax.xlane.f32.xlu0 %v4053
      %v4272 = vpop.xlane.xlu0 %4271
      %4273 = vmax.xlane.f32.xlu0 %v4054
      %v4274 = vpop.xlane.xlu0 %4273
      %4275 = vmax.xlane.f32.xlu0 %v4055
      %v4276 = vpop.xlane.xlu0 %4275
      %4277 = vmax.xlane.f32.xlu0 %v4056
      %v4278 = vpop.xlane.xlu0 %4277
      %4279 = vmax.xlane.f32.xlu0 %v4057
      %v4280 = vpop.xlane.xlu0 %4279
      %4281 = vmax.xlane.f32.xlu0 %v4058
      %v4282 = vpop.xlane.xlu0 %4281
      %4283 = vmax.xlane.f32.xlu0 %v4059
      %v4284 = vpop.xlane.xlu0 %4283
      %4285 = vmax.xlane.f32.xlu0 %v4060
      %v4286 = vpop.xlane.xlu0 %4285
      %4287 = vmax.xlane.f32.xlu0 %v4061
      %v4288 = vpop.xlane.xlu0 %4287
      %4289 = vmax.xlane.f32.xlu0 %v4062
      %v4290 = vpop.xlane.xlu0 %4289
      %v4291 = vsub.f32 %v4031, %v4228
      %v4292 = vsub.f32 %v4032, %v4230
      %v4293 = vsub.f32 %v4033, %v4232
      %v4294 = vsub.f32 %v4034, %v4234
      %v4295 = vsub.f32 %v4035, %v4236
      %v4296 = vsub.f32 %v4036, %v4238
      %v4297 = vsub.f32 %v4037, %v4240
      %v4298 = vsub.f32 %v4038, %v4242
      %v4299 = vsub.f32 %v4039, %v4244
      %v4300 = vsub.f32 %v4040, %v4246
      %v4301 = vsub.f32 %v4041, %v4248
      %v4302 = vsub.f32 %v4042, %v4250
      %v4303 = vsub.f32 %v4043, %v4252
      %v4304 = vsub.f32 %v4044, %v4254
      %v4305 = vsub.f32 %v4045, %v4256
      %v4306 = vsub.f32 %v4046, %v4258
      %v4307 = vsub.f32 %v4047, %v4260
      %v4308 = vsub.f32 %v4048, %v4262
      %v4309 = vsub.f32 %v4049, %v4264
      %v4310 = vsub.f32 %v4050, %v4266
      %v4311 = vsub.f32 %v4051, %v4268
      %v4312 = vsub.f32 %v4052, %v4270
      %v4313 = vsub.f32 %v4053, %v4272
      %v4314 = vsub.f32 %v4054, %v4274
      %v4315 = vsub.f32 %v4055, %v4276
      %v4316 = vsub.f32 %v4056, %v4278
      %v4317 = vsub.f32 %v4057, %v4280
      %v4318 = vsub.f32 %v4058, %v4282
      %v4319 = vsub.f32 %v4059, %v4284
      %v4320 = vsub.f32 %v4060, %v4286
      %v4321 = vsub.f32 %v4061, %v4288
      %v4322 = vsub.f32 %v4062, %v4290
      %v4323 = vmul.f32 %v4291, 1.442695
      %v4324 = vpow.pop %v4323
      %v4325 = vmul.f32 %v4292, 1.442695
      %v4326 = vpow.pop %v4325
      %v4327 = vmul.f32 %v4293, 1.442695
      %v4328 = vpow.pop %v4327
      %v4329 = vmul.f32 %v4294, 1.442695
      %v4330 = vpow.pop %v4329
      %v4331 = vmul.f32 %v4295, 1.442695
      %v4332 = vpow.pop %v4331
      %v4333 = vmul.f32 %v4296, 1.442695
      %v4334 = vpow.pop %v4333
      %v4335 = vmul.f32 %v4297, 1.442695
      %v4336 = vpow.pop %v4335
      %v4337 = vmul.f32 %v4298, 1.442695
      %v4338 = vpow.pop %v4337
      %v4339 = vmul.f32 %v4299, 1.442695
      %v4340 = vpow.pop %v4339
      %v4341 = vmul.f32 %v4300, 1.442695
      %v4342 = vpow.pop %v4341
      %v4343 = vmul.f32 %v4301, 1.442695
      %v4344 = vpow.pop %v4343
      %v4345 = vmul.f32 %v4302, 1.442695
      %v4346 = vpow.pop %v4345
      %v4347 = vmul.f32 %v4303, 1.442695
      %v4348 = vpow.pop %v4347
      %v4349 = vmul.f32 %v4304, 1.442695
      %v4350 = vpow.pop %v4349
      %v4351 = vmul.f32 %v4305, 1.442695
      %v4352 = vpow.pop %v4351
      %v4353 = vmul.f32 %v4306, 1.442695
      %v4354 = vpow.pop %v4353
      %v4355 = vmul.f32 %v4307, 1.442695
      %v4356 = vpow.pop %v4355
      %v4357 = vmul.f32 %v4308, 1.442695
      %v4358 = vpow.pop %v4357
      %v4359 = vmul.f32 %v4309, 1.442695
      %v4360 = vpow.pop %v4359
      %v4361 = vmul.f32 %v4310, 1.442695
      %v4362 = vpow.pop %v4361
      %v4363 = vmul.f32 %v4311, 1.442695
      %v4364 = vpow.pop %v4363
      %v4365 = vmul.f32 %v4312, 1.442695
      %v4366 = vpow.pop %v4365
      %v4367 = vmul.f32 %v4313, 1.442695
      %v4368 = vpow.pop %v4367
      %v4369 = vmul.f32 %v4314, 1.442695
      %v4370 = vpow.pop %v4369
      %v4371 = vmul.f32 %v4315, 1.442695
      %v4372 = vpow.pop %v4371
      %v4373 = vmul.f32 %v4316, 1.442695
      %v4374 = vpow.pop %v4373
      %v4375 = vmul.f32 %v4317, 1.442695
      %v4376 = vpow.pop %v4375
      %v4377 = vmul.f32 %v4318, 1.442695
      %v4378 = vpow.pop %v4377
      %v4379 = vmul.f32 %v4319, 1.442695
      %v4380 = vpow.pop %v4379
      %v4381 = vmul.f32 %v4320, 1.442695
      %v4382 = vpow.pop %v4381
      %v4383 = vmul.f32 %v4321, 1.442695
      %v4384 = vpow.pop %v4383
      %v4385 = vmul.f32 %v4322, 1.442695
      %v4386 = vpow.pop %v4385
      %4387 = vadd.xlane.f32.xlu0 %v4324
      %v4388 = vpop.xlane.xlu0 %4387
      %4389 = vadd.xlane.f32.xlu0 %v4326
      %v4390 = vpop.xlane.xlu0 %4389
      %4391 = vadd.xlane.f32.xlu0 %v4328
      %v4392 = vpop.xlane.xlu0 %4391
      %4393 = vadd.xlane.f32.xlu0 %v4330
      %v4394 = vpop.xlane.xlu0 %4393
      %4395 = vadd.xlane.f32.xlu0 %v4332
      %v4396 = vpop.xlane.xlu0 %4395
      %4397 = vadd.xlane.f32.xlu0 %v4334
      %v4398 = vpop.xlane.xlu0 %4397
      %4399 = vadd.xlane.f32.xlu0 %v4336
      %v4400 = vpop.xlane.xlu0 %4399
      %4401 = vadd.xlane.f32.xlu0 %v4338
      %v4402 = vpop.xlane.xlu0 %4401
      %4403 = vadd.xlane.f32.xlu0 %v4340
      %v4404 = vpop.xlane.xlu0 %4403
      %4405 = vadd.xlane.f32.xlu0 %v4342
      %v4406 = vpop.xlane.xlu0 %4405
      %4407 = vadd.xlane.f32.xlu0 %v4344
      %v4408 = vpop.xlane.xlu0 %4407
      %4409 = vadd.xlane.f32.xlu0 %v4346
      %v4410 = vpop.xlane.xlu0 %4409
      %4411 = vadd.xlane.f32.xlu0 %v4348
      %v4412 = vpop.xlane.xlu0 %4411
      %4413 = vadd.xlane.f32.xlu0 %v4350
      %v4414 = vpop.xlane.xlu0 %4413
      %4415 = vadd.xlane.f32.xlu0 %v4352
      %v4416 = vpop.xlane.xlu0 %4415
      %4417 = vadd.xlane.f32.xlu0 %v4354
      %v4418 = vpop.xlane.xlu0 %4417
      %4419 = vadd.xlane.f32.xlu0 %v4356
      %v4420 = vpop.xlane.xlu0 %4419
      %4421 = vadd.xlane.f32.xlu0 %v4358
      %v4422 = vpop.xlane.xlu0 %4421
      %4423 = vadd.xlane.f32.xlu0 %v4360
      %v4424 = vpop.xlane.xlu0 %4423
      %4425 = vadd.xlane.f32.xlu0 %v4362
      %v4426 = vpop.xlane.xlu0 %4425
      %4427 = vadd.xlane.f32.xlu0 %v4364
      %v4428 = vpop.xlane.xlu0 %4427
      %4429 = vadd.xlane.f32.xlu0 %v4366
      %v4430 = vpop.xlane.xlu0 %4429
      %4431 = vadd.xlane.f32.xlu0 %v4368
      %v4432 = vpop.xlane.xlu0 %4431
      %4433 = vadd.xlane.f32.xlu0 %v4370
      %v4434 = vpop.xlane.xlu0 %4433
      %4435 = vadd.xlane.f32.xlu0 %v4372
      %v4436 = vpop.xlane.xlu0 %4435
      %4437 = vadd.xlane.f32.xlu0 %v4374
      %v4438 = vpop.xlane.xlu0 %4437
      %4439 = vadd.xlane.f32.xlu0 %v4376
      %v4440 = vpop.xlane.xlu0 %4439
      %4441 = vadd.xlane.f32.xlu0 %v4378
      %v4442 = vpop.xlane.xlu0 %4441
      %4443 = vadd.xlane.f32.xlu0 %v4380
      %v4444 = vpop.xlane.xlu0 %4443
      %4445 = vadd.xlane.f32.xlu0 %v4382
      %v4446 = vpop.xlane.xlu0 %4445
      %4447 = vadd.xlane.f32.xlu0 %v4384
      %v4448 = vpop.xlane.xlu0 %4447
      %4449 = vadd.xlane.f32.xlu0 %v4386
      %v4450 = vpop.xlane.xlu0 %4449
      %v4451 = vlog2.pop %v4388
      %v4452 = vmul.f32 %v4451, 0.6931472
      %v4453 = vlog2.pop %v4390
      %v4454 = vmul.f32 %v4453, 0.6931472
      %v4455 = vlog2.pop %v4392
      %v4456 = vmul.f32 %v4455, 0.6931472
      %v4457 = vlog2.pop %v4394
      %v4458 = vmul.f32 %v4457, 0.6931472
      %v4459 = vlog2.pop %v4396
      %v4460 = vmul.f32 %v4459, 0.6931472
      %v4461 = vlog2.pop %v4398
      %v4462 = vmul.f32 %v4461, 0.6931472
      %v4463 = vlog2.pop %v4400
      %v4464 = vmul.f32 %v4463, 0.6931472
      %v4465 = vlog2.pop %v4402
      %v4466 = vmul.f32 %v4465, 0.6931472
      %v4467 = vlog2.pop %v4404
      %v4468 = vmul.f32 %v4467, 0.6931472
      %v4469 = vlog2.pop %v4406
      %v4470 = vmul.f32 %v4469, 0.6931472
      %v4471 = vlog2.pop %v4408
      %v4472 = vmul.f32 %v4471, 0.6931472
      %v4473 = vlog2.pop %v4410
      %v4474 = vmul.f32 %v4473, 0.6931472
      %v4475 = vlog2.pop %v4412
      %v4476 = vmul.f32 %v4475, 0.6931472
      %v4477 = vlog2.pop %v4414
      %v4478 = vmul.f32 %v4477, 0.6931472
      %v4479 = vlog2.pop %v4416
      %v4480 = vmul.f32 %v4479, 0.6931472
      %v4481 = vlog2.pop %v4418
      %v4482 = vmul.f32 %v4481, 0.6931472
      %v4483 = vlog2.pop %v4420
      %v4484 = vmul.f32 %v4483, 0.6931472
      %v4485 = vlog2.pop %v4422
      %v4486 = vmul.f32 %v4485, 0.6931472
      %v4487 = vlog2.pop %v4424
      %v4488 = vmul.f32 %v4487, 0.6931472
      %v4489 = vlog2.pop %v4426
      %v4490 = vmul.f32 %v4489, 0.6931472
      %v4491 = vlog2.pop %v4428
      %v4492 = vmul.f32 %v4491, 0.6931472
      %v4493 = vlog2.pop %v4430
      %v4494 = vmul.f32 %v4493, 0.6931472
      %v4495 = vlog2.pop %v4432
      %v4496 = vmul.f32 %v4495, 0.6931472
      %v4497 = vlog2.pop %v4434
      %v4498 = vmul.f32 %v4497, 0.6931472
      %v4499 = vlog2.pop %v4436
      %v4500 = vmul.f32 %v4499, 0.6931472
      %v4501 = vlog2.pop %v4438
      %v4502 = vmul.f32 %v4501, 0.6931472
      %v4503 = vlog2.pop %v4440
      %v4504 = vmul.f32 %v4503, 0.6931472
      %v4505 = vlog2.pop %v4442
      %v4506 = vmul.f32 %v4505, 0.6931472
      %v4507 = vlog2.pop %v4444
      %v4508 = vmul.f32 %v4507, 0.6931472
      %v4509 = vlog2.pop %v4446
      %v4510 = vmul.f32 %v4509, 0.6931472
      %v4511 = vlog2.pop %v4448
      %v4512 = vmul.f32 %v4511, 0.6931472
      %v4513 = vlog2.pop %v4450
      %v4514 = vmul.f32 %v4513, 0.6931472
      %v4515 = vsub.f32 %v4291, %v4452
      %v4516 = vsub.f32 %v4292, %v4454
      %v4517 = vsub.f32 %v4293, %v4456
      %v4518 = vsub.f32 %v4294, %v4458
      %v4519 = vsub.f32 %v4295, %v4460
      %v4520 = vsub.f32 %v4296, %v4462
      %v4521 = vsub.f32 %v4297, %v4464
      %v4522 = vsub.f32 %v4298, %v4466
      %v4523 = vsub.f32 %v4299, %v4468
      %v4524 = vsub.f32 %v4300, %v4470
      %v4525 = vsub.f32 %v4301, %v4472
      %v4526 = vsub.f32 %v4302, %v4474
      %v4527 = vsub.f32 %v4303, %v4476
      %v4528 = vsub.f32 %v4304, %v4478
      %v4529 = vsub.f32 %v4305, %v4480
      %v4530 = vsub.f32 %v4306, %v4482
      %v4531 = vsub.f32 %v4307, %v4484
      %v4532 = vsub.f32 %v4308, %v4486
      %v4533 = vsub.f32 %v4309, %v4488
      %v4534 = vsub.f32 %v4310, %v4490
      %v4535 = vsub.f32 %v4311, %v4492
      %v4536 = vsub.f32 %v4312, %v4494
      %v4537 = vsub.f32 %v4313, %v4496
      %v4538 = vsub.f32 %v4314, %v4498
      %v4539 = vsub.f32 %v4315, %v4500
      %v4540 = vsub.f32 %v4316, %v4502
      %v4541 = vsub.f32 %v4317, %v4504
      %v4542 = vsub.f32 %v4318, %v4506
      %v4543 = vsub.f32 %v4319, %v4508
      %v4544 = vsub.f32 %v4320, %v4510
      %v4545 = vsub.f32 %v4321, %v4512
      %v4546 = vsub.f32 %v4322, %v4514
      %v4547 = vmul.f32 %v4195, 1.442695
      %v4548 = vpow.pop %v4547
      %v4549 = vmul.f32 %v4196, 1.442695
      %v4550 = vpow.pop %v4549
      %v4551 = vmul.f32 %v4197, 1.442695
      %v4552 = vpow.pop %v4551
      %v4553 = vmul.f32 %v4198, 1.442695
      %v4554 = vpow.pop %v4553
      %v4555 = vmul.f32 %v4199, 1.442695
      %v4556 = vpow.pop %v4555
      %v4557 = vmul.f32 %v4200, 1.442695
      %v4558 = vpow.pop %v4557
      %v4559 = vmul.f32 %v4201, 1.442695
      %v4560 = vpow.pop %v4559
      %v4561 = vmul.f32 %v4202, 1.442695
      %v4562 = vpow.pop %v4561
      %v4563 = vmul.f32 %v4203, 1.442695
      %v4564 = vpow.pop %v4563
      %v4565 = vmul.f32 %v4204, 1.442695
      %v4566 = vpow.pop %v4565
      %v4567 = vmul.f32 %v4205, 1.442695
      %v4568 = vpow.pop %v4567
      %v4569 = vmul.f32 %v4206, 1.442695
      %v4570 = vpow.pop %v4569
      %v4571 = vmul.f32 %v4207, 1.442695
      %v4572 = vpow.pop %v4571
      %v4573 = vmul.f32 %v4208, 1.442695
      %v4574 = vpow.pop %v4573
      %v4575 = vmul.f32 %v4209, 1.442695
      %v4576 = vpow.pop %v4575
      %v4577 = vmul.f32 %v4210, 1.442695
      %v4578 = vpow.pop %v4577
      %v4579 = vmul.f32 %v4211, 1.442695
      %v4580 = vpow.pop %v4579
      %v4581 = vmul.f32 %v4212, 1.442695
      %v4582 = vpow.pop %v4581
      %v4583 = vmul.f32 %v4213, 1.442695
      %v4584 = vpow.pop %v4583
      %v4585 = vmul.f32 %v4214, 1.442695
      %v4586 = vpow.pop %v4585
      %v4587 = vmul.f32 %v4215, 1.442695
      %v4588 = vpow.pop %v4587
      %v4589 = vmul.f32 %v4216, 1.442695
      %v4590 = vpow.pop %v4589
      %v4591 = vmul.f32 %v4217, 1.442695
      %v4592 = vpow.pop %v4591
      %v4593 = vmul.f32 %v4218, 1.442695
      %v4594 = vpow.pop %v4593
      %v4595 = vmul.f32 %v4219, 1.442695
      %v4596 = vpow.pop %v4595
      %v4597 = vmul.f32 %v4220, 1.442695
      %v4598 = vpow.pop %v4597
      %v4599 = vmul.f32 %v4221, 1.442695
      %v4600 = vpow.pop %v4599
      %v4601 = vmul.f32 %v4222, 1.442695
      %v4602 = vpow.pop %v4601
      %v4603 = vmul.f32 %v4223, 1.442695
      %v4604 = vpow.pop %v4603
      %v4605 = vmul.f32 %v4224, 1.442695
      %v4606 = vpow.pop %v4605
      %v4607 = vmul.f32 %v4225, 1.442695
      %v4608 = vpow.pop %v4607
      %v4609 = vmul.f32 %v4226, 1.442695
      %v4610 = vpow.pop %v4609
      %4611 = vadd.xlane.f32.xlu0 %v4548
      %v4612 = vpop.xlane.xlu0 %4611
      %4613 = vadd.xlane.f32.xlu0 %v4550
      %v4614 = vpop.xlane.xlu0 %4613
      %4615 = vadd.xlane.f32.xlu0 %v4552
      %v4616 = vpop.xlane.xlu0 %4615
      %4617 = vadd.xlane.f32.xlu0 %v4554
      %v4618 = vpop.xlane.xlu0 %4617
      %4619 = vadd.xlane.f32.xlu0 %v4556
      %v4620 = vpop.xlane.xlu0 %4619
      %4621 = vadd.xlane.f32.xlu0 %v4558
      %v4622 = vpop.xlane.xlu0 %4621
      %4623 = vadd.xlane.f32.xlu0 %v4560
      %v4624 = vpop.xlane.xlu0 %4623
      %4625 = vadd.xlane.f32.xlu0 %v4562
      %v4626 = vpop.xlane.xlu0 %4625
      %4627 = vadd.xlane.f32.xlu0 %v4564
      %v4628 = vpop.xlane.xlu0 %4627
      %4629 = vadd.xlane.f32.xlu0 %v4566
      %v4630 = vpop.xlane.xlu0 %4629
      %4631 = vadd.xlane.f32.xlu0 %v4568
      %v4632 = vpop.xlane.xlu0 %4631
      %4633 = vadd.xlane.f32.xlu0 %v4570
      %v4634 = vpop.xlane.xlu0 %4633
      %4635 = vadd.xlane.f32.xlu0 %v4572
      %v4636 = vpop.xlane.xlu0 %4635
      %4637 = vadd.xlane.f32.xlu0 %v4574
      %v4638 = vpop.xlane.xlu0 %4637
      %4639 = vadd.xlane.f32.xlu0 %v4576
      %v4640 = vpop.xlane.xlu0 %4639
      %4641 = vadd.xlane.f32.xlu0 %v4578
      %v4642 = vpop.xlane.xlu0 %4641
      %4643 = vadd.xlane.f32.xlu0 %v4580
      %v4644 = vpop.xlane.xlu0 %4643
      %4645 = vadd.xlane.f32.xlu0 %v4582
      %v4646 = vpop.xlane.xlu0 %4645
      %4647 = vadd.xlane.f32.xlu0 %v4584
      %v4648 = vpop.xlane.xlu0 %4647
      %4649 = vadd.xlane.f32.xlu0 %v4586
      %v4650 = vpop.xlane.xlu0 %4649
      %4651 = vadd.xlane.f32.xlu0 %v4588
      %v4652 = vpop.xlane.xlu0 %4651
      %4653 = vadd.xlane.f32.xlu0 %v4590
      %v4654 = vpop.xlane.xlu0 %4653
      %4655 = vadd.xlane.f32.xlu0 %v4592
      %v4656 = vpop.xlane.xlu0 %4655
      %4657 = vadd.xlane.f32.xlu0 %v4594
      %v4658 = vpop.xlane.xlu0 %4657
      %4659 = vadd.xlane.f32.xlu0 %v4596
      %v4660 = vpop.xlane.xlu0 %4659
      %4661 = vadd.xlane.f32.xlu0 %v4598
      %v4662 = vpop.xlane.xlu0 %4661
      %4663 = vadd.xlane.f32.xlu0 %v4600
      %v4664 = vpop.xlane.xlu0 %4663
      %4665 = vadd.xlane.f32.xlu0 %v4602
      %v4666 = vpop.xlane.xlu0 %4665
      %4667 = vadd.xlane.f32.xlu0 %v4604
      %v4668 = vpop.xlane.xlu0 %4667
      %4669 = vadd.xlane.f32.xlu0 %v4606
      %v4670 = vpop.xlane.xlu0 %4669
      %4671 = vadd.xlane.f32.xlu0 %v4608
      %v4672 = vpop.xlane.xlu0 %4671
      %4673 = vadd.xlane.f32.xlu0 %v4610
      %v4674 = vpop.xlane.xlu0 %4673
      %v4675 = vlog2.pop %v4612
      %v4676 = vmul.f32 %v4675, 0.6931472
      %v4677 = vlog2.pop %v4614
      %v4678 = vmul.f32 %v4677, 0.6931472
      %v4679 = vlog2.pop %v4616
      %v4680 = vmul.f32 %v4679, 0.6931472
      %v4681 = vlog2.pop %v4618
      %v4682 = vmul.f32 %v4681, 0.6931472
      %v4683 = vlog2.pop %v4620
      %v4684 = vmul.f32 %v4683, 0.6931472
      %v4685 = vlog2.pop %v4622
      %v4686 = vmul.f32 %v4685, 0.6931472
      %v4687 = vlog2.pop %v4624
      %v4688 = vmul.f32 %v4687, 0.6931472
      %v4689 = vlog2.pop %v4626
      %v4690 = vmul.f32 %v4689, 0.6931472
      %v4691 = vlog2.pop %v4628
      %v4692 = vmul.f32 %v4691, 0.6931472
      %v4693 = vlog2.pop %v4630
      %v4694 = vmul.f32 %v4693, 0.6931472
      %v4695 = vlog2.pop %v4632
      %v4696 = vmul.f32 %v4695, 0.6931472
      %v4697 = vlog2.pop %v4634
      %v4698 = vmul.f32 %v4697, 0.6931472
      %v4699 = vlog2.pop %v4636
      %v4700 = vmul.f32 %v4699, 0.6931472
      %v4701 = vlog2.pop %v4638
      %v4702 = vmul.f32 %v4701, 0.6931472
      %v4703 = vlog2.pop %v4640
      %v4704 = vmul.f32 %v4703, 0.6931472
      %v4705 = vlog2.pop %v4642
      %v4706 = vmul.f32 %v4705, 0.6931472
      %v4707 = vlog2.pop %v4644
      %v4708 = vmul.f32 %v4707, 0.6931472
      %v4709 = vlog2.pop %v4646
      %v4710 = vmul.f32 %v4709, 0.6931472
      %v4711 = vlog2.pop %v4648
      %v4712 = vmul.f32 %v4711, 0.6931472
      %v4713 = vlog2.pop %v4650
      %v4714 = vmul.f32 %v4713, 0.6931472
      %v4715 = vlog2.pop %v4652
      %v4716 = vmul.f32 %v4715, 0.6931472
      %v4717 = vlog2.pop %v4654
      %v4718 = vmul.f32 %v4717, 0.6931472
      %v4719 = vlog2.pop %v4656
      %v4720 = vmul.f32 %v4719, 0.6931472
      %v4721 = vlog2.pop %v4658
      %v4722 = vmul.f32 %v4721, 0.6931472
      %v4723 = vlog2.pop %v4660
      %v4724 = vmul.f32 %v4723, 0.6931472
      %v4725 = vlog2.pop %v4662
      %v4726 = vmul.f32 %v4725, 0.6931472
      %v4727 = vlog2.pop %v4664
      %v4728 = vmul.f32 %v4727, 0.6931472
      %v4729 = vlog2.pop %v4666
      %v4730 = vmul.f32 %v4729, 0.6931472
      %v4731 = vlog2.pop %v4668
      %v4732 = vmul.f32 %v4731, 0.6931472
      %v4733 = vlog2.pop %v4670
      %v4734 = vmul.f32 %v4733, 0.6931472
      %v4735 = vlog2.pop %v4672
      %v4736 = vmul.f32 %v4735, 0.6931472
      %v4737 = vlog2.pop %v4674
      %v4738 = vmul.f32 %v4737, 0.6931472
      %v4739 = vsub.f32 %v4195, %v4676
      %v4740 = vsub.f32 %v4196, %v4678
      %v4741 = vsub.f32 %v4197, %v4680
      %v4742 = vsub.f32 %v4198, %v4682
      %v4743 = vsub.f32 %v4199, %v4684
      %v4744 = vsub.f32 %v4200, %v4686
      %v4745 = vsub.f32 %v4201, %v4688
      %v4746 = vsub.f32 %v4202, %v4690
      %v4747 = vsub.f32 %v4203, %v4692
      %v4748 = vsub.f32 %v4204, %v4694
      %v4749 = vsub.f32 %v4205, %v4696
      %v4750 = vsub.f32 %v4206, %v4698
      %v4751 = vsub.f32 %v4207, %v4700
      %v4752 = vsub.f32 %v4208, %v4702
      %v4753 = vsub.f32 %v4209, %v4704
      %v4754 = vsub.f32 %v4210, %v4706
      %v4755 = vsub.f32 %v4211, %v4708
      %v4756 = vsub.f32 %v4212, %v4710
      %v4757 = vsub.f32 %v4213, %v4712
      %v4758 = vsub.f32 %v4214, %v4714
      %v4759 = vsub.f32 %v4215, %v4716
      %v4760 = vsub.f32 %v4216, %v4718
      %v4761 = vsub.f32 %v4217, %v4720
      %v4762 = vsub.f32 %v4218, %v4722
      %v4763 = vsub.f32 %v4219, %v4724
      %v4764 = vsub.f32 %v4220, %v4726
      %v4765 = vsub.f32 %v4221, %v4728
      %v4766 = vsub.f32 %v4222, %v4730
      %v4767 = vsub.f32 %v4223, %v4732
      %v4768 = vsub.f32 %v4224, %v4734
      %v4769 = vsub.f32 %v4225, %v4736
      %v4770 = vsub.f32 %v4226, %v4738
      %v4771 = vadd.f32 %v4515, %v4739
      %v4772 = vadd.f32 %v4516, %v4740
      %v4773 = vadd.f32 %v4517, %v4741
      %v4774 = vadd.f32 %v4518, %v4742
      %v4775 = vadd.f32 %v4519, %v4743
      %v4776 = vadd.f32 %v4520, %v4744
      %v4777 = vadd.f32 %v4521, %v4745
      %v4778 = vadd.f32 %v4522, %v4746
      %v4779 = vadd.f32 %v4523, %v4747
      %v4780 = vadd.f32 %v4524, %v4748
      %v4781 = vadd.f32 %v4525, %v4749
      %v4782 = vadd.f32 %v4526, %v4750
      %v4783 = vadd.f32 %v4527, %v4751
      %v4784 = vadd.f32 %v4528, %v4752
      %v4785 = vadd.f32 %v4529, %v4753
      %v4786 = vadd.f32 %v4530, %v4754
      %v4787 = vadd.f32 %v4531, %v4755
      %v4788 = vadd.f32 %v4532, %v4756
      %v4789 = vadd.f32 %v4533, %v4757
      %v4790 = vadd.f32 %v4534, %v4758
      %v4791 = vadd.f32 %v4535, %v4759
      %v4792 = vadd.f32 %v4536, %v4760
      %v4793 = vadd.f32 %v4537, %v4761
      %v4794 = vadd.f32 %v4538, %v4762
      %v4795 = vadd.f32 %v4539, %v4763
      %v4796 = vadd.f32 %v4540, %v4764
      %v4797 = vadd.f32 %v4541, %v4765
      %v4798 = vadd.f32 %v4542, %v4766
      %v4799 = vadd.f32 %v4543, %v4767
      %v4800 = vadd.f32 %v4544, %v4768
      %v4801 = vadd.f32 %v4545, %v4769
      %v4802 = vadd.f32 %v4546, %v4770
      %v4803 = vmul.f32 %v4771, 0.5
      %v4804 = vmul.f32 %v4772, 0.5
      %v4805 = vmul.f32 %v4773, 0.5
      %v4806 = vmul.f32 %v4774, 0.5
      %v4807 = vmul.f32 %v4775, 0.5
      %v4808 = vmul.f32 %v4776, 0.5
      %v4809 = vmul.f32 %v4777, 0.5
      %v4810 = vmul.f32 %v4778, 0.5
      %v4811 = vmul.f32 %v4779, 0.5
      %v4812 = vmul.f32 %v4780, 0.5
      %v4813 = vmul.f32 %v4781, 0.5
      %v4814 = vmul.f32 %v4782, 0.5
      %v4815 = vmul.f32 %v4783, 0.5
      %v4816 = vmul.f32 %v4784, 0.5
      %v4817 = vmul.f32 %v4785, 0.5
      %v4818 = vmul.f32 %v4786, 0.5
      %v4819 = vmul.f32 %v4787, 0.5
      %v4820 = vmul.f32 %v4788, 0.5
      %v4821 = vmul.f32 %v4789, 0.5
      %v4822 = vmul.f32 %v4790, 0.5
      %v4823 = vmul.f32 %v4791, 0.5
      %v4824 = vmul.f32 %v4792, 0.5
      %v4825 = vmul.f32 %v4793, 0.5
      %v4826 = vmul.f32 %v4794, 0.5
      %v4827 = vmul.f32 %v4795, 0.5
      %v4828 = vmul.f32 %v4796, 0.5
      %v4829 = vmul.f32 %v4797, 0.5
      %v4830 = vmul.f32 %v4798, 0.5
      %v4831 = vmul.f32 %v4799, 0.5
      %v4832 = vmul.f32 %v4800, 0.5
      %v4833 = vmul.f32 %v4801, 0.5
      %v4834 = vmul.f32 %v4802, 0.5
      %v4835 = vlaneseq
      %v4836 = vshrl.u32 %v4835, 7
      %v4837 = vsub.s32 3, %v4836
      %v4838 = vrot.slane %v3318, %v4837
      %v4839 = vmul.f32 %v3160, %v4838
      %v4840 = vmul.f32 %v3165, %v4838
      %v4841 = vmul.f32 %v3170, %v4838
      %v4842 = vmul.f32 %v3175, %v4838
      %v4843 = vmul.f32 %v3180, %v4838
      %v4844 = vmul.f32 %v3185, %v4838
      %v4845 = vmul.f32 %v3190, %v4838
      %v4846 = vmul.f32 %v3195, %v4838
      %v4847 = vmul.f32 %v3200, %v4838
      %v4848 = vmul.f32 %v3205, %v4838
      %v4849 = vmul.f32 %v3210, %v4838
      %v4850 = vmul.f32 %v3215, %v4838
      %v4851 = vmul.f32 %v3220, %v4838
      %v4852 = vmul.f32 %v3225, %v4838
      %v4853 = vmul.f32 %v3230, %v4838
      %v4854 = vmul.f32 %v3235, %v4838
      %v4855 = vmul.f32 %v3240, %v4838
      %v4856 = vmul.f32 %v3245, %v4838
      %v4857 = vmul.f32 %v3250, %v4838
      %v4858 = vmul.f32 %v3255, %v4838
      %v4859 = vmul.f32 %v3260, %v4838
      %v4860 = vmul.f32 %v3265, %v4838
      %v4861 = vmul.f32 %v3270, %v4838
      %v4862 = vmul.f32 %v3275, %v4838
      %v4863 = vmul.f32 %v3280, %v4838
      %v4864 = vmul.f32 %v3285, %v4838
      %v4865 = vmul.f32 %v3290, %v4838
      %v4866 = vmul.f32 %v3295, %v4838
      %v4867 = vmul.f32 %v3300, %v4838
      %v4868 = vmul.f32 %v3305, %v4838
      %v4869 = vmul.f32 %v3310, %v4838
      %v4870 = vmul.f32 %v3315, %v4838
      %v4871 = vlaneseq
      %v4872 = vshrl.u32 %v4871, 7
      %v4873 = vsub.s32 4, %v4872
      %v4874 = vrot.slane %v3318, %v4873
      %v4875 = vmul.f32 %v4803, %v4874
      %v4876 = vmul.f32 %v4804, %v4874
      %v4877 = vmul.f32 %v4805, %v4874
      %v4878 = vmul.f32 %v4806, %v4874
      %v4879 = vmul.f32 %v4807, %v4874
      %v4880 = vmul.f32 %v4808, %v4874
      %v4881 = vmul.f32 %v4809, %v4874
      %v4882 = vmul.f32 %v4810, %v4874
      %v4883 = vmul.f32 %v4811, %v4874
      %v4884 = vmul.f32 %v4812, %v4874
      %v4885 = vmul.f32 %v4813, %v4874
      %v4886 = vmul.f32 %v4814, %v4874
      %v4887 = vmul.f32 %v4815, %v4874
      %v4888 = vmul.f32 %v4816, %v4874
      %v4889 = vmul.f32 %v4817, %v4874
      %v4890 = vmul.f32 %v4818, %v4874
      %v4891 = vmul.f32 %v4819, %v4874
      %v4892 = vmul.f32 %v4820, %v4874
      %v4893 = vmul.f32 %v4821, %v4874
      %v4894 = vmul.f32 %v4822, %v4874
      %v4895 = vmul.f32 %v4823, %v4874
      %v4896 = vmul.f32 %v4824, %v4874
      %v4897 = vmul.f32 %v4825, %v4874
      %v4898 = vmul.f32 %v4826, %v4874
      %v4899 = vmul.f32 %v4827, %v4874
      %v4900 = vmul.f32 %v4828, %v4874
      %v4901 = vmul.f32 %v4829, %v4874
      %v4902 = vmul.f32 %v4830, %v4874
      %v4903 = vmul.f32 %v4831, %v4874
      %v4904 = vmul.f32 %v4832, %v4874
      %v4905 = vmul.f32 %v4833, %v4874
      %v4906 = vmul.f32 %v4834, %v4874
      %v4907 = vadd.f32 %v4839, %v4875
      %v4908 = vadd.f32 %v4840, %v4876
      %v4909 = vadd.f32 %v4841, %v4877
      %v4910 = vadd.f32 %v4842, %v4878
      %v4911 = vadd.f32 %v4843, %v4879
      %v4912 = vadd.f32 %v4844, %v4880
      %v4913 = vadd.f32 %v4845, %v4881
      %v4914 = vadd.f32 %v4846, %v4882
      %v4915 = vadd.f32 %v4847, %v4883
      %v4916 = vadd.f32 %v4848, %v4884
      %v4917 = vadd.f32 %v4849, %v4885
      %v4918 = vadd.f32 %v4850, %v4886
      %v4919 = vadd.f32 %v4851, %v4887
      %v4920 = vadd.f32 %v4852, %v4888
      %v4921 = vadd.f32 %v4853, %v4889
      %v4922 = vadd.f32 %v4854, %v4890
      %v4923 = vadd.f32 %v4855, %v4891
      %v4924 = vadd.f32 %v4856, %v4892
      %v4925 = vadd.f32 %v4857, %v4893
      %v4926 = vadd.f32 %v4858, %v4894
      %v4927 = vadd.f32 %v4859, %v4895
      %v4928 = vadd.f32 %v4860, %v4896
      %v4929 = vadd.f32 %v4861, %v4897
      %v4930 = vadd.f32 %v4862, %v4898
      %v4931 = vadd.f32 %v4863, %v4899
      %v4932 = vadd.f32 %v4864, %v4900
      %v4933 = vadd.f32 %v4865, %v4901
      %v4934 = vadd.f32 %v4866, %v4902
      %v4935 = vadd.f32 %v4867, %v4903
      %v4936 = vadd.f32 %v4868, %v4904
      %v4937 = vadd.f32 %v4869, %v4905
      %v4938 = vadd.f32 %v4870, %v4906
      %v4939 = vadd.f32 %v4907, %v3045
      %v4940 = vadd.f32 %v4908, %v3046
      %v4941 = vadd.f32 %v4909, %v3047
      %v4942 = vadd.f32 %v4910, %v3048
      %v4943 = vadd.f32 %v4911, %v3049
      %v4944 = vadd.f32 %v4912, %v3050
      %v4945 = vadd.f32 %v4913, %v3051
      %v4946 = vadd.f32 %v4914, %v3052
      %v4947 = vadd.f32 %v4915, %v3053
      %v4948 = vadd.f32 %v4916, %v3054
      %v4949 = vadd.f32 %v4917, %v3055
      %v4950 = vadd.f32 %v4918, %v3056
      %v4951 = vadd.f32 %v4919, %v3057
      %v4952 = vadd.f32 %v4920, %v3058
      %v4953 = vadd.f32 %v4921, %v3059
      %v4954 = vadd.f32 %v4922, %v3060
      %v4955 = vadd.f32 %v4923, %v3061
      %v4956 = vadd.f32 %v4924, %v3062
      %v4957 = vadd.f32 %v4925, %v3063
      %v4958 = vadd.f32 %v4926, %v3064
      %v4959 = vadd.f32 %v4927, %v3065
      %v4960 = vadd.f32 %v4928, %v3066
      %v4961 = vadd.f32 %v4929, %v3067
      %v4962 = vadd.f32 %v4930, %v3068
      %v4963 = vadd.f32 %v4931, %v3069
      %v4964 = vadd.f32 %v4932, %v3070
      %v4965 = vadd.f32 %v4933, %v3071
      %v4966 = vadd.f32 %v4934, %v3072
      %v4967 = vadd.f32 %v4935, %v3073
      %v4968 = vadd.f32 %v4936, %v3074
      %v4969 = vadd.f32 %v4937, %v3075
      %v4970 = vadd.f32 %v4938, %v3076
      %4971 = vst [vmem:[%s307] sm:$0xff] %v4939
      %4972 = vst [vmem:[%s307 + $0x8] sm:$0xff] %v4940
      %4973 = vst [vmem:[%s307 + $0x10] sm:$0xff] %v4941
      %4974 = vst [vmem:[%s307 + $0x18] sm:$0xff] %v4942
      %4975 = vst [vmem:[%s307 + $0x20] sm:$0xff] %v4943
      %4976 = vst [vmem:[%s307 + $0x28] sm:$0xff] %v4944
      %4977 = vst [vmem:[%s307 + $0x30] sm:$0xff] %v4945
      %4978 = vst [vmem:[%s307 + $0x38] sm:$0xff] %v4946
      %4979 = vst [vmem:[%s307 + $0x40] sm:$0xff] %v4947
      %4980 = vst [vmem:[%s307 + $0x48] sm:$0xff] %v4948
      %4981 = vst [vmem:[%s307 + $0x50] sm:$0xff] %v4949
      %4982 = vst [vmem:[%s307 + $0x58] sm:$0xff] %v4950
      %4983 = vst [vmem:[%s307 + $0x60] sm:$0xff] %v4951
      %4984 = vst [vmem:[%s307 + $0x68] sm:$0xff] %v4952
      %4985 = vst [vmem:[%s307 + $0x70] sm:$0xff] %v4953
      %4986 = vst [vmem:[%s307 + $0x78] sm:$0xff] %v4954
      %4987 = vst [vmem:[%s307 + $0x80] sm:$0xff] %v4955
      %4988 = vst [vmem:[%s307 + $0x88] sm:$0xff] %v4956
      %4989 = vst [vmem:[%s307 + $0x90] sm:$0xff] %v4957
      %4990 = vst [vmem:[%s307 + $0x98] sm:$0xff] %v4958
      %4991 = vst [vmem:[%s307 + $0xa0] sm:$0xff] %v4959
      %4992 = vst [vmem:[%s307 + $0xa8] sm:$0xff] %v4960
      %4993 = vst [vmem:[%s307 + $0xb0] sm:$0xff] %v4961
      %4994 = vst [vmem:[%s307 + $0xb8] sm:$0xff] %v4962
      %4995 = vst [vmem:[%s307 + $0xc0] sm:$0xff] %v4963
      %4996 = vst [vmem:[%s307 + $0xc8] sm:$0xff] %v4964
      %4997 = vst [vmem:[%s307 + $0xd0] sm:$0xff] %v4965
      %4998 = vst [vmem:[%s307 + $0xd8] sm:$0xff] %v4966
      %4999 = vst [vmem:[%s307 + $0xe0] sm:$0xff] %v4967
      %5000 = vst [vmem:[%s307 + $0xe8] sm:$0xff] %v4968
      %5001 = vst [vmem:[%s307 + $0xf0] sm:$0xff] %v4969
      %5002 = vst [vmem:[%s307 + $0xf8] sm:$0xff] %v4970
      %s5003 = smul.u32 32, %s19
      %p5004 = scmp.lt.s32.totalorder %s5003, 63
      %s5005 = scalar_select %p5004, %s5003, 63
      %s5006 = smul.addr %s5005, 8
      %s5007 = scalar_lea.vmem %s8, %s5006
      // Predicated region
      $region53: #{smn_forward.1} parent=51 // pred_check
        %p5008 = pneg %p210
      $region54: #{smn_forward.1} parent=51 // pred_check_branch
        %5010 = sbr.rel (%p5008) target = $region56
      $region55: #{smn_forward.1} parent=51 // pred_region
        %s5011 = smul.u32 32, %s19
      $region56: #{smn_forward.1} parent=51 // pred_fallthru
        _
    $region52: #{smn_forward.1} parent=5 // pred_fallthru
      _
    %p5012 = scmp.le.s32.totalorder 2, %s14
    // Predicated region
    $region57: #{smn_forward.1} parent=5 // pred_check
      %p5013 = pneg %p5012
    $region58: #{smn_forward.1} parent=5 // pred_check_branch
      %5015 = sbr.rel (%p5013) target = $region60
    $region59: #{smn_forward.1} parent=5 // pred_region
      %s5016 = ssub.s32 %s14, 2
      // Predicated region
      $region61: #{smn_forward.1} parent=59 // pred_check
        %p5017 = pneg %p216
      $region62: #{smn_forward.1} parent=59 // pred_check_branch
        %5019 = sbr.rel (%p5017) target = $region64
      $region63: #{smn_forward.1} parent=59 // pred_region
        %s5020 = smul.u32 32, %s20
        %p5021 = scmp.lt.s32.totalorder %s5020, 63
        %s5022 = scalar_select %p5021, %s5020, 63
        %s5023 = smul.addr %s5022, 8
        %s5024 = scalar_lea.vmem %s8, %s5023
      $region64: #{smn_forward.1} parent=59 // pred_fallthru
        _
    $region60: #{smn_forward.1} parent=5 // pred_fallthru
      _
  $region6: #{smn_forward.1} parent=0 // loop_footer
    %s18 = sadd.s32 1, %s14
  $region7: #{smn_forward.1} parent=0 // loop_footer_branch
    %13 = sbr.rel target = $region3
  $region8: #{smn_forward.1} parent=0 // loop_exit
    _

</llo_original>
